<compile_context>
chip_gen: v7x
topology: tpu7x:2x2x1
jax: 0.10.0
libtpu: 0.0.40
codegen_flags: <defaults>
</compile_context>

<pallas_src>
import functools
import math

import jax
import jax.numpy as jnp
from jax.experimental import pallas as pl
from jax.experimental.pallas import tpu as pltpu

_GELU_C = math.sqrt(2.0 / math.pi)
_VMEM_LIMIT = 48 * 1024 * 1024  # < 64 MiB (v7x physical); lifts v5e's 16 MiB default


def _round_up(x, m):
    return (x + m - 1) // m * m


def _choose_tm(M, cap=256, min_div=64):
    """Row-tile size.  Prefers a tile that divides M exactly (no pad/slice copies)."""
    Mu = _round_up(M, 8)
    if Mu <= cap:
        return Mu
    if M % 8 == 0:
        for tm in range(cap, min_div - 1, -8):
            if M % tm == 0:
                return tm
    return cap  # fallback: wrapper pads M up to a multiple of cap


def _largest_divisor(n, cap):
    for d in range(min(n, cap), 0, -1):
        if n % d == 0:
            return d
    return 1


def _cparams(dims):
    return pltpu.CompilerParams(dimension_semantics=dims,
                                vmem_limit_bytes=_VMEM_LIMIT)


def _apply_activation(y, activation):
    if activation == "relu":
        return jnp.maximum(y, 0.0)
    if activation == "gelu_new":
        # GPT-2 "gelu_new" (tanh approximation), kept in f32 on the VPU/EUP.
        return 0.5 * y * (1.0 + jnp.tanh(_GELU_C * (y + 0.044715 * y * y * y)))
    return y


# ----------------------------- Pallas kernels -----------------------------

def _instance_norm_kernel(x_ref, o_ref):
    x = x_ref[...]
    mean = jnp.mean(x, axis=-1, keepdims=True)
    var = jnp.mean((x - mean) ** 2, axis=-1, keepdims=True)
    o_ref[...] = ((x - mean) * jax.lax.rsqrt(var + 1e-5)).astype(o_ref.dtype)


def instance_norm_rows(x):
    """Per-row instance norm. x: (R, L), time on the lane axis."""
    R, L = x.shape
    rt = _choose_tm(R, cap=1024)
    Rp = _round_up(R, rt)
    xp = x if Rp == R else jnp.pad(x, ((0, Rp - R), (0, 0)))
    out = pl.pallas_call(
        _instance_norm_kernel,
        out_shape=jax.ShapeDtypeStruct((Rp, L), jnp.float32),
        grid=(Rp // rt,),
        in_specs=[pl.BlockSpec((rt, L), lambda i: (i, 0))],
        out_specs=pl.BlockSpec((rt, L), lambda i: (i, 0)),
        compiler_params=pltpu.CompilerParams(dimension_semantics=("parallel",)),
    )(xp)
    return out[:R] if Rp != R else out


def _in_layer_kernel(x_ref, w_ref, b_ref, pe_ref, o_ref):
    # in_layer Linear(P -> D) fused with the GPT-2 positional-embedding add.
    tb, n, p = x_ref.shape
    y = jnp.dot(x_ref[...].reshape(tb * n, p).astype(jnp.bfloat16),
                w_ref[...].astype(jnp.bfloat16),
                preferred_element_type=jnp.float32)
    y = y.reshape(tb, n, -1) + b_ref[...] + pe_ref[...]
    o_ref[...] = y.astype(o_ref.dtype)


def pallas_in_layer(patches, w, b, wpe):
    """h = patches @ w + b + wpe[None]. patches: (BC, N, P); returns (BC, N, D) f32."""
    BC, N, P = patches.shape
    D = w.shape[1]
    cap = max(1, (2 * 1024 * 1024) // max(1, N * D * 4))
    tb = _largest_divisor(BC, cap)
    return pl.pallas_call(
        _in_layer_kernel,
        out_shape=jax.ShapeDtypeStruct((BC, N, D), jnp.float32),
        grid=(BC // tb,),
        in_specs=[
            pl.BlockSpec((tb, N, P), lambda i: (i, 0, 0)),
            pl.BlockSpec((P, D), lambda i: (0, 0)),
            pl.BlockSpec((1, D), lambda i: (0, 0)),
            pl.BlockSpec((N, D), lambda i: (0, 0)),
        ],
        out_specs=pl.BlockSpec((tb, N, D), lambda i: (i, 0, 0)),
        compiler_params=_cparams(("parallel",)),
    )(patches, w, b.reshape(1, D), wpe)


def _ln_linear_kernel(x_ref, g_ref, be_ref, w_ref, b_ref, o_ref, *, activation):
    # Fused LayerNorm (over full feature dim) + matmul (+activation); weight resident.
    x = x_ref[...]
    mean = jnp.mean(x, axis=-1, keepdims=True)
    var = jnp.mean((x - mean) ** 2, axis=-1, keepdims=True)
    xn = (x - mean) * jax.lax.rsqrt(var + 1e-5) * g_ref[...] + be_ref[...]
    y = jnp.dot(xn.astype(jnp.bfloat16), w_ref[...].astype(jnp.bfloat16),
                preferred_element_type=jnp.float32) + b_ref[...]
    o_ref[...] = _apply_activation(y, activation).astype(o_ref.dtype)


def pallas_ln_linear(x, g, be, w, b, activation=None, out_dtype=jnp.float32):
    """y = act(LayerNorm(x) @ w + b). Whole (D, N) bf16 weight resident in VMEM."""
    M, D = x.shape
    N = w.shape[1]
    tm = _choose_tm(M)
    Mp = _round_up(M, tm)
    xp = x if Mp == M else jnp.pad(x, ((0, Mp - M), (0, 0)))
    out = pl.pallas_call(
        functools.partial(_ln_linear_kernel, activation=activation),
        out_shape=jax.ShapeDtypeStruct((Mp, N), out_dtype),
        grid=(Mp // tm,),
        in_specs=[
            pl.BlockSpec((tm, D), lambda i: (i, 0)),
            pl.BlockSpec((1, D), lambda i: (0, 0)),
            pl.BlockSpec((1, D), lambda i: (0, 0)),
            pl.BlockSpec((D, N), lambda i: (0, 0)),
            pl.BlockSpec((1, N), lambda i: (0, 0)),
        ],
        out_specs=pl.BlockSpec((tm, N), lambda i: (i, 0)),
        compiler_params=_cparams(("parallel",)),
    )(xp, g.reshape(1, D), be.reshape(1, D), w, b.reshape(1, N))
    return out[:M] if Mp != M else out


def _linear_resident_kernel(x_ref, w_ref, b_ref, *rest, activation, has_res):
    if has_res:
        res_ref, o_ref = rest
    else:
        (o_ref,) = rest
    y = jnp.dot(x_ref[...].astype(jnp.bfloat16), w_ref[...].astype(jnp.bfloat16),
                preferred_element_type=jnp.float32) + b_ref[...]
    y = _apply_activation(y, activation)
    if has_res:
        y = y + res_ref[...]
    o_ref[...] = y.astype(o_ref.dtype)


def pallas_linear_resident(x, w, b, activation=None, residual=None,
                           out_dtype=jnp.float32):
    """y = act(x @ w + b) (+ residual).  The whole (K, N) bf16 weight stays resident
    in VMEM (constant index_map => fetched once, never re-streamed per row tile)."""
    M, K = x.shape
    N = w.shape[1]
    tm = _choose_tm(M)
    Mp = _round_up(M, tm)
    xp = x if Mp == M else jnp.pad(x, ((0, Mp - M), (0, 0)))
    has_res = residual is not None
    inputs = [xp, w, b.reshape(1, N)]
    in_specs = [
        pl.BlockSpec((tm, K), lambda i: (i, 0)),
        pl.BlockSpec((K, N), lambda i: (0, 0)),
        pl.BlockSpec((1, N), lambda i: (0, 0)),
    ]
    if has_res:
        rp = residual if Mp == M else jnp.pad(residual, ((0, Mp - M), (0, 0)))
        inputs.append(rp)
        in_specs.append(pl.BlockSpec((tm, N), lambda i: (i, 0)))
    out = pl.pallas_call(
        functools.partial(_linear_resident_kernel, activation=activation,
                          has_res=has_res),
        out_shape=jax.ShapeDtypeStruct((Mp, N), out_dtype),
        grid=(Mp // tm,),
        in_specs=in_specs,
        out_specs=pl.BlockSpec((tm, N), lambda i: (i, 0)),
        compiler_params=_cparams(("parallel",)),
    )(*inputs)
    return out[:M] if Mp != M else out


def _linear_ktiled_kernel(x_ref, w_ref, b_ref, o_ref, *, activation, nk):
    # K-tiled matmul; accumulate directly into the resident f32 output block.
    k = pl.program_id(1)

    @pl.when(k == 0)
    def _():
        o_ref[...] = jnp.zeros_like(o_ref)

    o_ref[...] += jnp.dot(x_ref[...].astype(jnp.bfloat16),
                          w_ref[...].astype(jnp.bfloat16),
                          preferred_element_type=jnp.float32)

    @pl.when(k == nk - 1)
    def _():
        y = o_ref[...] + b_ref[...]
        o_ref[...] = _apply_activation(y, activation).astype(o_ref.dtype)


def pallas_linear_ktiled(x, w, b, activation=None):
    """Linear for very large K (classifier cls1).  x: (M, K), w: (K, N)."""
    M, K = x.shape
    N = w.shape[1]
    tm = _choose_tm(M)
    Mp = _round_up(M, tm)
    xp = x if Mp == M else jnp.pad(x, ((0, Mp - M), (0, 0)))
    if K <= 512:
        tk = K
    else:
        tk = next((t for t in (512, 256, 128) if K % t == 0), None)
        assert tk is not None, "cls1_w must be pre-padded to a multiple of 128 rows"
    nk = K // tk
    out = pl.pallas_call(
        functools.partial(_linear_ktiled_kernel, activation=activation, nk=nk),
        out_shape=jax.ShapeDtypeStruct((Mp, N), jnp.float32),
        grid=(Mp // tm, nk),
        in_specs=[
            pl.BlockSpec((tm, tk), lambda i, k: (i, k)),
            pl.BlockSpec((tk, N), lambda i, k: (k, 0)),
            pl.BlockSpec((1, N), lambda i, k: (0, 0)),
        ],
        out_specs=pl.BlockSpec((tm, N), lambda i, k: (i, 0)),
        compiler_params=_cparams(("parallel", "arbitrary")),
    )(xp, w, b.reshape(1, N))
    return out[:M] if Mp != M else out


def _layernorm_kernel(x_ref, g_ref, b_ref, o_ref):
    x = x_ref[...]
    mean = jnp.mean(x, axis=-1, keepdims=True)
    var = jnp.mean((x - mean) ** 2, axis=-1, keepdims=True)
    o_ref[...] = ((x - mean) * jax.lax.rsqrt(var + 1e-5) * g_ref[...]
                  + b_ref[...]).astype(o_ref.dtype)


def pallas_layernorm(x, g, b):
    M, D = x.shape
    tm = _choose_tm(M, cap=1024)
    Mp = _round_up(M, tm)
    xp = x if Mp == M else jnp.pad(x, ((0, Mp - M), (0, 0)))
    out = pl.pallas_call(
        _layernorm_kernel,
        out_shape=jax.ShapeDtypeStruct((Mp, D), jnp.float32),
        grid=(Mp // tm,),
        in_specs=[
            pl.BlockSpec((tm, D), lambda i: (i, 0)),
            pl.BlockSpec((1, D), lambda i: (0, 0)),
            pl.BlockSpec((1, D), lambda i: (0, 0)),
        ],
        out_specs=pl.BlockSpec((tm, D), lambda i: (i, 0)),
        compiler_params=pltpu.CompilerParams(dimension_semantics=("parallel",)),
    )(xp, g.reshape(1, D), b.reshape(1, D))
    return out[:M] if Mp != M else out


def _attn_kernel(qkv_ref, o_ref, *, n_head):
    # qkv block: (TB, N, 3D) bf16, packed [q | k | v], each head-major inside.
    tb, n, d3 = qkv_ref.shape
    d = d3 // 3
    dh = d // n_head
    scale = 1.0 / math.sqrt(dh)
    row = jax.lax.broadcasted_iota(jnp.int32, (n, n), 0)
    col = jax.lax.broadcasted_iota(jnp.int32, (n, n), 1)
    causal = (col <= row)[None, :, :]
    for h in range(n_head):
        q = qkv_ref[:, :, h * dh:(h + 1) * dh]                      # (tb, n, dh)
        k = qkv_ref[:, :, d + h * dh:d + (h + 1) * dh]
        v = qkv_ref[:, :, 2 * d + h * dh:2 * d + (h + 1) * dh]
        s = jax.lax.dot_general(q, k, (((2,), (2,)), ((0,), (0,))),
                                preferred_element_type=jnp.float32)  # (tb, n, n)
        s = jnp.where(causal, s * scale, -1e30)
        s = s - jnp.max(s, axis=-1, keepdims=True)
        p = jnp.exp(s)
        p = p * pl.reciprocal(jnp.sum(p, axis=-1, keepdims=True), approx=False)
        out_h = jax.lax.dot_general(p.astype(jnp.bfloat16), v,
                                    (((2,), (1,)), ((0,), (0,))),
                                    preferred_element_type=jnp.float32)
        o_ref[:, :, h * dh:(h + 1) * dh] = out_h.astype(o_ref.dtype)


def pallas_causal_attention(qkv, n_head):
    """Fused causal MHA. qkv: (BC, N, 3D) bf16; returns (BC, N, D) bf16."""
    BC, N, D3 = qkv.shape
    D = D3 // 3
    budget = 4 * 1024 * 1024
    tb = 1
    for cand in (8, 4, 2):
        if BC % cand == 0 and cand * N * D3 * qkv.dtype.itemsize <= budget:
            tb = cand
            break
    return pl.pallas_call(
        functools.partial(_attn_kernel, n_head=n_head),
        out_shape=jax.ShapeDtypeStruct((BC, N, D), qkv.dtype),
        grid=(BC // tb,),
        in_specs=[pl.BlockSpec((tb, N, D3), lambda b: (b, 0, 0))],
        out_specs=pl.BlockSpec((tb, N, D), lambda b: (b, 0, 0)),
        compiler_params=_cparams(("parallel",)),
    )(qkv)


# ----------------------------- parameters -----------------------------

def init_params(key, *, C, patch_num, patch_size, d_model, n_head, n_layers,
                num_labels, d_cls=512):
    ks = iter(jax.random.split(key, 8 + 8 * n_layers))
    sc = 0.02
    f32 = jnp.float32
    p = {
        "in_w": sc * jax.random.normal(next(ks), (patch_size, d_model), f32),
        "in_b": jnp.zeros((d_model,), f32),
        "wpe": sc * jax.random.normal(next(ks), (patch_num, d_model), f32),
        "ln_f_g": jnp.ones((d_model,), f32),
        "ln_f_b": jnp.zeros((d_model,), f32),
    }
    layers = []
    for _ in range(n_layers):
        layers.append({
            "ln1_g": jnp.ones((d_model,), f32),
            "ln1_b": jnp.zeros((d_model,), f32),
            "attn_w": sc * jax.random.normal(next(ks), (d_model, 3 * d_model), f32),
            "attn_b": jnp.zeros((3 * d_model,), f32),
            "attn_proj_w": sc * jax.random.normal(next(ks), (d_model, d_model), f32),
            "attn_proj_b": jnp.zeros((d_model,), f32),
            "ln2_g": jnp.ones((d_model,), f32),
            "ln2_b": jnp.zeros((d_model,), f32),
            "fc_w": sc * jax.random.normal(next(ks), (d_model, 4 * d_model), f32),
            "fc_b": jnp.zeros((4 * d_model,), f32),
            "mlp_proj_w": sc * jax.random.normal(next(ks), (4 * d_model, d_model), f32),
            "mlp_proj_b": jnp.zeros((d_model,), f32),
        })
    p["layers"] = layers
    flat_dim = C * patch_num * d_model
    p["cls1_w"] = sc * jax.random.normal(next(ks), (flat_dim, d_cls), f32)
    p["cls1_b"] = jnp.zeros((d_cls,), f32)
    p["cls2_w"] = sc * jax.random.normal(next(ks), (d_cls, num_labels), f32)
    p["cls2_b"] = jnp.zeros((num_labels,), f32)
    return p


_BF16_WEIGHT_KEYS = {"in_w", "attn_w", "attn_proj_w", "fc_w", "mlp_proj_w",
                     "cls1_w", "cls2_w"}


def prepare_params(p):
    """Pre-cast matmul weights to bf16 once (halves weight DMA; MXU is bf16-native).
    Biases, LayerNorm params and wpe stay f32.  Also pre-pads cls1_w's K dim once
    (if ever needed) so the K-tiled kernel never pads per forward call."""
    def cast(d):
        return {k: (v.astype(jnp.bfloat16) if k in _BF16_WEIGHT_KEYS else v)
                for k, v in d.items()}
    out = cast({k: v for k, v in p.items() if k != "layers"})
    out["layers"] = [cast(lp) for lp in p["layers"]]
    K = out["cls1_w"].shape[0]
    if K > 512 and K % 128 != 0:
        out["cls1_w"] = jnp.pad(out["cls1_w"], ((0, _round_up(K, 128) - K), (0, 0)))
    return out


# ----------------------------- forward -----------------------------

def gpt4mts_forward(reg_ts, params, labels=None, *, patch_size, stride, n_head):
    B, L, C = reg_ts.shape

    # 1) instance normalization over time per (b, c) — lane-dense (B*C, L) layout.
    xt = jnp.transpose(reg_ts.astype(jnp.float32), (0, 2, 1)).reshape(B * C, L)
    xn = instance_norm_rows(xt)                                       # (B*C, L)

    # 2) get_patch: ReplicationPad1d((0, stride)) + unfold.
    xpad = jnp.concatenate([xn, jnp.repeat(xn[:, -1:], stride, axis=-1)], axis=-1)
    N = (xpad.shape[-1] - patch_size) // stride + 1                   # == patch_num
    idx = jnp.arange(N)[:, None] * stride + jnp.arange(patch_size)[None, :]
    patches = xpad[:, idx]                                            # (B*C, N, P)
    BC = B * C
    M = BC * N
    D = params["in_w"].shape[1]

    # 3) in_layer Linear(P -> D) fused with the GPT-2 wpe add.
    x2d = pallas_in_layer(patches, params["in_w"], params["in_b"],
                          params["wpe"][:N]).reshape(M, D)            # f32 residual stream

    # 4) GPT-2 blocks (inputs_embeds path; prompt_len = 0, no text prefix).
    for lp in params["layers"]:
        # x = x + attn_proj(MHA(LN1(x)))
        qkv = pallas_ln_linear(x2d, lp["ln1_g"], lp["ln1_b"], lp["attn_w"],
                               lp["attn_b"], out_dtype=jnp.bfloat16)
        attn = pallas_causal_attention(qkv.reshape(BC, N, 3 * D), n_head)
        x2d = pallas_linear_resident(attn.reshape(M, D), lp["attn_proj_w"],
                                     lp["attn_proj_b"], residual=x2d)
        # x = x + mlp_proj(gelu(fc(LN2(x))))
        ffn = pallas_ln_linear(x2d, lp["ln2_g"], lp["ln2_b"], lp["fc_w"], lp["fc_b"],
                               activation="gelu_new", out_dtype=jnp.bfloat16)
        x2d = pallas_linear_resident(ffn, lp["mlp_proj_w"], lp["mlp_proj_b"],
                                     residual=x2d)

    x2d = pallas_layernorm(x2d, params["ln_f_g"], params["ln_f_b"])

    # 5) linear classifier head on flattened (B, C*N*D).
    flat = x2d.reshape(B, C * N * D)
    Kc = params["cls1_w"].shape[0]
    if Kc != flat.shape[1]:
        flat = jnp.pad(flat, ((0, 0), (0, Kc - flat.shape[1])))
    z = pallas_linear_ktiled(flat, params["cls1_w"], params["cls1_b"],
                             activation="relu")
    # Dropout(0.1) -> identity (eval)
    logits = pallas_linear_resident(z, params["cls2_w"], params["cls2_b"])

    loss = None
    if labels is not None:
        y = labels.astype(jnp.float32)
        zl = logits
        # BCEWithLogitsLoss, mean reduction
        loss = jnp.mean(jnp.maximum(zl, 0.0) - zl * y + jnp.log1p(jnp.exp(-jnp.abs(zl))))
    return logits, loss


# ----------------------------- main -----------------------------

if __name__ == "__main__":
    B, L, C = 2, 16, 3
    patch_size, stride = 8, 4
    d_model, n_head, n_layers = 32, 4, 2
    num_labels = 5
    patch_num = (L - patch_size) // stride + 1 + 1                    # +1 for pad patch

    key = jax.random.PRNGKey(0)
    k_x, k_p, k_y = jax.random.split(key, 3)
    reg_ts = jax.random.normal(k_x, (B, L, C), jnp.float32)
    labels = (jax.random.uniform(k_y, (B, num_labels)) > 0.5).astype(jnp.float32)

    params = init_params(k_p, C=C, patch_num=patch_num, patch_size=patch_size,
                         d_model=d_model, n_head=n_head, n_layers=n_layers,
                         num_labels=num_labels)
    params = prepare_params(params)

    fwd = jax.jit(functools.partial(gpt4mts_forward, patch_size=patch_size,
                                    stride=stride, n_head=n_head))
    logits, loss = fwd(reg_ts, params, labels)
    jax.block_until_ready((logits, loss))
    assert logits.shape == (B, num_labels)
    assert loss.shape == ()
    assert bool(jnp.isfinite(loss)) and bool(jnp.all(jnp.isfinite(logits)))
    print("KERNEL_OK")
</pallas_src>

<mosaic_0001>
module attributes {stable_mosaic.version = 11 : i64} {
  func.func @_instance_norm_kernel(%arg0: i32, %arg1: memref<8x16xf32, #tpu.memory_space<vmem>>, %arg2: memref<8x16xf32, #tpu.memory_space<vmem>>) attributes {dimension_semantics = [#tpu.dimension_semantics<parallel>], iteration_bounds = array<i64: 1>, scalar_prefetch = 0 : i64, scratch_operands = 0 : i64, tpu.core_type = #tpu.core_type<tc>, window_params = [{transform_indices = @transform_0, window_bounds = array<i64: 8, 16>}, {transform_indices = @transform_1, window_bounds = array<i64: 8, 16>}]} {
    %c0 = arith.constant 0 : index
    %c0_0 = arith.constant 0 : index
    %0 = vector.load %arg1[%c0, %c0_0] : memref<8x16xf32, #tpu.memory_space<vmem>>, vector<8x16xf32>
    %cst = arith.constant dense<0.000000e+00> : vector<8xf32>
    %1 = vector.multi_reduction <add>, %0, %cst [1] : vector<8x16xf32> to vector<8xf32>
    %2 = vector.shape_cast %1 : vector<8xf32> to vector<8x1xf32>
    %cst_1 = arith.constant 1.600000e+01 : f32
    %3 = vector.broadcast %cst_1 : f32 to vector<8x1xf32>
    %4 = arith.divf %2, %3 : vector<8x1xf32>
    %5 = vector.broadcast %4 : vector<8x1xf32> to vector<8x16xf32>
    %6 = arith.subf %0, %5 : vector<8x16xf32>
    %7 = arith.mulf %6, %6 : vector<8x16xf32>
    %cst_2 = arith.constant dense<0.000000e+00> : vector<8xf32>
    %8 = vector.multi_reduction <add>, %7, %cst_2 [1] : vector<8x16xf32> to vector<8xf32>
    %9 = vector.shape_cast %8 : vector<8xf32> to vector<8x1xf32>
    %cst_3 = arith.constant 1.600000e+01 : f32
    %10 = vector.broadcast %cst_3 : f32 to vector<8x1xf32>
    %11 = arith.divf %9, %10 : vector<8x1xf32>
    %12 = vector.broadcast %4 : vector<8x1xf32> to vector<8x16xf32>
    %13 = arith.subf %0, %12 : vector<8x16xf32>
    %cst_4 = arith.constant 9.99999974E-6 : f32
    %14 = vector.broadcast %cst_4 : f32 to vector<8x1xf32>
    %15 = arith.addf %11, %14 : vector<8x1xf32>
    %16 = math.rsqrt %15 : vector<8x1xf32>
    %17 = vector.broadcast %16 : vector<8x1xf32> to vector<8x16xf32>
    %18 = arith.mulf %13, %17 : vector<8x16xf32>
    %c0_5 = arith.constant 0 : index
    %c0_6 = arith.constant 0 : index
    %19 = vector.load %arg2[%c0_5, %c0_6] : memref<8x16xf32, #tpu.memory_space<vmem>>, vector<8x16xf32>
    tpu.vector_store %arg2[%c0_5, %c0_6], %18 {strides = array<i32>} : memref<8x16xf32, #tpu.memory_space<vmem>>, vector<8x16xf32>,
    return
  }
  func.func @transform_0(%arg0: i32) -> (i32, i32) {
    %c0_i32 = arith.constant 0 : i32
    %c0_i32_0 = arith.constant 0 : i32
    return %arg0, %c0_i32 : i32, i32
  }
  func.func @transform_1(%arg0: i32) -> (i32, i32) {
    %c0_i32 = arith.constant 0 : i32
    %c0_i32_0 = arith.constant 0 : i32
    return %arg0, %c0_i32 : i32, i32
  }
}

module attributes {stable_mosaic.version = 11 : i64} {
  func.func @_in_layer_kernel(%arg0: i32, %arg1: memref<6x4x8xf32, #tpu.memory_space<vmem>>, %arg2: memref<8x32xbf16, #tpu.memory_space<vmem>>, %arg3: memref<1x32xf32, #tpu.memory_space<vmem>>, %arg4: memref<4x32xf32, #tpu.memory_space<vmem>>, %arg5: memref<6x4x32xf32, #tpu.memory_space<vmem>>) attributes {dimension_semantics = [#tpu.dimension_semantics<parallel>], iteration_bounds = array<i64: 1>, scalar_prefetch = 0 : i64, scratch_operands = 0 : i64, tpu.core_type = #tpu.core_type<tc>, window_params = [{transform_indices = @transform_0, window_bounds = array<i64: 6, 4, 8>}, {pipeline_mode = #tpu.pipeline_mode<synchronous>, transform_indices = @transform_1, window_bounds = array<i64: 8, 32>}, {pipeline_mode = #tpu.pipeline_mode<synchronous>, transform_indices = @transform_2, window_bounds = array<i64: 1, 32>}, {pipeline_mode = #tpu.pipeline_mode<synchronous>, transform_indices = @transform_3, window_bounds = array<i64: 4, 32>}, {transform_indices = @transform_4, window_bounds = array<i64: 6, 4, 32>}]} {
    %c0 = arith.constant 0 : index
    %c0_0 = arith.constant 0 : index
    %c0_1 = arith.constant 0 : index
    %0 = vector.load %arg1[%c0, %c0_0, %c0_1] : memref<6x4x8xf32, #tpu.memory_space<vmem>>, vector<6x4x8xf32>
    %1 = vector.shape_cast %0 : vector<6x4x8xf32> to vector<24x8xf32>
    %2 = arith.truncf %1 : vector<24x8xf32> to vector<24x8xbf16>
    %c0_2 = arith.constant 0 : index
    %c0_3 = arith.constant 0 : index
    %3 = vector.load %arg2[%c0_2, %c0_3] : memref<8x32xbf16, #tpu.memory_space<vmem>>, vector<8x32xbf16>
    %cst = arith.constant dense<0.000000e+00> : vector<24x32xf32>
    %4 = tpu.matmul %2, %3, %cst {dimension_numbers = #tpu.dot_dimension_numbers<[1], [0], [0], [1], [0, 0, 1, 1], [], []>} : vector<24x8xbf16>, vector<8x32xbf16>, vector<24x32xf32> -> vector<24x32xf32>
    %5 = vector.shape_cast %4 : vector<24x32xf32> to vector<6x4x32xf32>
    %c0_4 = arith.constant 0 : index
    %c0_5 = arith.constant 0 : index
    %6 = vector.load %arg3[%c0_4, %c0_5] : memref<1x32xf32, #tpu.memory_space<vmem>>, vector<1x32xf32>
    %7 = vector.shape_cast %6 : vector<1x32xf32> to vector<1x1x32xf32>
    %8 = vector.broadcast %7 : vector<1x1x32xf32> to vector<6x4x32xf32>
    %9 = arith.addf %5, %8 : vector<6x4x32xf32>
    %c0_6 = arith.constant 0 : index
    %c0_7 = arith.constant 0 : index
    %10 = vector.load %arg4[%c0_6, %c0_7] : memref<4x32xf32, #tpu.memory_space<vmem>>, vector<4x32xf32>
    %11 = vector.shape_cast %10 : vector<4x32xf32> to vector<1x4x32xf32>
    %12 = vector.broadcast %11 : vector<1x4x32xf32> to vector<6x4x32xf32>
    %13 = arith.addf %9, %12 : vector<6x4x32xf32>
    %c0_8 = arith.constant 0 : index
    %c0_9 = arith.constant 0 : index
    %c0_10 = arith.constant 0 : index
    %14 = vector.load %arg5[%c0_8, %c0_9, %c0_10] : memref<6x4x32xf32, #tpu.memory_space<vmem>>, vector<6x4x32xf32>
    tpu.vector_store %arg5[%c0_8, %c0_9, %c0_10], %13 {strides = array<i32>} : memref<6x4x32xf32, #tpu.memory_space<vmem>>, vector<6x4x32xf32>,
    return
  }
  func.func @transform_0(%arg0: i32) -> (i32, i32, i32) {
    %c0_i32 = arith.constant 0 : i32
    %c0_i32_0 = arith.constant 0 : i32
    %c0_i32_1 = arith.constant 0 : i32
    return %arg0, %c0_i32, %c0_i32_0 : i32, i32, i32
  }
  func.func @transform_1(%arg0: i32) -> (i32, i32) {
    %c0_i32 = arith.constant 0 : i32
    %c0_i32_0 = arith.constant 0 : i32
    %c0_i32_1 = arith.constant 0 : i32
    return %c0_i32, %c0_i32_0 : i32, i32
  }
  func.func @transform_2(%arg0: i32) -> (i32, i32) {
    %c0_i32 = arith.constant 0 : i32
    %c0_i32_0 = arith.constant 0 : i32
    %c0_i32_1 = arith.constant 0 : i32
    return %c0_i32, %c0_i32_0 : i32, i32
  }
  func.func @transform_3(%arg0: i32) -> (i32, i32) {
    %c0_i32 = arith.constant 0 : i32
    %c0_i32_0 = arith.constant 0 : i32
    %c0_i32_1 = arith.constant 0 : i32
    return %c0_i32, %c0_i32_0 : i32, i32
  }
  func.func @transform_4(%arg0: i32) -> (i32, i32, i32) {
    %c0_i32 = arith.constant 0 : i32
    %c0_i32_0 = arith.constant 0 : i32
    %c0_i32_1 = arith.constant 0 : i32
    return %arg0, %c0_i32, %c0_i32_0 : i32, i32, i32
  }
}

module attributes {stable_mosaic.version = 11 : i64} {
  func.func @_ln_linear_kernel(%arg0: i32, %arg1: memref<24x32xf32, #tpu.memory_space<vmem>>, %arg2: memref<1x32xf32, #tpu.memory_space<vmem>>, %arg3: memref<1x32xf32, #tpu.memory_space<vmem>>, %arg4: memref<32x96xbf16, #tpu.memory_space<vmem>>, %arg5: memref<1x96xf32, #tpu.memory_space<vmem>>, %arg6: memref<24x96xbf16, #tpu.memory_space<vmem>>) attributes {dimension_semantics = [#tpu.dimension_semantics<parallel>], iteration_bounds = array<i64: 1>, scalar_prefetch = 0 : i64, scratch_operands = 0 : i64, tpu.core_type = #tpu.core_type<tc>, window_params = [{transform_indices = @transform_0, window_bounds = array<i64: 24, 32>}, {pipeline_mode = #tpu.pipeline_mode<synchronous>, transform_indices = @transform_1, window_bounds = array<i64: 1, 32>}, {pipeline_mode = #tpu.pipeline_mode<synchronous>, transform_indices = @transform_2, window_bounds = array<i64: 1, 32>}, {pipeline_mode = #tpu.pipeline_mode<synchronous>, transform_indices = @transform_3, window_bounds = array<i64: 32, 96>}, {pipeline_mode = #tpu.pipeline_mode<synchronous>, transform_indices = @transform_4, window_bounds = array<i64: 1, 96>}, {transform_indices = @transform_5, window_bounds = array<i64: 24, 96>}]} {
    %c0 = arith.constant 0 : index
    %c0_0 = arith.constant 0 : index
    %0 = vector.load %arg1[%c0, %c0_0] : memref<24x32xf32, #tpu.memory_space<vmem>>, vector<24x32xf32>
    %cst = arith.constant dense<0.000000e+00> : vector<24xf32>
    %1 = vector.multi_reduction <add>, %0, %cst [1] : vector<24x32xf32> to vector<24xf32>
    %2 = vector.shape_cast %1 : vector<24xf32> to vector<24x1xf32>
    %cst_1 = arith.constant 3.200000e+01 : f32
    %3 = vector.broadcast %cst_1 : f32 to vector<24x1xf32>
    %4 = arith.divf %2, %3 : vector<24x1xf32>
    %5 = vector.broadcast %4 : vector<24x1xf32> to vector<24x32xf32>
    %6 = arith.subf %0, %5 : vector<24x32xf32>
    %7 = arith.mulf %6, %6 : vector<24x32xf32>
    %cst_2 = arith.constant dense<0.000000e+00> : vector<24xf32>
    %8 = vector.multi_reduction <add>, %7, %cst_2 [1] : vector<24x32xf32> to vector<24xf32>
    %9 = vector.shape_cast %8 : vector<24xf32> to vector<24x1xf32>
    %cst_3 = arith.constant 3.200000e+01 : f32
    %10 = vector.broadcast %cst_3 : f32 to vector<24x1xf32>
    %11 = arith.divf %9, %10 : vector<24x1xf32>
    %12 = vector.broadcast %4 : vector<24x1xf32> to vector<24x32xf32>
    %13 = arith.subf %0, %12 : vector<24x32xf32>
    %cst_4 = arith.constant 9.99999974E-6 : f32
    %14 = vector.broadcast %cst_4 : f32 to vector<24x1xf32>
    %15 = arith.addf %11, %14 : vector<24x1xf32>
    %16 = math.rsqrt %15 : vector<24x1xf32>
    %17 = vector.broadcast %16 : vector<24x1xf32> to vector<24x32xf32>
    %18 = arith.mulf %13, %17 : vector<24x32xf32>
    %c0_5 = arith.constant 0 : index
    %c0_6 = arith.constant 0 : index
    %19 = vector.load %arg2[%c0_5, %c0_6] : memref<1x32xf32, #tpu.memory_space<vmem>>, vector<1x32xf32>
    %20 = vector.broadcast %19 : vector<1x32xf32> to vector<24x32xf32>
    %21 = arith.mulf %18, %20 : vector<24x32xf32>
    %c0_7 = arith.constant 0 : index
    %c0_8 = arith.constant 0 : index
    %22 = vector.load %arg3[%c0_7, %c0_8] : memref<1x32xf32, #tpu.memory_space<vmem>>, vector<1x32xf32>
    %23 = vector.broadcast %22 : vector<1x32xf32> to vector<24x32xf32>
    %24 = arith.addf %21, %23 : vector<24x32xf32>
    %25 = arith.truncf %24 : vector<24x32xf32> to vector<24x32xbf16>
    %c0_9 = arith.constant 0 : index
    %c0_10 = arith.constant 0 : index
    %26 = vector.load %arg4[%c0_9, %c0_10] : memref<32x96xbf16, #tpu.memory_space<vmem>>, vector<32x96xbf16>
    %cst_11 = arith.constant dense<0.000000e+00> : vector<24x96xf32>
    %27 = tpu.matmul %25, %26, %cst_11 {dimension_numbers = #tpu.dot_dimension_numbers<[1], [0], [0], [1], [0, 0, 1, 1], [], []>} : vector<24x32xbf16>, vector<32x96xbf16>, vector<24x96xf32> -> vector<24x96xf32>
    %c0_12 = arith.constant 0 : index
    %c0_13 = arith.constant 0 : index
    %28 = vector.load %arg5[%c0_12, %c0_13] : memref<1x96xf32, #tpu.memory_space<vmem>>, vector<1x96xf32>
    %29 = vector.broadcast %28 : vector<1x96xf32> to vector<24x96xf32>
    %30 = arith.addf %27, %29 : vector<24x96xf32>
    %31 = arith.truncf %30 : vector<24x96xf32> to vector<24x96xbf16>
    %c0_14 = arith.constant 0 : index
    %c0_15 = arith.constant 0 : index
    %32 = vector.load %arg6[%c0_14, %c0_15] : memref<24x96xbf16, #tpu.memory_space<vmem>>, vector<24x96xbf16>
    tpu.vector_store %arg6[%c0_14, %c0_15], %31 {strides = array<i32>} : memref<24x96xbf16, #tpu.memory_space<vmem>>, vector<24x96xbf16>,
    return
  }
  func.func @transform_0(%arg0: i32) -> (i32, i32) {
    %c0_i32 = arith.constant 0 : i32
    %c0_i32_0 = arith.constant 0 : i32
    return %arg0, %c0_i32 : i32, i32
  }
  func.func @transform_1(%arg0: i32) -> (i32, i32) {
    %c0_i32 = arith.constant 0 : i32
    %c0_i32_0 = arith.constant 0 : i32
    %c0_i32_1 = arith.constant 0 : i32
    return %c0_i32, %c0_i32_0 : i32, i32
  }
  func.func @transform_2(%arg0: i32) -> (i32, i32) {
    %c0_i32 = arith.constant 0 : i32
    %c0_i32_0 = arith.constant 0 : i32
    %c0_i32_1 = arith.constant 0 : i32
    return %c0_i32, %c0_i32_0 : i32, i32
  }
  func.func @transform_3(%arg0: i32) -> (i32, i32) {
    %c0_i32 = arith.constant 0 : i32
    %c0_i32_0 = arith.constant 0 : i32
    %c0_i32_1 = arith.constant 0 : i32
    return %c0_i32, %c0_i32_0 : i32, i32
  }
  func.func @transform_4(%arg0: i32) -> (i32, i32) {
    %c0_i32 = arith.constant 0 : i32
    %c0_i32_0 = arith.constant 0 : i32
    %c0_i32_1 = arith.constant 0 : i32
    return %c0_i32, %c0_i32_0 : i32, i32
  }
  func.func @transform_5(%arg0: i32) -> (i32, i32) {
    %c0_i32 = arith.constant 0 : i32
    %c0_i32_0 = arith.constant 0 : i32
    return %arg0, %c0_i32 : i32, i32
  }
}

module attributes {stable_mosaic.version = 11 : i64} {
  func.func @_attn_kernel(%arg0: i32, %arg1: memref<2x4x96xbf16, #tpu.memory_space<vmem>>, %arg2: memref<2x4x32xbf16, #tpu.memory_space<vmem>>) attributes {dimension_semantics = [#tpu.dimension_semantics<parallel>], iteration_bounds = array<i64: 3>, scalar_prefetch = 0 : i64, scratch_operands = 0 : i64, tpu.core_type = #tpu.core_type<tc>, window_params = [{transform_indices = @transform_0, window_bounds = array<i64: 2, 4, 96>}, {transform_indices = @transform_1, window_bounds = array<i64: 2, 4, 32>}]} {
    %0 = tpu.iota {dimensions = array<i32: 0>} : vector<4x4xi32>
    %1 = tpu.iota {dimensions = array<i32: 1>} : vector<4x4xi32>
    %2 = arith.cmpi sle, %1, %0 : vector<4x4xi32>
    %3 = vector.shape_cast %2 : vector<4x4xi1> to vector<1x4x4xi1>
    %c0 = arith.constant 0 : index
    %c0_0 = arith.constant 0 : index
    %c0_1 = arith.constant 0 : index
    %4 = vector.load %arg1[%c0, %c0_0, %c0_1] : memref<2x4x96xbf16, #tpu.memory_space<vmem>>, vector<2x4x8xbf16>
    %c0_2 = arith.constant 0 : index
    %c0_3 = arith.constant 0 : index
    %c32 = arith.constant 32 : index
    %5 = vector.load %arg1[%c0_2, %c0_3, %c32] : memref<2x4x96xbf16, #tpu.memory_space<vmem>>, vector<2x4x8xbf16>
    %c0_4 = arith.constant 0 : index
    %c0_5 = arith.constant 0 : index
    %c64 = arith.constant 64 : index
    %6 = vector.load %arg1[%c0_4, %c0_5, %c64] : memref<2x4x96xbf16, #tpu.memory_space<vmem>>, vector<2x4x8xbf16>
    %cst = arith.constant dense<0.000000e+00> : vector<2x4x4xf32>
    %7 = tpu.matmul %4, %5, %cst {dimension_numbers = #tpu.dot_dimension_numbers<[2], [2], [1], [1], [0, 0, 0, 1, 1, 1], [0], [0]>} : vector<2x4x8xbf16>, vector<2x4x8xbf16>, vector<2x4x4xf32> -> vector<2x4x4xf32>
    %cst_6 = arith.constant 0.353553385 : f32
    %8 = vector.broadcast %cst_6 : f32 to vector<2x4x4xf32>
    %9 = arith.mulf %7, %8 : vector<2x4x4xf32>
    %cst_7 = arith.constant -1.000000e+30 : f32
    %10 = vector.shape_cast %3 : vector<1x4x4xi1> to vector<1x4x4xi1>
    %11 = vector.broadcast %10 : vector<1x4x4xi1> to vector<2x4x4xi1>
    %12 = vector.broadcast %cst_7 : f32 to vector<2x4x4xf32>
    %13 = arith.select %11, %9, %12 : vector<2x4x4xi1>, vector<2x4x4xf32>
    %cst_8 = arith.constant dense<0xFF800000> : vector<2x4xf32>
    %14 = vector.multi_reduction <maximumf>, %13, %cst_8 [2] : vector<2x4x4xf32> to vector<2x4xf32>
    %15 = vector.shape_cast %14 : vector<2x4xf32> to vector<2x4x1xf32>
    %16 = vector.broadcast %15 : vector<2x4x1xf32> to vector<2x4x4xf32>
    %17 = arith.subf %13, %16 : vector<2x4x4xf32>
    %18 = math.exp %17 : vector<2x4x4xf32>
    %cst_9 = arith.constant dense<0.000000e+00> : vector<2x4xf32>
    %19 = vector.multi_reduction <add>, %18, %cst_9 [2] : vector<2x4x4xf32> to vector<2x4xf32>
    %20 = vector.shape_cast %19 : vector<2x4xf32> to vector<2x4x1xf32>
    %21 = tpu.reciprocal %20 : vector<2x4x1xf32> -> vector<2x4x1xf32>
    %22 = vector.broadcast %21 : vector<2x4x1xf32> to vector<2x4x4xf32>
    %23 = arith.mulf %18, %22 : vector<2x4x4xf32>
    %24 = arith.truncf %23 : vector<2x4x4xf32> to vector<2x4x4xbf16>
    %cst_10 = arith.constant dense<0.000000e+00> : vector<2x4x8xf32>
    %25 = tpu.matmul %24, %6, %cst_10 {dimension_numbers = #tpu.dot_dimension_numbers<[2], [1], [1], [2], [0, 0, 0, 1, 1, 2], [0], [0]>} : vector<2x4x4xbf16>, vector<2x4x8xbf16>, vector<2x4x8xf32> -> vector<2x4x8xf32>
    %26 = arith.truncf %25 : vector<2x4x8xf32> to vector<2x4x8xbf16>
    %c0_11 = arith.constant 0 : index
    %c0_12 = arith.constant 0 : index
    %c0_13 = arith.constant 0 : index
    %27 = vector.load %arg2[%c0_11, %c0_12, %c0_13] : memref<2x4x32xbf16, #tpu.memory_space<vmem>>, vector<2x4x8xbf16>
    tpu.vector_store %arg2[%c0_11, %c0_12, %c0_13], %26 {strides = array<i32>} : memref<2x4x32xbf16, #tpu.memory_space<vmem>>, vector<2x4x8xbf16>,
    %c0_14 = arith.constant 0 : index
    %c0_15 = arith.constant 0 : index
    %c8 = arith.constant 8 : index
    %28 = vector.load %arg1[%c0_14, %c0_15, %c8] : memref<2x4x96xbf16, #tpu.memory_space<vmem>>, vector<2x4x8xbf16>
    %c0_16 = arith.constant 0 : index
    %c0_17 = arith.constant 0 : index
    %c40 = arith.constant 40 : index
    %29 = vector.load %arg1[%c0_16, %c0_17, %c40] : memref<2x4x96xbf16, #tpu.memory_space<vmem>>, vector<2x4x8xbf16>
    %c0_18 = arith.constant 0 : index
    %c0_19 = arith.constant 0 : index
    %c72 = arith.constant 72 : index
    %30 = vector.load %arg1[%c0_18, %c0_19, %c72] : memref<2x4x96xbf16, #tpu.memory_space<vmem>>, vector<2x4x8xbf16>
    %cst_20 = arith.constant dense<0.000000e+00> : vector<2x4x4xf32>
    %31 = tpu.matmul %28, %29, %cst_20 {dimension_numbers = #tpu.dot_dimension_numbers<[2], [2], [1], [1], [0, 0, 0, 1, 1, 1], [0], [0]>} : vector<2x4x8xbf16>, vector<2x4x8xbf16>, vector<2x4x4xf32> -> vector<2x4x4xf32>
    %cst_21 = arith.constant 0.353553385 : f32
    %32 = vector.broadcast %cst_21 : f32 to vector<2x4x4xf32>
    %33 = arith.mulf %31, %32 : vector<2x4x4xf32>
    %cst_22 = arith.constant -1.000000e+30 : f32
    %34 = vector.shape_cast %3 : vector<1x4x4xi1> to vector<1x4x4xi1>
    %35 = vector.broadcast %34 : vector<1x4x4xi1> to vector<2x4x4xi1>
    %36 = vector.broadcast %cst_22 : f32 to vector<2x4x4xf32>
    %37 = arith.select %35, %33, %36 : vector<2x4x4xi1>, vector<2x4x4xf32>
    %cst_23 = arith.constant dense<0xFF800000> : vector<2x4xf32>
    %38 = vector.multi_reduction <maximumf>, %37, %cst_23 [2] : vector<2x4x4xf32> to vector<2x4xf32>
    %39 = vector.shape_cast %38 : vector<2x4xf32> to vector<2x4x1xf32>
    %40 = vector.broadcast %39 : vector<2x4x1xf32> to vector<2x4x4xf32>
    %41 = arith.subf %37, %40 : vector<2x4x4xf32>
    %42 = math.exp %41 : vector<2x4x4xf32>
    %cst_24 = arith.constant dense<0.000000e+00> : vector<2x4xf32>
    %43 = vector.multi_reduction <add>, %42, %cst_24 [2] : vector<2x4x4xf32> to vector<2x4xf32>
    %44 = vector.shape_cast %43 : vector<2x4xf32> to vector<2x4x1xf32>
    %45 = tpu.reciprocal %44 : vector<2x4x1xf32> -> vector<2x4x1xf32>
    %46 = vector.broadcast %45 : vector<2x4x1xf32> to vector<2x4x4xf32>
    %47 = arith.mulf %42, %46 : vector<2x4x4xf32>
    %48 = arith.truncf %47 : vector<2x4x4xf32> to vector<2x4x4xbf16>
    %cst_25 = arith.constant dense<0.000000e+00> : vector<2x4x8xf32>
    %49 = tpu.matmul %48, %30, %cst_25 {dimension_numbers = #tpu.dot_dimension_numbers<[2], [1], [1], [2], [0, 0, 0, 1, 1, 2], [0], [0]>} : vector<2x4x4xbf16>, vector<2x4x8xbf16>, vector<2x4x8xf32> -> vector<2x4x8xf32>
    %50 = arith.truncf %49 : vector<2x4x8xf32> to vector<2x4x8xbf16>
    %c0_26 = arith.constant 0 : index
    %c0_27 = arith.constant 0 : index
    %c8_28 = arith.constant 8 : index
    %51 = vector.load %arg2[%c0_26, %c0_27, %c8_28] : memref<2x4x32xbf16, #tpu.memory_space<vmem>>, vector<2x4x8xbf16>
    tpu.vector_store %arg2[%c0_26, %c0_27, %c8_28], %50 {strides = array<i32>} : memref<2x4x32xbf16, #tpu.memory_space<vmem>>, vector<2x4x8xbf16>,
    %c0_29 = arith.constant 0 : index
    %c0_30 = arith.constant 0 : index
    %c16 = arith.constant 16 : index
    %52 = vector.load %arg1[%c0_29, %c0_30, %c16] : memref<2x4x96xbf16, #tpu.memory_space<vmem>>, vector<2x4x8xbf16>
    %c0_31 = arith.constant 0 : index
    %c0_32 = arith.constant 0 : index
    %c48 = arith.constant 48 : index
    %53 = vector.load %arg1[%c0_31, %c0_32, %c48] : memref<2x4x96xbf16, #tpu.memory_space<vmem>>, vector<2x4x8xbf16>
    %c0_33 = arith.constant 0 : index
    %c0_34 = arith.constant 0 : index
    %c80 = arith.constant 80 : index
    %54 = vector.load %arg1[%c0_33, %c0_34, %c80] : memref<2x4x96xbf16, #tpu.memory_space<vmem>>, vector<2x4x8xbf16>
    %cst_35 = arith.constant dense<0.000000e+00> : vector<2x4x4xf32>
    %55 = tpu.matmul %52, %53, %cst_35 {dimension_numbers = #tpu.dot_dimension_numbers<[2], [2], [1], [1], [0, 0, 0, 1, 1, 1], [0], [0]>} : vector<2x4x8xbf16>, vector<2x4x8xbf16>, vector<2x4x4xf32> -> vector<2x4x4xf32>
    %cst_36 = arith.constant 0.353553385 : f32
    %56 = vector.broadcast %cst_36 : f32 to vector<2x4x4xf32>
    %57 = arith.mulf %55, %56 : vector<2x4x4xf32>
    %cst_37 = arith.constant -1.000000e+30 : f32
    %58 = vector.shape_cast %3 : vector<1x4x4xi1> to vector<1x4x4xi1>
    %59 = vector.broadcast %58 : vector<1x4x4xi1> to vector<2x4x4xi1>
    %60 = vector.broadcast %cst_37 : f32 to vector<2x4x4xf32>
    %61 = arith.select %59, %57, %60 : vector<2x4x4xi1>, vector<2x4x4xf32>
    %cst_38 = arith.constant dense<0xFF800000> : vector<2x4xf32>
    %62 = vector.multi_reduction <maximumf>, %61, %cst_38 [2] : vector<2x4x4xf32> to vector<2x4xf32>
    %63 = vector.shape_cast %62 : vector<2x4xf32> to vector<2x4x1xf32>
    %64 = vector.broadcast %63 : vector<2x4x1xf32> to vector<2x4x4xf32>
    %65 = arith.subf %61, %64 : vector<2x4x4xf32>
    %66 = math.exp %65 : vector<2x4x4xf32>
    %cst_39 = arith.constant dense<0.000000e+00> : vector<2x4xf32>
    %67 = vector.multi_reduction <add>, %66, %cst_39 [2] : vector<2x4x4xf32> to vector<2x4xf32>
    %68 = vector.shape_cast %67 : vector<2x4xf32> to vector<2x4x1xf32>
    %69 = tpu.reciprocal %68 : vector<2x4x1xf32> -> vector<2x4x1xf32>
    %70 = vector.broadcast %69 : vector<2x4x1xf32> to vector<2x4x4xf32>
    %71 = arith.mulf %66, %70 : vector<2x4x4xf32>
    %72 = arith.truncf %71 : vector<2x4x4xf32> to vector<2x4x4xbf16>
    %cst_40 = arith.constant dense<0.000000e+00> : vector<2x4x8xf32>
    %73 = tpu.matmul %72, %54, %cst_40 {dimension_numbers = #tpu.dot_dimension_numbers<[2], [1], [1], [2], [0, 0, 0, 1, 1, 2], [0], [0]>} : vector<2x4x4xbf16>, vector<2x4x8xbf16>, vector<2x4x8xf32> -> vector<2x4x8xf32>
    %74 = arith.truncf %73 : vector<2x4x8xf32> to vector<2x4x8xbf16>
    %c0_41 = arith.constant 0 : index
    %c0_42 = arith.constant 0 : index
    %c16_43 = arith.constant 16 : index
    %75 = vector.load %arg2[%c0_41, %c0_42, %c16_43] : memref<2x4x32xbf16, #tpu.memory_space<vmem>>, vector<2x4x8xbf16>
    tpu.vector_store %arg2[%c0_41, %c0_42, %c16_43], %74 {strides = array<i32>} : memref<2x4x32xbf16, #tpu.memory_space<vmem>>, vector<2x4x8xbf16>,
    %c0_44 = arith.constant 0 : index
    %c0_45 = arith.constant 0 : index
    %c24 = arith.constant 24 : index
    %76 = vector.load %arg1[%c0_44, %c0_45, %c24] : memref<2x4x96xbf16, #tpu.memory_space<vmem>>, vector<2x4x8xbf16>
    %c0_46 = arith.constant 0 : index
    %c0_47 = arith.constant 0 : index
    %c56 = arith.constant 56 : index
    %77 = vector.load %arg1[%c0_46, %c0_47, %c56] : memref<2x4x96xbf16, #tpu.memory_space<vmem>>, vector<2x4x8xbf16>
    %c0_48 = arith.constant 0 : index
    %c0_49 = arith.constant 0 : index
    %c88 = arith.constant 88 : index
    %78 = vector.load %arg1[%c0_48, %c0_49, %c88] : memref<2x4x96xbf16, #tpu.memory_space<vmem>>, vector<2x4x8xbf16>
    %cst_50 = arith.constant dense<0.000000e+00> : vector<2x4x4xf32>
    %79 = tpu.matmul %76, %77, %cst_50 {dimension_numbers = #tpu.dot_dimension_numbers<[2], [2], [1], [1], [0, 0, 0, 1, 1, 1], [0], [0]>} : vector<2x4x8xbf16>, vector<2x4x8xbf16>, vector<2x4x4xf32> -> vector<2x4x4xf32>
    %cst_51 = arith.constant 0.353553385 : f32
    %80 = vector.broadcast %cst_51 : f32 to vector<2x4x4xf32>
    %81 = arith.mulf %79, %80 : vector<2x4x4xf32>
    %cst_52 = arith.constant -1.000000e+30 : f32
    %82 = vector.shape_cast %3 : vector<1x4x4xi1> to vector<1x4x4xi1>
    %83 = vector.broadcast %82 : vector<1x4x4xi1> to vector<2x4x4xi1>
    %84 = vector.broadcast %cst_52 : f32 to vector<2x4x4xf32>
    %85 = arith.select %83, %81, %84 : vector<2x4x4xi1>, vector<2x4x4xf32>
    %cst_53 = arith.constant dense<0xFF800000> : vector<2x4xf32>
    %86 = vector.multi_reduction <maximumf>, %85, %cst_53 [2] : vector<2x4x4xf32> to vector<2x4xf32>
    %87 = vector.shape_cast %86 : vector<2x4xf32> to vector<2x4x1xf32>
    %88 = vector.broadcast %87 : vector<2x4x1xf32> to vector<2x4x4xf32>
    %89 = arith.subf %85, %88 : vector<2x4x4xf32>
    %90 = math.exp %89 : vector<2x4x4xf32>
    %cst_54 = arith.constant dense<0.000000e+00> : vector<2x4xf32>
    %91 = vector.multi_reduction <add>, %90, %cst_54 [2] : vector<2x4x4xf32> to vector<2x4xf32>
    %92 = vector.shape_cast %91 : vector<2x4xf32> to vector<2x4x1xf32>
    %93 = tpu.reciprocal %92 : vector<2x4x1xf32> -> vector<2x4x1xf32>
    %94 = vector.broadcast %93 : vector<2x4x1xf32> to vector<2x4x4xf32>
    %95 = arith.mulf %90, %94 : vector<2x4x4xf32>
    %96 = arith.truncf %95 : vector<2x4x4xf32> to vector<2x4x4xbf16>
    %cst_55 = arith.constant dense<0.000000e+00> : vector<2x4x8xf32>
    %97 = tpu.matmul %96, %78, %cst_55 {dimension_numbers = #tpu.dot_dimension_numbers<[2], [1], [1], [2], [0, 0, 0, 1, 1, 2], [0], [0]>} : vector<2x4x4xbf16>, vector<2x4x8xbf16>, vector<2x4x8xf32> -> vector<2x4x8xf32>
    %98 = arith.truncf %97 : vector<2x4x8xf32> to vector<2x4x8xbf16>
    %c0_56 = arith.constant 0 : index
    %c0_57 = arith.constant 0 : index
    %c24_58 = arith.constant 24 : index
    %99 = vector.load %arg2[%c0_56, %c0_57, %c24_58] : memref<2x4x32xbf16, #tpu.memory_space<vmem>>, vector<2x4x8xbf16>
    tpu.vector_store %arg2[%c0_56, %c0_57, %c24_58], %98 {strides = array<i32>} : memref<2x4x32xbf16, #tpu.memory_space<vmem>>, vector<2x4x8xbf16>,
    return
  }
  func.func @transform_0(%arg0: i32) -> (i32, i32, i32) {
    %c0_i32 = arith.constant 0 : i32
    %c0_i32_0 = arith.constant 0 : i32
    %c0_i32_1 = arith.constant 0 : i32
    return %arg0, %c0_i32, %c0_i32_0 : i32, i32, i32
  }
  func.func @transform_1(%arg0: i32) -> (i32, i32, i32) {
    %c0_i32 = arith.constant 0 : i32
    %c0_i32_0 = arith.constant 0 : i32
    %c0_i32_1 = arith.constant 0 : i32
    return %arg0, %c0_i32, %c0_i32_0 : i32, i32, i32
  }
}

module attributes {stable_mosaic.version = 11 : i64} {
  func.func @_linear_resident_kernel(%arg0: i32, %arg1: memref<24x32xbf16, #tpu.memory_space<vmem>>, %arg2: memref<32x32xbf16, #tpu.memory_space<vmem>>, %arg3: memref<1x32xf32, #tpu.memory_space<vmem>>, %arg4: memref<24x32xf32, #tpu.memory_space<vmem>>, %arg5: memref<24x32xf32, #tpu.memory_space<vmem>>) attributes {dimension_semantics = [#tpu.dimension_semantics<parallel>], iteration_bounds = array<i64: 1>, scalar_prefetch = 0 : i64, scratch_operands = 0 : i64, tpu.core_type = #tpu.core_type<tc>, window_params = [{transform_indices = @transform_0, window_bounds = array<i64: 24, 32>}, {pipeline_mode = #tpu.pipeline_mode<synchronous>, transform_indices = @transform_1, window_bounds = array<i64: 32, 32>}, {pipeline_mode = #tpu.pipeline_mode<synchronous>, transform_indices = @transform_2, window_bounds = array<i64: 1, 32>}, {transform_indices = @transform_3, window_bounds = array<i64: 24, 32>}, {transform_indices = @transform_4, window_bounds = array<i64: 24, 32>}]} {
    %c0 = arith.constant 0 : index
    %c0_0 = arith.constant 0 : index
    %0 = vector.load %arg1[%c0, %c0_0] : memref<24x32xbf16, #tpu.memory_space<vmem>>, vector<24x32xbf16>
    %c0_1 = arith.constant 0 : index
    %c0_2 = arith.constant 0 : index
    %1 = vector.load %arg2[%c0_1, %c0_2] : memref<32x32xbf16, #tpu.memory_space<vmem>>, vector<32x32xbf16>
    %cst = arith.constant dense<0.000000e+00> : vector<24x32xf32>
    %2 = tpu.matmul %0, %1, %cst {dimension_numbers = #tpu.dot_dimension_numbers<[1], [0], [0], [1], [0, 0, 1, 1], [], []>} : vector<24x32xbf16>, vector<32x32xbf16>, vector<24x32xf32> -> vector<24x32xf32>
    %c0_3 = arith.constant 0 : index
    %c0_4 = arith.constant 0 : index
    %3 = vector.load %arg3[%c0_3, %c0_4] : memref<1x32xf32, #tpu.memory_space<vmem>>, vector<1x32xf32>
    %4 = vector.broadcast %3 : vector<1x32xf32> to vector<24x32xf32>
    %5 = arith.addf %2, %4 : vector<24x32xf32>
    %c0_5 = arith.constant 0 : index
    %c0_6 = arith.constant 0 : index
    %6 = vector.load %arg4[%c0_5, %c0_6] : memref<24x32xf32, #tpu.memory_space<vmem>>, vector<24x32xf32>
    %7 = arith.addf %5, %6 : vector<24x32xf32>
    %c0_7 = arith.constant 0 : index
    %c0_8 = arith.constant 0 : index
    %8 = vector.load %arg5[%c0_7, %c0_8] : memref<24x32xf32, #tpu.memory_space<vmem>>, vector<24x32xf32>
    tpu.vector_store %arg5[%c0_7, %c0_8], %7 {strides = array<i32>} : memref<24x32xf32, #tpu.memory_space<vmem>>, vector<24x32xf32>,
    return
  }
  func.func @transform_0(%arg0: i32) -> (i32, i32) {
    %c0_i32 = arith.constant 0 : i32
    %c0_i32_0 = arith.constant 0 : i32
    return %arg0, %c0_i32 : i32, i32
  }
  func.func @transform_1(%arg0: i32) -> (i32, i32) {
    %c0_i32 = arith.constant 0 : i32
    %c0_i32_0 = arith.constant 0 : i32
    %c0_i32_1 = arith.constant 0 : i32
    return %c0_i32, %c0_i32_0 : i32, i32
  }
  func.func @transform_2(%arg0: i32) -> (i32, i32) {
    %c0_i32 = arith.constant 0 : i32
    %c0_i32_0 = arith.constant 0 : i32
    %c0_i32_1 = arith.constant 0 : i32
    return %c0_i32, %c0_i32_0 : i32, i32
  }
  func.func @transform_3(%arg0: i32) -> (i32, i32) {
    %c0_i32 = arith.constant 0 : i32
    %c0_i32_0 = arith.constant 0 : i32
    return %arg0, %c0_i32 : i32, i32
  }
  func.func @transform_4(%arg0: i32) -> (i32, i32) {
    %c0_i32 = arith.constant 0 : i32
    %c0_i32_0 = arith.constant 0 : i32
    return %arg0, %c0_i32 : i32, i32
  }
}

module attributes {stable_mosaic.version = 11 : i64} {
  func.func @_ln_linear_kernel(%arg0: i32, %arg1: memref<24x32xf32, #tpu.memory_space<vmem>>, %arg2: memref<1x32xf32, #tpu.memory_space<vmem>>, %arg3: memref<1x32xf32, #tpu.memory_space<vmem>>, %arg4: memref<32x128xbf16, #tpu.memory_space<vmem>>, %arg5: memref<1x128xf32, #tpu.memory_space<vmem>>, %arg6: memref<24x128xbf16, #tpu.memory_space<vmem>>) attributes {dimension_semantics = [#tpu.dimension_semantics<parallel>], iteration_bounds = array<i64: 1>, scalar_prefetch = 0 : i64, scratch_operands = 0 : i64, tpu.core_type = #tpu.core_type<tc>, window_params = [{transform_indices = @transform_0, window_bounds = array<i64: 24, 32>}, {pipeline_mode = #tpu.pipeline_mode<synchronous>, transform_indices = @transform_1, window_bounds = array<i64: 1, 32>}, {pipeline_mode = #tpu.pipeline_mode<synchronous>, transform_indices = @transform_2, window_bounds = array<i64: 1, 32>}, {pipeline_mode = #tpu.pipeline_mode<synchronous>, transform_indices = @transform_3, window_bounds = array<i64: 32, 128>}, {pipeline_mode = #tpu.pipeline_mode<synchronous>, transform_indices = @transform_4, window_bounds = array<i64: 1, 128>}, {transform_indices = @transform_5, window_bounds = array<i64: 24, 128>}]} {
    %c0 = arith.constant 0 : index
    %c0_0 = arith.constant 0 : index
    %0 = vector.load %arg1[%c0, %c0_0] : memref<24x32xf32, #tpu.memory_space<vmem>>, vector<24x32xf32>
    %cst = arith.constant dense<0.000000e+00> : vector<24xf32>
    %1 = vector.multi_reduction <add>, %0, %cst [1] : vector<24x32xf32> to vector<24xf32>
    %2 = vector.shape_cast %1 : vector<24xf32> to vector<24x1xf32>
    %cst_1 = arith.constant 3.200000e+01 : f32
    %3 = vector.broadcast %cst_1 : f32 to vector<24x1xf32>
    %4 = arith.divf %2, %3 : vector<24x1xf32>
    %5 = vector.broadcast %4 : vector<24x1xf32> to vector<24x32xf32>
    %6 = arith.subf %0, %5 : vector<24x32xf32>
    %7 = arith.mulf %6, %6 : vector<24x32xf32>
    %cst_2 = arith.constant dense<0.000000e+00> : vector<24xf32>
    %8 = vector.multi_reduction <add>, %7, %cst_2 [1] : vector<24x32xf32> to vector<24xf32>
    %9 = vector.shape_cast %8 : vector<24xf32> to vector<24x1xf32>
    %cst_3 = arith.constant 3.200000e+01 : f32
    %10 = vector.broadcast %cst_3 : f32 to vector<24x1xf32>
    %11 = arith.divf %9, %10 : vector<24x1xf32>
    %12 = vector.broadcast %4 : vector<24x1xf32> to vector<24x32xf32>
    %13 = arith.subf %0, %12 : vector<24x32xf32>
    %cst_4 = arith.constant 9.99999974E-6 : f32
    %14 = vector.broadcast %cst_4 : f32 to vector<24x1xf32>
    %15 = arith.addf %11, %14 : vector<24x1xf32>
    %16 = math.rsqrt %15 : vector<24x1xf32>
    %17 = vector.broadcast %16 : vector<24x1xf32> to vector<24x32xf32>
    %18 = arith.mulf %13, %17 : vector<24x32xf32>
    %c0_5 = arith.constant 0 : index
    %c0_6 = arith.constant 0 : index
    %19 = vector.load %arg2[%c0_5, %c0_6] : memref<1x32xf32, #tpu.memory_space<vmem>>, vector<1x32xf32>
    %20 = vector.broadcast %19 : vector<1x32xf32> to vector<24x32xf32>
    %21 = arith.mulf %18, %20 : vector<24x32xf32>
    %c0_7 = arith.constant 0 : index
    %c0_8 = arith.constant 0 : index
    %22 = vector.load %arg3[%c0_7, %c0_8] : memref<1x32xf32, #tpu.memory_space<vmem>>, vector<1x32xf32>
    %23 = vector.broadcast %22 : vector<1x32xf32> to vector<24x32xf32>
    %24 = arith.addf %21, %23 : vector<24x32xf32>
    %25 = arith.truncf %24 : vector<24x32xf32> to vector<24x32xbf16>
    %c0_9 = arith.constant 0 : index
    %c0_10 = arith.constant 0 : index
    %26 = vector.load %arg4[%c0_9, %c0_10] : memref<32x128xbf16, #tpu.memory_space<vmem>>, vector<32x128xbf16>
    %cst_11 = arith.constant dense<0.000000e+00> : vector<24x128xf32>
    %27 = tpu.matmul %25, %26, %cst_11 {dimension_numbers = #tpu.dot_dimension_numbers<[1], [0], [0], [1], [0, 0, 1, 1], [], []>} : vector<24x32xbf16>, vector<32x128xbf16>, vector<24x128xf32> -> vector<24x128xf32>
    %c0_12 = arith.constant 0 : index
    %c0_13 = arith.constant 0 : index
    %28 = vector.load %arg5[%c0_12, %c0_13] : memref<1x128xf32, #tpu.memory_space<vmem>>, vector<1x128xf32>
    %29 = vector.broadcast %28 : vector<1x128xf32> to vector<24x128xf32>
    %30 = arith.addf %27, %29 : vector<24x128xf32>
    %cst_14 = arith.constant 5.000000e-01 : f32
    %31 = vector.broadcast %cst_14 : f32 to vector<24x128xf32>
    %32 = arith.mulf %31, %30 : vector<24x128xf32>
    %cst_15 = arith.constant 4.471500e-02 : f32
    %33 = vector.broadcast %cst_15 : f32 to vector<24x128xf32>
    %34 = arith.mulf %33, %30 : vector<24x128xf32>
    %35 = arith.mulf %34, %30 : vector<24x128xf32>
    %36 = arith.mulf %35, %30 : vector<24x128xf32>
    %37 = arith.addf %30, %36 : vector<24x128xf32>
    %cst_16 = arith.constant 0.797884583 : f32
    %38 = vector.broadcast %cst_16 : f32 to vector<24x128xf32>
    %39 = arith.mulf %38, %37 : vector<24x128xf32>
    %40 = math.tanh %39 : vector<24x128xf32>
    %cst_17 = arith.constant 1.000000e+00 : f32
    %41 = vector.broadcast %cst_17 : f32 to vector<24x128xf32>
    %42 = arith.addf %41, %40 : vector<24x128xf32>
    %43 = arith.mulf %32, %42 : vector<24x128xf32>
    %44 = arith.truncf %43 : vector<24x128xf32> to vector<24x128xbf16>
    %c0_18 = arith.constant 0 : index
    %c0_19 = arith.constant 0 : index
    %45 = vector.load %arg6[%c0_18, %c0_19] : memref<24x128xbf16, #tpu.memory_space<vmem>>, vector<24x128xbf16>
    tpu.vector_store %arg6[%c0_18, %c0_19], %44 {strides = array<i32>} : memref<24x128xbf16, #tpu.memory_space<vmem>>, vector<24x128xbf16>,
    return
  }
  func.func @transform_0(%arg0: i32) -> (i32, i32) {
    %c0_i32 = arith.constant 0 : i32
    %c0_i32_0 = arith.constant 0 : i32
    return %arg0, %c0_i32 : i32, i32
  }
  func.func @transform_1(%arg0: i32) -> (i32, i32) {
    %c0_i32 = arith.constant 0 : i32
    %c0_i32_0 = arith.constant 0 : i32
    %c0_i32_1 = arith.constant 0 : i32
    return %c0_i32, %c0_i32_0 : i32, i32
  }
  func.func @transform_2(%arg0: i32) -> (i32, i32) {
    %c0_i32 = arith.constant 0 : i32
    %c0_i32_0 = arith.constant 0 : i32
    %c0_i32_1 = arith.constant 0 : i32
    return %c0_i32, %c0_i32_0 : i32, i32
  }
  func.func @transform_3(%arg0: i32) -> (i32, i32) {
    %c0_i32 = arith.constant 0 : i32
    %c0_i32_0 = arith.constant 0 : i32
    %c0_i32_1 = arith.constant 0 : i32
    return %c0_i32, %c0_i32_0 : i32, i32
  }
  func.func @transform_4(%arg0: i32) -> (i32, i32) {
    %c0_i32 = arith.constant 0 : i32
    %c0_i32_0 = arith.constant 0 : i32
    %c0_i32_1 = arith.constant 0 : i32
    return %c0_i32, %c0_i32_0 : i32, i32
  }
  func.func @transform_5(%arg0: i32) -> (i32, i32) {
    %c0_i32 = arith.constant 0 : i32
    %c0_i32_0 = arith.constant 0 : i32
    return %arg0, %c0_i32 : i32, i32
  }
}

module attributes {stable_mosaic.version = 11 : i64} {
  func.func @_linear_resident_kernel(%arg0: i32, %arg1: memref<24x128xbf16, #tpu.memory_space<vmem>>, %arg2: memref<128x32xbf16, #tpu.memory_space<vmem>>, %arg3: memref<1x32xf32, #tpu.memory_space<vmem>>, %arg4: memref<24x32xf32, #tpu.memory_space<vmem>>, %arg5: memref<24x32xf32, #tpu.memory_space<vmem>>) attributes {dimension_semantics = [#tpu.dimension_semantics<parallel>], iteration_bounds = array<i64: 1>, scalar_prefetch = 0 : i64, scratch_operands = 0 : i64, tpu.core_type = #tpu.core_type<tc>, window_params = [{transform_indices = @transform_0, window_bounds = array<i64: 24, 128>}, {pipeline_mode = #tpu.pipeline_mode<synchronous>, transform_indices = @transform_1, window_bounds = array<i64: 128, 32>}, {pipeline_mode = #tpu.pipeline_mode<synchronous>, transform_indices = @transform_2, window_bounds = array<i64: 1, 32>}, {transform_indices = @transform_3, window_bounds = array<i64: 24, 32>}, {transform_indices = @transform_4, window_bounds = array<i64: 24, 32>}]} {
    %c0 = arith.constant 0 : index
    %c0_0 = arith.constant 0 : index
    %0 = vector.load %arg1[%c0, %c0_0] : memref<24x128xbf16, #tpu.memory_space<vmem>>, vector<24x128xbf16>
    %c0_1 = arith.constant 0 : index
    %c0_2 = arith.constant 0 : index
    %1 = vector.load %arg2[%c0_1, %c0_2] : memref<128x32xbf16, #tpu.memory_space<vmem>>, vector<128x32xbf16>
    %cst = arith.constant dense<0.000000e+00> : vector<24x32xf32>
    %2 = tpu.matmul %0, %1, %cst {dimension_numbers = #tpu.dot_dimension_numbers<[1], [0], [0], [1], [0, 0, 1, 1], [], []>} : vector<24x128xbf16>, vector<128x32xbf16>, vector<24x32xf32> -> vector<24x32xf32>
    %c0_3 = arith.constant 0 : index
    %c0_4 = arith.constant 0 : index
    %3 = vector.load %arg3[%c0_3, %c0_4] : memref<1x32xf32, #tpu.memory_space<vmem>>, vector<1x32xf32>
    %4 = vector.broadcast %3 : vector<1x32xf32> to vector<24x32xf32>
    %5 = arith.addf %2, %4 : vector<24x32xf32>
    %c0_5 = arith.constant 0 : index
    %c0_6 = arith.constant 0 : index
    %6 = vector.load %arg4[%c0_5, %c0_6] : memref<24x32xf32, #tpu.memory_space<vmem>>, vector<24x32xf32>
    %7 = arith.addf %5, %6 : vector<24x32xf32>
    %c0_7 = arith.constant 0 : index
    %c0_8 = arith.constant 0 : index
    %8 = vector.load %arg5[%c0_7, %c0_8] : memref<24x32xf32, #tpu.memory_space<vmem>>, vector<24x32xf32>
    tpu.vector_store %arg5[%c0_7, %c0_8], %7 {strides = array<i32>} : memref<24x32xf32, #tpu.memory_space<vmem>>, vector<24x32xf32>,
    return
  }
  func.func @transform_0(%arg0: i32) -> (i32, i32) {
    %c0_i32 = arith.constant 0 : i32
    %c0_i32_0 = arith.constant 0 : i32
    return %arg0, %c0_i32 : i32, i32
  }
  func.func @transform_1(%arg0: i32) -> (i32, i32) {
    %c0_i32 = arith.constant 0 : i32
    %c0_i32_0 = arith.constant 0 : i32
    %c0_i32_1 = arith.constant 0 : i32
    return %c0_i32, %c0_i32_0 : i32, i32
  }
  func.func @transform_2(%arg0: i32) -> (i32, i32) {
    %c0_i32 = arith.constant 0 : i32
    %c0_i32_0 = arith.constant 0 : i32
    %c0_i32_1 = arith.constant 0 : i32
    return %c0_i32, %c0_i32_0 : i32, i32
  }
  func.func @transform_3(%arg0: i32) -> (i32, i32) {
    %c0_i32 = arith.constant 0 : i32
    %c0_i32_0 = arith.constant 0 : i32
    return %arg0, %c0_i32 : i32, i32
  }
  func.func @transform_4(%arg0: i32) -> (i32, i32) {
    %c0_i32 = arith.constant 0 : i32
    %c0_i32_0 = arith.constant 0 : i32
    return %arg0, %c0_i32 : i32, i32
  }
}

module attributes {stable_mosaic.version = 11 : i64} {
  func.func @_layernorm_kernel(%arg0: i32, %arg1: memref<24x32xf32, #tpu.memory_space<vmem>>, %arg2: memref<1x32xf32, #tpu.memory_space<vmem>>, %arg3: memref<1x32xf32, #tpu.memory_space<vmem>>, %arg4: memref<24x32xf32, #tpu.memory_space<vmem>>) attributes {dimension_semantics = [#tpu.dimension_semantics<parallel>], iteration_bounds = array<i64: 1>, scalar_prefetch = 0 : i64, scratch_operands = 0 : i64, tpu.core_type = #tpu.core_type<tc>, window_params = [{transform_indices = @transform_0, window_bounds = array<i64: 24, 32>}, {pipeline_mode = #tpu.pipeline_mode<synchronous>, transform_indices = @transform_1, window_bounds = array<i64: 1, 32>}, {pipeline_mode = #tpu.pipeline_mode<synchronous>, transform_indices = @transform_2, window_bounds = array<i64: 1, 32>}, {transform_indices = @transform_3, window_bounds = array<i64: 24, 32>}]} {
    %c0 = arith.constant 0 : index
    %c0_0 = arith.constant 0 : index
    %0 = vector.load %arg1[%c0, %c0_0] : memref<24x32xf32, #tpu.memory_space<vmem>>, vector<24x32xf32>
    %cst = arith.constant dense<0.000000e+00> : vector<24xf32>
    %1 = vector.multi_reduction <add>, %0, %cst [1] : vector<24x32xf32> to vector<24xf32>
    %2 = vector.shape_cast %1 : vector<24xf32> to vector<24x1xf32>
    %cst_1 = arith.constant 3.200000e+01 : f32
    %3 = vector.broadcast %cst_1 : f32 to vector<24x1xf32>
    %4 = arith.divf %2, %3 : vector<24x1xf32>
    %5 = vector.broadcast %4 : vector<24x1xf32> to vector<24x32xf32>
    %6 = arith.subf %0, %5 : vector<24x32xf32>
    %7 = arith.mulf %6, %6 : vector<24x32xf32>
    %cst_2 = arith.constant dense<0.000000e+00> : vector<24xf32>
    %8 = vector.multi_reduction <add>, %7, %cst_2 [1] : vector<24x32xf32> to vector<24xf32>
    %9 = vector.shape_cast %8 : vector<24xf32> to vector<24x1xf32>
    %cst_3 = arith.constant 3.200000e+01 : f32
    %10 = vector.broadcast %cst_3 : f32 to vector<24x1xf32>
    %11 = arith.divf %9, %10 : vector<24x1xf32>
    %12 = vector.broadcast %4 : vector<24x1xf32> to vector<24x32xf32>
    %13 = arith.subf %0, %12 : vector<24x32xf32>
    %cst_4 = arith.constant 9.99999974E-6 : f32
    %14 = vector.broadcast %cst_4 : f32 to vector<24x1xf32>
    %15 = arith.addf %11, %14 : vector<24x1xf32>
    %16 = math.rsqrt %15 : vector<24x1xf32>
    %17 = vector.broadcast %16 : vector<24x1xf32> to vector<24x32xf32>
    %18 = arith.mulf %13, %17 : vector<24x32xf32>
    %c0_5 = arith.constant 0 : index
    %c0_6 = arith.constant 0 : index
    %19 = vector.load %arg2[%c0_5, %c0_6] : memref<1x32xf32, #tpu.memory_space<vmem>>, vector<1x32xf32>
    %20 = vector.broadcast %19 : vector<1x32xf32> to vector<24x32xf32>
    %21 = arith.mulf %18, %20 : vector<24x32xf32>
    %c0_7 = arith.constant 0 : index
    %c0_8 = arith.constant 0 : index
    %22 = vector.load %arg3[%c0_7, %c0_8] : memref<1x32xf32, #tpu.memory_space<vmem>>, vector<1x32xf32>
    %23 = vector.broadcast %22 : vector<1x32xf32> to vector<24x32xf32>
    %24 = arith.addf %21, %23 : vector<24x32xf32>
    %c0_9 = arith.constant 0 : index
    %c0_10 = arith.constant 0 : index
    %25 = vector.load %arg4[%c0_9, %c0_10] : memref<24x32xf32, #tpu.memory_space<vmem>>, vector<24x32xf32>
    tpu.vector_store %arg4[%c0_9, %c0_10], %24 {strides = array<i32>} : memref<24x32xf32, #tpu.memory_space<vmem>>, vector<24x32xf32>,
    return
  }
  func.func @transform_0(%arg0: i32) -> (i32, i32) {
    %c0_i32 = arith.constant 0 : i32
    %c0_i32_0 = arith.constant 0 : i32
    return %arg0, %c0_i32 : i32, i32
  }
  func.func @transform_1(%arg0: i32) -> (i32, i32) {
    %c0_i32 = arith.constant 0 : i32
    %c0_i32_0 = arith.constant 0 : i32
    %c0_i32_1 = arith.constant 0 : i32
    return %c0_i32, %c0_i32_0 : i32, i32
  }
  func.func @transform_2(%arg0: i32) -> (i32, i32) {
    %c0_i32 = arith.constant 0 : i32
    %c0_i32_0 = arith.constant 0 : i32
    %c0_i32_1 = arith.constant 0 : i32
    return %c0_i32, %c0_i32_0 : i32, i32
  }
  func.func @transform_3(%arg0: i32) -> (i32, i32) {
    %c0_i32 = arith.constant 0 : i32
    %c0_i32_0 = arith.constant 0 : i32
    return %arg0, %c0_i32 : i32, i32
  }
}

module attributes {stable_mosaic.version = 11 : i64} {
  func.func @_linear_ktiled_kernel(%arg0: i32, %arg1: i32, %arg2: memref<8x384xf32, #tpu.memory_space<vmem>>, %arg3: memref<384x512xbf16, #tpu.memory_space<vmem>>, %arg4: memref<1x512xf32, #tpu.memory_space<vmem>>, %arg5: memref<8x512xf32, #tpu.memory_space<vmem>>) attributes {dimension_semantics = [#tpu.dimension_semantics<parallel>, #tpu.dimension_semantics<arbitrary>], iteration_bounds = array<i64: 1, 1>, scalar_prefetch = 0 : i64, scratch_operands = 0 : i64, tpu.core_type = #tpu.core_type<tc>, window_params = [{transform_indices = @transform_0, window_bounds = array<i64: 8, 384>}, {transform_indices = @transform_1, window_bounds = array<i64: 384, 512>}, {pipeline_mode = #tpu.pipeline_mode<synchronous>, transform_indices = @transform_2, window_bounds = array<i64: 1, 512>}, {transform_indices = @transform_3, window_bounds = array<i64: 8, 512>}]} {
    %c0_i32 = arith.constant 0 : i32
    %0 = arith.cmpi eq, %arg1, %c0_i32 : i32
    %1 = arith.extui %0 : i1 to i32
    %c0_i32_0 = arith.constant 0 : i32
    %2 = arith.cmpi ne, %1, %c0_i32_0 : i32
    scf.if %2 {
      %cst_10 = arith.constant 0.000000e+00 : f32
      %13 = vector.broadcast %cst_10 : f32 to vector<8x512xf32>
      %c0_11 = arith.constant 0 : index
      %c0_12 = arith.constant 0 : index
      %14 = vector.load %arg5[%c0_11, %c0_12] : memref<8x512xf32, #tpu.memory_space<vmem>>, vector<8x512xf32>
      tpu.vector_store %arg5[%c0_11, %c0_12], %13 {strides = array<i32>} : memref<8x512xf32, #tpu.memory_space<vmem>>, vector<8x512xf32>,
    } else {
    }
    %c0 = arith.constant 0 : index
    %c0_1 = arith.constant 0 : index
    %3 = vector.load %arg5[%c0, %c0_1] : memref<8x512xf32, #tpu.memory_space<vmem>>, vector<8x512xf32>
    %c0_2 = arith.constant 0 : index
    %c0_3 = arith.constant 0 : index
    %4 = vector.load %arg2[%c0_2, %c0_3] : memref<8x384xf32, #tpu.memory_space<vmem>>, vector<8x384xf32>
    %5 = arith.truncf %4 : vector<8x384xf32> to vector<8x384xbf16>
    %c0_4 = arith.constant 0 : index
    %c0_5 = arith.constant 0 : index
    %6 = vector.load %arg3[%c0_4, %c0_5] : memref<384x512xbf16, #tpu.memory_space<vmem>>, vector<384x512xbf16>
    %cst = arith.constant dense<0.000000e+00> : vector<8x512xf32>
    %7 = tpu.matmul %5, %6, %cst {dimension_numbers = #tpu.dot_dimension_numbers<[1], [0], [0], [1], [0, 0, 1, 1], [], []>} : vector<8x384xbf16>, vector<384x512xbf16>, vector<8x512xf32> -> vector<8x512xf32>
    %8 = arith.addf %3, %7 : vector<8x512xf32>
    %c0_6 = arith.constant 0 : index
    %c0_7 = arith.constant 0 : index
    %9 = vector.load %arg5[%c0_6, %c0_7] : memref<8x512xf32, #tpu.memory_space<vmem>>, vector<8x512xf32>
    tpu.vector_store %arg5[%c0_6, %c0_7], %8 {strides = array<i32>} : memref<8x512xf32, #tpu.memory_space<vmem>>, vector<8x512xf32>,
    %c0_i32_8 = arith.constant 0 : i32
    %10 = arith.cmpi eq, %arg1, %c0_i32_8 : i32
    %11 = arith.extui %10 : i1 to i32
    %c0_i32_9 = arith.constant 0 : i32
    %12 = arith.cmpi ne, %11, %c0_i32_9 : i32
    scf.if %12 {
      %c0_10 = arith.constant 0 : index
      %c0_11 = arith.constant 0 : index
      %13 = vector.load %arg5[%c0_10, %c0_11] : memref<8x512xf32, #tpu.memory_space<vmem>>, vector<8x512xf32>
      %c0_12 = arith.constant 0 : index
      %c0_13 = arith.constant 0 : index
      %14 = vector.load %arg4[%c0_12, %c0_13] : memref<1x512xf32, #tpu.memory_space<vmem>>, vector<1x512xf32>
      %15 = vector.broadcast %14 : vector<1x512xf32> to vector<8x512xf32>
      %16 = arith.addf %13, %15 : vector<8x512xf32>
      %cst_14 = arith.constant 0.000000e+00 : f32
      %17 = vector.broadcast %cst_14 : f32 to vector<8x512xf32>
      %18 = arith.maximumf %16, %17 : vector<8x512xf32>
      %c0_15 = arith.constant 0 : index
      %c0_16 = arith.constant 0 : index
      %19 = vector.load %arg5[%c0_15, %c0_16] : memref<8x512xf32, #tpu.memory_space<vmem>>, vector<8x512xf32>
      tpu.vector_store %arg5[%c0_15, %c0_16], %18 {strides = array<i32>} : memref<8x512xf32, #tpu.memory_space<vmem>>, vector<8x512xf32>,
    } else {
    }
    return
  }
  func.func @transform_0(%arg0: i32, %arg1: i32) -> (i32, i32) {
    %c0_i32 = arith.constant 0 : i32
    return %arg0, %arg1 : i32, i32
  }
  func.func @transform_1(%arg0: i32, %arg1: i32) -> (i32, i32) {
    %c0_i32 = arith.constant 0 : i32
    %c0_i32_0 = arith.constant 0 : i32
    return %arg1, %c0_i32 : i32, i32
  }
  func.func @transform_2(%arg0: i32, %arg1: i32) -> (i32, i32) {
    %c0_i32 = arith.constant 0 : i32
    %c0_i32_0 = arith.constant 0 : i32
    %c0_i32_1 = arith.constant 0 : i32
    return %c0_i32, %c0_i32_0 : i32, i32
  }
  func.func @transform_3(%arg0: i32, %arg1: i32) -> (i32, i32) {
    %c0_i32 = arith.constant 0 : i32
    %c0_i32_0 = arith.constant 0 : i32
    return %arg0, %c0_i32 : i32, i32
  }
}

module attributes {stable_mosaic.version = 11 : i64} {
  func.func @_linear_resident_kernel(%arg0: i32, %arg1: memref<8x512xf32, #tpu.memory_space<vmem>>, %arg2: memref<512x5xbf16, #tpu.memory_space<vmem>>, %arg3: memref<1x5xf32, #tpu.memory_space<vmem>>, %arg4: memref<8x5xf32, #tpu.memory_space<vmem>>) attributes {dimension_semantics = [#tpu.dimension_semantics<parallel>], iteration_bounds = array<i64: 1>, scalar_prefetch = 0 : i64, scratch_operands = 0 : i64, tpu.core_type = #tpu.core_type<tc>, window_params = [{transform_indices = @transform_0, window_bounds = array<i64: 8, 512>}, {pipeline_mode = #tpu.pipeline_mode<synchronous>, transform_indices = @transform_1, window_bounds = array<i64: 512, 5>}, {pipeline_mode = #tpu.pipeline_mode<synchronous>, transform_indices = @transform_2, window_bounds = array<i64: 1, 5>}, {transform_indices = @transform_3, window_bounds = array<i64: 8, 5>}]} {
    %c0 = arith.constant 0 : index
    %c0_0 = arith.constant 0 : index
    %0 = vector.load %arg1[%c0, %c0_0] : memref<8x512xf32, #tpu.memory_space<vmem>>, vector<8x512xf32>
    %1 = arith.truncf %0 : vector<8x512xf32> to vector<8x512xbf16>
    %c0_1 = arith.constant 0 : index
    %c0_2 = arith.constant 0 : index
    %2 = vector.load %arg2[%c0_1, %c0_2] : memref<512x5xbf16, #tpu.memory_space<vmem>>, vector<512x5xbf16>
    %cst = arith.constant dense<0.000000e+00> : vector<8x5xf32>
    %3 = tpu.matmul %1, %2, %cst {dimension_numbers = #tpu.dot_dimension_numbers<[1], [0], [0], [1], [0, 0, 1, 1], [], []>} : vector<8x512xbf16>, vector<512x5xbf16>, vector<8x5xf32> -> vector<8x5xf32>
    %c0_3 = arith.constant 0 : index
    %c0_4 = arith.constant 0 : index
    %4 = vector.load %arg3[%c0_3, %c0_4] : memref<1x5xf32, #tpu.memory_space<vmem>>, vector<1x5xf32>
    %5 = vector.broadcast %4 : vector<1x5xf32> to vector<8x5xf32>
    %6 = arith.addf %3, %5 : vector<8x5xf32>
    %c0_5 = arith.constant 0 : index
    %c0_6 = arith.constant 0 : index
    %7 = vector.load %arg4[%c0_5, %c0_6] : memref<8x5xf32, #tpu.memory_space<vmem>>, vector<8x5xf32>
    tpu.vector_store %arg4[%c0_5, %c0_6], %6 {strides = array<i32>} : memref<8x5xf32, #tpu.memory_space<vmem>>, vector<8x5xf32>,
    return
  }
  func.func @transform_0(%arg0: i32) -> (i32, i32) {
    %c0_i32 = arith.constant 0 : i32
    %c0_i32_0 = arith.constant 0 : i32
    return %arg0, %c0_i32 : i32, i32
  }
  func.func @transform_1(%arg0: i32) -> (i32, i32) {
    %c0_i32 = arith.constant 0 : i32
    %c0_i32_0 = arith.constant 0 : i32
    %c0_i32_1 = arith.constant 0 : i32
    return %c0_i32, %c0_i32_0 : i32, i32
  }
  func.func @transform_2(%arg0: i32) -> (i32, i32) {
    %c0_i32 = arith.constant 0 : i32
    %c0_i32_0 = arith.constant 0 : i32
    %c0_i32_1 = arith.constant 0 : i32
    return %c0_i32, %c0_i32_0 : i32, i32
  }
  func.func @transform_3(%arg0: i32) -> (i32, i32) {
    %c0_i32 = arith.constant 0 : i32
    %c0_i32_0 = arith.constant 0 : i32
    return %arg0, %c0_i32 : i32, i32
  }
}

</mosaic_0001>

<llo_original>
// kernel: gpt4mts_forward.15
$region0: #{gpt4mts_forward.15}
  #allocation0 [shape = 'u32[]', space=smem, size = 0x4, offset = 0x4, fixed_abs, tag = 'smem constant byte address 0x4 - core index']
  #allocation1 [shape = 'u32[144,128]{1,0:T(1,128)}', space=vmem, size = 0x12000, scoped, tag = 'internal scratch']
  %s0 = inlined_call_operand.vmem [shape: f32[8,16], index: 0, kind: input, shape index: {}]
  %s1 = inlined_call_operand.vmem [shape: f32[8,16], index: 1, kind: output, shape index: {}]
  %s2 = sld [smem:[#allocation0]]
  $region14: #{gpt4mts_forward.15} parent=0
    _
  %s4 = ssub.s32 1, %s2
  %s5 = scalar_select 0, %s4, %s2
  // Predicated region
  $region2: #{gpt4mts_forward.15} parent=0 // pred_check
    _
  $region3: #{gpt4mts_forward.15} parent=0 // pred_check_branch
    %7 = sbr.rel (0) target = $region5
  $region4: #{gpt4mts_forward.15} parent=0 // pred_region
    _
  $region5: #{gpt4mts_forward.15} parent=0 // pred_fallthru
    _
  %v8 = vld [vmem:[%s0] sm:$0xff]
  %vm9 = vcmask 130048
  %v10 = vsel %vm9, %v8, 0.0
  %11 = vadd.xlane.f32.xlu0 %v10
  %v12 = vpop.xlane.xlu0 %11
  %v13 = vrcp.pop 16.0
  %v14 = vmul.f32 %v12, %v13
  %v15 = vsub.f32 %v8, %v14
  %v16 = vmul.f32 %v15, %v15
  %v17 = vsel %vm9, %v16, 0.0
  %18 = vadd.xlane.f32.xlu0 %v17
  %v19 = vpop.xlane.xlu0 %18
  %v20 = vmul.f32 %v19, %v13
  %v21 = vadd.f32 %v20, 1e-05
  %v22 = vrsqrt.pop %v21
  %v23 = vmul.f32 %v15, %v22
  %24 = vst.msk [vmem:[%s1] sm:$0xff] %vm9, %v23
  // Predicated region
  $region6: #{gpt4mts_forward.15} parent=0 // pred_check
    _
  $region7: #{gpt4mts_forward.15} parent=0 // pred_check_branch
    %26 = sbr.rel (0) target = $region9
  $region8: #{gpt4mts_forward.15} parent=0 // pred_region
    _
  $region9: #{gpt4mts_forward.15} parent=0 // pred_fallthru
    _
  // Predicated region
  $region10: #{gpt4mts_forward.15} parent=0 // pred_check
    _
  $region11: #{gpt4mts_forward.15} parent=0 // pred_check_branch
    %28 = sbr.rel (0) target = $region13
  $region12: #{gpt4mts_forward.15} parent=0 // pred_region
    _
  $region13: #{gpt4mts_forward.15} parent=0 // pred_fallthru
    _

// kernel: gpt4mts_forward.16
$region0: #{gpt4mts_forward.16}
  #allocation0 [shape = 'u32[]', space=smem, size = 0x4, offset = 0x4, fixed_abs, tag = 'smem constant byte address 0x4 - core index']
  #allocation1 [shape = 'u32[144,128]{1,0:T(1,128)}', space=vmem, size = 0x12000, scoped, tag = 'internal scratch']
  %s0 = inlined_call_operand.vmem [shape: f32[6,4,8], index: 0, kind: input, shape index: {}]
  %s1 = inlined_call_operand.vmem [shape: bf16[8,32], index: 1, kind: input, shape index: {}]
  %s2 = inlined_call_operand.vmem [shape: f32[1,32], index: 2, kind: input, shape index: {}]
  %s3 = inlined_call_operand.vmem [shape: f32[4,32], index: 3, kind: input, shape index: {}]
  %s4 = inlined_call_operand.vmem [shape: f32[6,4,32], index: 4, kind: output, shape index: {}]
  %s5 = sld [smem:[#allocation0]]
  $region26: #{gpt4mts_forward.16} parent=0
    _
  %s7 = ssub.s32 1, %s5
  %s8 = scalar_select 0, %s7, %s5
  // Predicated region
  $region2: #{gpt4mts_forward.16} parent=0 // pred_check
    _
  $region3: #{gpt4mts_forward.16} parent=0 // pred_check_branch
    %10 = sbr.rel (0) target = $region5
  $region4: #{gpt4mts_forward.16} parent=0 // pred_region
    _
  $region5: #{gpt4mts_forward.16} parent=0 // pred_fallthru
    _
  // Predicated region
  $region6: #{gpt4mts_forward.16} parent=0 // pred_check
    _
  $region7: #{gpt4mts_forward.16} parent=0 // pred_check_branch
    %12 = sbr.rel (0) target = $region9
  $region8: #{gpt4mts_forward.16} parent=0 // pred_region
    _
  $region9: #{gpt4mts_forward.16} parent=0 // pred_fallthru
    _
  // Predicated region
  $region10: #{gpt4mts_forward.16} parent=0 // pred_check
    _
  $region11: #{gpt4mts_forward.16} parent=0 // pred_check_branch
    %14 = sbr.rel (0) target = $region13
  $region12: #{gpt4mts_forward.16} parent=0 // pred_region
    _
  $region13: #{gpt4mts_forward.16} parent=0 // pred_fallthru
    _
  // Predicated region
  $region14: #{gpt4mts_forward.16} parent=0 // pred_check
    _
  $region15: #{gpt4mts_forward.16} parent=0 // pred_check_branch
    %16 = sbr.rel (0) target = $region17
  $region16: #{gpt4mts_forward.16} parent=0 // pred_region
    _
  $region17: #{gpt4mts_forward.16} parent=0 // pred_fallthru
    _
  %v18 = vld [vmem:[%s0] sm:$0xf]
  %v19 = vld [vmem:[%s0 + $0x4] sm:$0xf]
  %v20 = vld [vmem:[%s0 + $0x8] sm:$0xf]
  %v21 = vld [vmem:[%s0 + $0xc] sm:$0xf]
  %v22 = vld [vmem:[%s0 + $0x10] sm:$0xf]
  %v23 = vld [vmem:[%s0 + $0x14] sm:$0xf]
  %v30 = vcombine.low %v18, %v19
  %v31 = vcombine.low %v20, %v21
  %v32 = vcombine.low %v22, %v23
  %v36 = vpack.c.bf16 %v31, %v30
  %v37 = vpack.c.bf16 %v32, %v32
  %v38 = vld [vmem:[%s1] sm:$0xf]
  %vm39 = vcmask 64512
  %v41 = vsel %vm39, %v36, 0
  %v44 = vsel %vm39, %v37, 0
  %vm46 = vcmask 1043456
  %v48 = vsel %vm46, %v38, 0
  %50 = vmatprep.subr.bf16.mxu0 0
  %51 = vmatpush1.bf16.msra.mxu0 %v48
  %52 = vmatprep.subr.bf16.mxu0 0
  %53 = vmatpush1.bf16.msra.mxu0 0
  %54 = vmatprep.subr.bf16.mxu0 0
  %55 = vmatpush1.bf16.msra.mxu0 0
  %56 = vmatprep.subr.bf16.mxu0 0
  %57 = vmatpush1.bf16.msra.mxu0 0
  %58 = vmatprep.subr.bf16.mxu0 0
  %59 = vmatpush1.bf16.msra.mxu0 0
  %60 = vmatprep.subr.bf16.mxu0 0
  %61 = vmatpush1.bf16.msra.mxu0 0
  %62 = vmatprep.subr.bf16.mxu0 0
  %63 = vmatpush1.bf16.msra.mxu0 0
  %64 = vmatprep.subr.bf16.mxu0 0
  %65 = vmatpush1.bf16.msra.mxu0 0
  %66 = vmatprep.subr.bf16.mxu0 0
  %67 = vmatpush1.bf16.msra.mxu0 0
  %68 = vmatprep.subr.bf16.mxu0 0
  %69 = vmatpush1.bf16.msra.mxu0 0
  %70 = vmatprep.subr.bf16.mxu0 0
  %71 = vmatpush1.bf16.msra.mxu0 0
  %72 = vmatprep.subr.bf16.mxu0 0
  %73 = vmatpush1.bf16.msra.mxu0 0
  %74 = vmatprep.subr.bf16.mxu0 0
  %75 = vmatpush1.bf16.msra.mxu0 0
  %76 = vmatprep.subr.bf16.mxu0 0
  %77 = vmatpush1.bf16.msra.mxu0 0
  %78 = vmatprep.subr.bf16.mxu0 0
  %79 = vmatpush1.bf16.msra.mxu0 0
  %80 = vmatprep.subr.bf16.mxu0 0
  %81 = vmatpush1.bf16.msra.mxu0 0
  %82 = vmatprep.mubr.bf16.mxu0 0
  %83 = vmatmul.mubr.bf16.gmra.mrb[0].mxu0 %v41
  %v84 = vpop.f32.mrb[0].mxu0
  %v85 = vadd.f32 0.0, %v84
  %v86 = vpop.f32.mrb[0].mxu0
  %v87 = vpop.f32.mrb[0].mxu0
  %v88 = vadd.f32 0.0, %v87
  %v89 = vpop.f32.mrb[0].mxu0
  %90 = vmatprep.mubr.bf16.mxu0 0
  %91 = vmatmul.mubr.bf16.gmra.mrb[0].mxu0 %v44
  %v92 = vpop.f32.mrb[0].mxu0
  %v93 = vadd.f32 0.0, %v92
  %v94 = vpop.f32.mrb[0].mxu0
  %v95 = vpop.f32.mrb[0].mxu0
  %v96 = vpop.f32.mrb[0].mxu0
  %97 = vdwg.mxu0
  %v101 = vcombine.high %v85, %v85
  %v102 = vcombine.high %v88, %v88
  %v103 = vcombine.high %v93, %v93
  %v107 = vld [vmem:[%s2] sm:$0x1]
  %v109 = vlaneseq
  %v110 = vshrl.u32 %v109, 7
  %v111 = vsub.s32 0, %v110
  %v112 = vrot.slane %v107, %v111
  %v114 = vadd.f32 %v85, %v112
  %v115 = vadd.f32 %v101, %v112
  %v116 = vadd.f32 %v88, %v112
  %v117 = vadd.f32 %v102, %v112
  %v118 = vadd.f32 %v93, %v112
  %v119 = vadd.f32 %v103, %v112
  %v120 = vld [vmem:[%s3] sm:$0xf]
  %v121 = vadd.f32 %v114, %v120
  %v122 = vadd.f32 %v115, %v120
  %v123 = vadd.f32 %v116, %v120
  %v124 = vadd.f32 %v117, %v120
  %v125 = vadd.f32 %v118, %v120
  %v126 = vadd.f32 %v119, %v120
  %vm127 = vcmask 257024
  %128 = vst.msk [vmem:[%s4] sm:$0xf] %vm127, %v121
  %129 = vst.msk [vmem:[%s4 + $0x4] sm:$0xf] %vm127, %v122
  %130 = vst.msk [vmem:[%s4 + $0x8] sm:$0xf] %vm127, %v123
  %131 = vst.msk [vmem:[%s4 + $0xc] sm:$0xf] %vm127, %v124
  %132 = vst.msk [vmem:[%s4 + $0x10] sm:$0xf] %vm127, %v125
  %133 = vst.msk [vmem:[%s4 + $0x14] sm:$0xf] %vm127, %v126
  // Predicated region
  $region18: #{gpt4mts_forward.16} parent=0 // pred_check
    _
  $region19: #{gpt4mts_forward.16} parent=0 // pred_check_branch
    %135 = sbr.rel (0) target = $region21
  $region20: #{gpt4mts_forward.16} parent=0 // pred_region
    _
  $region21: #{gpt4mts_forward.16} parent=0 // pred_fallthru
    _
  // Predicated region
  $region22: #{gpt4mts_forward.16} parent=0 // pred_check
    _
  $region23: #{gpt4mts_forward.16} parent=0 // pred_check_branch
    %137 = sbr.rel (0) target = $region25
  $region24: #{gpt4mts_forward.16} parent=0 // pred_region
    _
  $region25: #{gpt4mts_forward.16} parent=0 // pred_fallthru
    _

// kernel: gpt4mts_forward.17
$region0: #{gpt4mts_forward.17}
  #allocation0 [shape = 'u32[]', space=smem, size = 0x4, offset = 0x4, fixed_abs, tag = 'smem constant byte address 0x4 - core index']
  #allocation1 [shape = 'u32[144,128]{1,0:T(1,128)}', space=vmem, size = 0x12000, scoped, tag = 'internal scratch']
  %s0 = inlined_call_operand.vmem [shape: f32[24,32], index: 0, kind: input, shape index: {}]
  %s1 = inlined_call_operand.vmem [shape: f32[1,32], index: 1, kind: input, shape index: {}]
  %s2 = inlined_call_operand.vmem [shape: f32[1,32], index: 2, kind: input, shape index: {}]
  %s3 = inlined_call_operand.vmem [shape: bf16[32,96], index: 3, kind: input, shape index: {}]
  %s4 = inlined_call_operand.vmem [shape: f32[1,96], index: 4, kind: input, shape index: {}]
  %s5 = inlined_call_operand.vmem [shape: bf16[24,96], index: 5, kind: output, shape index: {}]
  %s6 = sld [smem:[#allocation0]]
  $region30: #{gpt4mts_forward.17} parent=0
    _
  %s8 = ssub.s32 1, %s6
  %s9 = scalar_select 0, %s8, %s6
  // Predicated region
  $region2: #{gpt4mts_forward.17} parent=0 // pred_check
    _
  $region3: #{gpt4mts_forward.17} parent=0 // pred_check_branch
    %11 = sbr.rel (0) target = $region5
  $region4: #{gpt4mts_forward.17} parent=0 // pred_region
    _
  $region5: #{gpt4mts_forward.17} parent=0 // pred_fallthru
    _
  // Predicated region
  $region6: #{gpt4mts_forward.17} parent=0 // pred_check
    _
  $region7: #{gpt4mts_forward.17} parent=0 // pred_check_branch
    %13 = sbr.rel (0) target = $region9
  $region8: #{gpt4mts_forward.17} parent=0 // pred_region
    _
  $region9: #{gpt4mts_forward.17} parent=0 // pred_fallthru
    _
  // Predicated region
  $region10: #{gpt4mts_forward.17} parent=0 // pred_check
    _
  $region11: #{gpt4mts_forward.17} parent=0 // pred_check_branch
    %15 = sbr.rel (0) target = $region13
  $region12: #{gpt4mts_forward.17} parent=0 // pred_region
    _
  $region13: #{gpt4mts_forward.17} parent=0 // pred_fallthru
    _
  // Predicated region
  $region14: #{gpt4mts_forward.17} parent=0 // pred_check
    _
  $region15: #{gpt4mts_forward.17} parent=0 // pred_check_branch
    %17 = sbr.rel (0) target = $region17
  $region16: #{gpt4mts_forward.17} parent=0 // pred_region
    _
  $region17: #{gpt4mts_forward.17} parent=0 // pred_fallthru
    _
  // Predicated region
  $region18: #{gpt4mts_forward.17} parent=0 // pred_check
    _
  $region19: #{gpt4mts_forward.17} parent=0 // pred_check_branch
    %19 = sbr.rel (0) target = $region21
  $region20: #{gpt4mts_forward.17} parent=0 // pred_region
    _
  $region21: #{gpt4mts_forward.17} parent=0 // pred_fallthru
    _
  %v21 = vld [vmem:[%s0] sm:$0xff]
  %v22 = vld [vmem:[%s0 + $0x8] sm:$0xff]
  %v23 = vld [vmem:[%s0 + $0x10] sm:$0xff]
  %vm24 = vcmask 261120
  %v25 = vsel %vm24, %v21, 0.0
  %26 = vadd.xlane.f32.xlu0 %v25
  %v27 = vpop.xlane.xlu0 %26
  %v28 = vsel %vm24, %v22, 0.0
  %29 = vadd.xlane.f32.xlu0 %v28
  %v30 = vpop.xlane.xlu0 %29
  %v31 = vsel %vm24, %v23, 0.0
  %32 = vadd.xlane.f32.xlu0 %v31
  %v33 = vpop.xlane.xlu0 %32
  %v34 = vrcp.pop 32.0
  %v35 = vmul.f32 %v27, %v34
  %v36 = vmul.f32 %v30, %v34
  %v37 = vmul.f32 %v33, %v34
  %v38 = vsub.f32 %v21, %v35
  %v39 = vsub.f32 %v22, %v36
  %v40 = vsub.f32 %v23, %v37
  %v41 = vmul.f32 %v38, %v38
  %v42 = vmul.f32 %v39, %v39
  %v43 = vmul.f32 %v40, %v40
  %v44 = vsel %vm24, %v41, 0.0
  %45 = vadd.xlane.f32.xlu0 %v44
  %v46 = vpop.xlane.xlu0 %45
  %v47 = vsel %vm24, %v42, 0.0
  %48 = vadd.xlane.f32.xlu0 %v47
  %v49 = vpop.xlane.xlu0 %48
  %v50 = vsel %vm24, %v43, 0.0
  %51 = vadd.xlane.f32.xlu0 %v50
  %v52 = vpop.xlane.xlu0 %51
  %v53 = vmul.f32 %v46, %v34
  %v54 = vmul.f32 %v49, %v34
  %v55 = vmul.f32 %v52, %v34
  %v56 = vadd.f32 %v53, 1e-05
  %v57 = vadd.f32 %v54, 1e-05
  %v58 = vadd.f32 %v55, 1e-05
  %v59 = vrsqrt.pop %v56
  %v60 = vrsqrt.pop %v57
  %v61 = vrsqrt.pop %v58
  %v62 = vmul.f32 %v38, %v59
  %v63 = vmul.f32 %v39, %v60
  %v64 = vmul.f32 %v40, %v61
  %v65 = vld [vmem:[%s1] sm:$0x1]
  %v67 = vlaneseq
  %v68 = vshrl.u32 %v67, 7
  %v69 = vsub.s32 0, %v68
  %v70 = vrot.slane %v65, %v69
  %v72 = vmul.f32 %v62, %v70
  %v73 = vmul.f32 %v63, %v70
  %v74 = vmul.f32 %v64, %v70
  %v75 = vld [vmem:[%s2] sm:$0x1]
  %v77 = vlaneseq
  %v78 = vshrl.u32 %v77, 7
  %v79 = vsub.s32 0, %v78
  %v80 = vrot.slane %v75, %v79
  %v82 = vadd.f32 %v72, %v80
  %v83 = vadd.f32 %v73, %v80
  %v84 = vadd.f32 %v74, %v80
  %v85 = vpack.c.bf16 %v83, %v82
  %v86 = vpack.c.bf16 %v84, %v84
  %v87 = vld [vmem:[%s3] sm:$0xf]
  %v88 = vld [vmem:[%s3 + $0x4] sm:$0xf]
  %v89 = vld [vmem:[%s3 + $0x8] sm:$0xf]
  %v90 = vld [vmem:[%s3 + $0xc] sm:$0xf]
  %v91 = vld [vmem:[%s4] sm:$0x1]
  %v93 = vlaneseq
  %v94 = vshrl.u32 %v93, 7
  %v95 = vsub.s32 0, %v94
  %v96 = vrot.slane %v91, %v95
  %v102 = vunpack.c.l.b16 %v87
  %v103 = vunpack.c.l.b16 %v88
  %v104 = vunpack.c.l.b16 %v89
  %v105 = vunpack.c.l.b16 %v90
  %v106 = vpack.c.b16 %v103, %v102
  %v107 = vpack.c.b16 %v105, %v104
  %v111 = vsel %vm24, %v85, 0
  %v114 = vsel %vm24, %v86, 0
  %116 = vmatprep.subr.bf16.mxu0 0
  %117 = vmatpush1.bf16.msra.mxu0 %v106
  %118 = vmatprep.subr.bf16.mxu0 0
  %119 = vmatpush1.bf16.msra.mxu0 %v107
  %120 = vmatprep.subr.bf16.mxu0 0
  %121 = vmatpush1.bf16.msra.mxu0 0
  %122 = vmatprep.subr.bf16.mxu0 0
  %123 = vmatpush1.bf16.msra.mxu0 0
  %124 = vmatprep.subr.bf16.mxu0 0
  %125 = vmatpush1.bf16.msra.mxu0 0
  %126 = vmatprep.subr.bf16.mxu0 0
  %127 = vmatpush1.bf16.msra.mxu0 0
  %128 = vmatprep.subr.bf16.mxu0 0
  %129 = vmatpush1.bf16.msra.mxu0 0
  %130 = vmatprep.subr.bf16.mxu0 0
  %131 = vmatpush1.bf16.msra.mxu0 0
  %132 = vmatprep.subr.bf16.mxu0 0
  %133 = vmatpush1.bf16.msra.mxu0 0
  %134 = vmatprep.subr.bf16.mxu0 0
  %135 = vmatpush1.bf16.msra.mxu0 0
  %136 = vmatprep.subr.bf16.mxu0 0
  %137 = vmatpush1.bf16.msra.mxu0 0
  %138 = vmatprep.subr.bf16.mxu0 0
  %139 = vmatpush1.bf16.msra.mxu0 0
  %140 = vmatprep.subr.bf16.mxu0 0
  %141 = vmatpush1.bf16.msra.mxu0 0
  %142 = vmatprep.subr.bf16.mxu0 0
  %143 = vmatpush1.bf16.msra.mxu0 0
  %144 = vmatprep.subr.bf16.mxu0 0
  %145 = vmatpush1.bf16.msra.mxu0 0
  %146 = vmatprep.subr.bf16.mxu0 0
  %147 = vmatpush1.bf16.msra.mxu0 0
  %148 = vmatprep.mubr.bf16.mxu0 0
  %149 = vmatmul.mubr.bf16.gmra.mrb[0].mxu0 %v111
  %v150 = vpop.f32.mrb[0].mxu0
  %v151 = vadd.f32 %v96, %v150
  %v152 = vpop.f32.mrb[0].mxu0
  %v153 = vpop.f32.mrb[0].mxu0
  %v154 = vadd.f32 %v96, %v153
  %v155 = vpop.f32.mrb[0].mxu0
  %156 = vmatprep.mubr.bf16.mxu0 0
  %157 = vmatmul.mubr.bf16.gmra.mrb[0].mxu0 %v114
  %v158 = vpop.f32.mrb[0].mxu0
  %v159 = vadd.f32 %v96, %v158
  %v160 = vpop.f32.mrb[0].mxu0
  %v161 = vpop.f32.mrb[0].mxu0
  %v162 = vpop.f32.mrb[0].mxu0
  %163 = vdwg.mxu0
  %v164 = vpack.c.bf16 %v154, %v151
  %v165 = vpack.c.bf16 %v159, %v159
  %v168 = vunpack.c.l.b16 %v164
  %v169 = vunpack.c.h.b16 %v164
  %v170 = vunpack.c.l.b16 %v165
  %v171 = vpack.c.b16 %v168, %v168
  %v172 = vpack.c.b16 %v169, %v169
  %v173 = vpack.c.b16 %v170, %v170
  %vm177 = vcmask 781312
  %178 = vst.msk [vmem:[%s5] sm:$0xf] %vm177, %v171
  %179 = vst.msk [vmem:[%s5 + $0x4] sm:$0xf] %vm177, %v172
  %180 = vst.msk [vmem:[%s5 + $0x8] sm:$0xf] %vm177, %v173
  // Predicated region
  $region22: #{gpt4mts_forward.17} parent=0 // pred_check
    _
  $region23: #{gpt4mts_forward.17} parent=0 // pred_check_branch
    %182 = sbr.rel (0) target = $region25
  $region24: #{gpt4mts_forward.17} parent=0 // pred_region
    _
  $region25: #{gpt4mts_forward.17} parent=0 // pred_fallthru
    _
  // Predicated region
  $region26: #{gpt4mts_forward.17} parent=0 // pred_check
    _
  $region27: #{gpt4mts_forward.17} parent=0 // pred_check_branch
    %184 = sbr.rel (0) target = $region29
  $region28: #{gpt4mts_forward.17} parent=0 // pred_region
    _
  $region29: #{gpt4mts_forward.17} parent=0 // pred_fallthru
    _

// kernel: gpt4mts_forward.19
$region0: #{gpt4mts_forward.19}
  #allocation0 [shape = 'u32[]', space=smem, size = 0x4, offset = 0x4, fixed_abs, tag = 'smem constant byte address 0x4 - core index']
  #allocation1 [shape = 'u32[144,128]{1,0:T(1,128)}', space=vmem, size = 0x12000, scoped, tag = 'internal scratch']
  %s0 = inlined_call_operand.vmem [shape: bf16[24,32], index: 0, kind: input, shape index: {}]
  %s1 = inlined_call_operand.vmem [shape: bf16[32,32], index: 1, kind: input, shape index: {}]
  %s2 = inlined_call_operand.vmem [shape: f32[1,32], index: 2, kind: input, shape index: {}]
  %s3 = inlined_call_operand.vmem [shape: f32[24,32], index: 3, kind: input, shape index: {}]
  %s4 = inlined_call_operand.vmem [shape: f32[24,32], index: 4, kind: output, shape index: {}]
  %s5 = sld [smem:[#allocation0]]
  $region26: #{gpt4mts_forward.19} parent=0
    _
  %s7 = ssub.s32 1, %s5
  %s8 = scalar_select 0, %s7, %s5
  // Predicated region
  $region2: #{gpt4mts_forward.19} parent=0 // pred_check
    _
  $region3: #{gpt4mts_forward.19} parent=0 // pred_check_branch
    %10 = sbr.rel (0) target = $region5
  $region4: #{gpt4mts_forward.19} parent=0 // pred_region
    _
  $region5: #{gpt4mts_forward.19} parent=0 // pred_fallthru
    _
  // Predicated region
  $region6: #{gpt4mts_forward.19} parent=0 // pred_check
    _
  $region7: #{gpt4mts_forward.19} parent=0 // pred_check_branch
    %12 = sbr.rel (0) target = $region9
  $region8: #{gpt4mts_forward.19} parent=0 // pred_region
    _
  $region9: #{gpt4mts_forward.19} parent=0 // pred_fallthru
    _
  // Predicated region
  $region10: #{gpt4mts_forward.19} parent=0 // pred_check
    _
  $region11: #{gpt4mts_forward.19} parent=0 // pred_check_branch
    %14 = sbr.rel (0) target = $region13
  $region12: #{gpt4mts_forward.19} parent=0 // pred_region
    _
  $region13: #{gpt4mts_forward.19} parent=0 // pred_fallthru
    _
  // Predicated region
  $region14: #{gpt4mts_forward.19} parent=0 // pred_check
    _
  $region15: #{gpt4mts_forward.19} parent=0 // pred_check_branch
    %16 = sbr.rel (0) target = $region17
  $region16: #{gpt4mts_forward.19} parent=0 // pred_region
    _
  $region17: #{gpt4mts_forward.19} parent=0 // pred_fallthru
    _
  %v18 = vld [vmem:[%s0] sm:$0xf]
  %v19 = vld [vmem:[%s0 + $0x4] sm:$0xf]
  %v20 = vld [vmem:[%s0 + $0x8] sm:$0xf]
  %v21 = vld [vmem:[%s1] sm:$0xf]
  %v22 = vld [vmem:[%s1 + $0x4] sm:$0xf]
  %v23 = vld [vmem:[%s1 + $0x8] sm:$0xf]
  %v24 = vld [vmem:[%s1 + $0xc] sm:$0xf]
  %v25 = vld [vmem:[%s2] sm:$0x1]
  %v27 = vlaneseq
  %v28 = vshrl.u32 %v27, 7
  %v29 = vsub.s32 0, %v28
  %v30 = vrot.slane %v25, %v29
  %v35 = vunpack.c.l.b16 %v18
  %v36 = vunpack.c.l.b16 %v19
  %v37 = vunpack.c.l.b16 %v20
  %v38 = vpack.c.b16 %v36, %v35
  %v39 = vpack.c.b16 %v37, %v37
  %v44 = vunpack.c.l.b16 %v21
  %v45 = vunpack.c.l.b16 %v22
  %v46 = vunpack.c.l.b16 %v23
  %v47 = vunpack.c.l.b16 %v24
  %v48 = vpack.c.b16 %v45, %v44
  %v49 = vpack.c.b16 %v47, %v46
  %vm52 = vcmask 261120
  %v54 = vsel %vm52, %v38, 0
  %v57 = vsel %vm52, %v39, 0
  %59 = vmatprep.subr.bf16.mxu0 0
  %60 = vmatpush1.bf16.msra.mxu0 %v48
  %61 = vmatprep.subr.bf16.mxu0 0
  %62 = vmatpush1.bf16.msra.mxu0 %v49
  %63 = vmatprep.subr.bf16.mxu0 0
  %64 = vmatpush1.bf16.msra.mxu0 0
  %65 = vmatprep.subr.bf16.mxu0 0
  %66 = vmatpush1.bf16.msra.mxu0 0
  %67 = vmatprep.subr.bf16.mxu0 0
  %68 = vmatpush1.bf16.msra.mxu0 0
  %69 = vmatprep.subr.bf16.mxu0 0
  %70 = vmatpush1.bf16.msra.mxu0 0
  %71 = vmatprep.subr.bf16.mxu0 0
  %72 = vmatpush1.bf16.msra.mxu0 0
  %73 = vmatprep.subr.bf16.mxu0 0
  %74 = vmatpush1.bf16.msra.mxu0 0
  %75 = vmatprep.subr.bf16.mxu0 0
  %76 = vmatpush1.bf16.msra.mxu0 0
  %77 = vmatprep.subr.bf16.mxu0 0
  %78 = vmatpush1.bf16.msra.mxu0 0
  %79 = vmatprep.subr.bf16.mxu0 0
  %80 = vmatpush1.bf16.msra.mxu0 0
  %81 = vmatprep.subr.bf16.mxu0 0
  %82 = vmatpush1.bf16.msra.mxu0 0
  %83 = vmatprep.subr.bf16.mxu0 0
  %84 = vmatpush1.bf16.msra.mxu0 0
  %85 = vmatprep.subr.bf16.mxu0 0
  %86 = vmatpush1.bf16.msra.mxu0 0
  %87 = vmatprep.subr.bf16.mxu0 0
  %88 = vmatpush1.bf16.msra.mxu0 0
  %89 = vmatprep.subr.bf16.mxu0 0
  %90 = vmatpush1.bf16.msra.mxu0 0
  %91 = vmatprep.mubr.bf16.mxu0 0
  %92 = vmatmul.mubr.bf16.gmra.mrb[0].mxu0 %v54
  %v93 = vpop.f32.mrb[0].mxu0
  %v94 = vadd.f32 %v30, %v93
  %v95 = vpop.f32.mrb[0].mxu0
  %v96 = vpop.f32.mrb[0].mxu0
  %v97 = vadd.f32 %v30, %v96
  %v98 = vpop.f32.mrb[0].mxu0
  %99 = vmatprep.mubr.bf16.mxu0 0
  %100 = vmatmul.mubr.bf16.gmra.mrb[0].mxu0 %v57
  %v101 = vpop.f32.mrb[0].mxu0
  %v102 = vadd.f32 %v30, %v101
  %v103 = vpop.f32.mrb[0].mxu0
  %v104 = vpop.f32.mrb[0].mxu0
  %v105 = vpop.f32.mrb[0].mxu0
  %106 = vdwg.mxu0
  %v107 = vld [vmem:[%s3] sm:$0xff]
  %v108 = vld [vmem:[%s3 + $0x8] sm:$0xff]
  %v109 = vld [vmem:[%s3 + $0x10] sm:$0xff]
  %v110 = vadd.f32 %v94, %v107
  %v111 = vadd.f32 %v97, %v108
  %v112 = vadd.f32 %v102, %v109
  %113 = vst.msk [vmem:[%s4] sm:$0xff] %vm52, %v110
  %114 = vst.msk [vmem:[%s4 + $0x8] sm:$0xff] %vm52, %v111
  %115 = vst.msk [vmem:[%s4 + $0x10] sm:$0xff] %vm52, %v112
  // Predicated region
  $region18: #{gpt4mts_forward.19} parent=0 // pred_check
    _
  $region19: #{gpt4mts_forward.19} parent=0 // pred_check_branch
    %117 = sbr.rel (0) target = $region21
  $region20: #{gpt4mts_forward.19} parent=0 // pred_region
    _
  $region21: #{gpt4mts_forward.19} parent=0 // pred_fallthru
    _
  // Predicated region
  $region22: #{gpt4mts_forward.19} parent=0 // pred_check
    _
  $region23: #{gpt4mts_forward.19} parent=0 // pred_check_branch
    %119 = sbr.rel (0) target = $region25
  $region24: #{gpt4mts_forward.19} parent=0 // pred_region
    _
  $region25: #{gpt4mts_forward.19} parent=0 // pred_fallthru
    _

// kernel: gpt4mts_forward.20
$region0: #{gpt4mts_forward.20}
  #allocation0 [shape = 'u32[]', space=smem, size = 0x4, offset = 0x4, fixed_abs, tag = 'smem constant byte address 0x4 - core index']
  #allocation1 [shape = 'u32[144,128]{1,0:T(1,128)}', space=vmem, size = 0x12000, scoped, tag = 'internal scratch']
  %s0 = inlined_call_operand.vmem [shape: f32[24,32], index: 0, kind: input, shape index: {}]
  %s1 = inlined_call_operand.vmem [shape: f32[1,32], index: 1, kind: input, shape index: {}]
  %s2 = inlined_call_operand.vmem [shape: f32[1,32], index: 2, kind: input, shape index: {}]
  %s3 = inlined_call_operand.vmem [shape: bf16[32,128], index: 3, kind: input, shape index: {}]
  %s4 = inlined_call_operand.vmem [shape: f32[1,128], index: 4, kind: input, shape index: {}]
  %s5 = inlined_call_operand.vmem [shape: bf16[24,128], index: 5, kind: output, shape index: {}]
  %s6 = sld [smem:[#allocation0]]
  $region30: #{gpt4mts_forward.20} parent=0
    _
  %s8 = ssub.s32 1, %s6
  %s9 = scalar_select 0, %s8, %s6
  // Predicated region
  $region2: #{gpt4mts_forward.20} parent=0 // pred_check
    _
  $region3: #{gpt4mts_forward.20} parent=0 // pred_check_branch
    %11 = sbr.rel (0) target = $region5
  $region4: #{gpt4mts_forward.20} parent=0 // pred_region
    _
  $region5: #{gpt4mts_forward.20} parent=0 // pred_fallthru
    _
  // Predicated region
  $region6: #{gpt4mts_forward.20} parent=0 // pred_check
    _
  $region7: #{gpt4mts_forward.20} parent=0 // pred_check_branch
    %13 = sbr.rel (0) target = $region9
  $region8: #{gpt4mts_forward.20} parent=0 // pred_region
    _
  $region9: #{gpt4mts_forward.20} parent=0 // pred_fallthru
    _
  // Predicated region
  $region10: #{gpt4mts_forward.20} parent=0 // pred_check
    _
  $region11: #{gpt4mts_forward.20} parent=0 // pred_check_branch
    %15 = sbr.rel (0) target = $region13
  $region12: #{gpt4mts_forward.20} parent=0 // pred_region
    _
  $region13: #{gpt4mts_forward.20} parent=0 // pred_fallthru
    _
  // Predicated region
  $region14: #{gpt4mts_forward.20} parent=0 // pred_check
    _
  $region15: #{gpt4mts_forward.20} parent=0 // pred_check_branch
    %17 = sbr.rel (0) target = $region17
  $region16: #{gpt4mts_forward.20} parent=0 // pred_region
    _
  $region17: #{gpt4mts_forward.20} parent=0 // pred_fallthru
    _
  // Predicated region
  $region18: #{gpt4mts_forward.20} parent=0 // pred_check
    _
  $region19: #{gpt4mts_forward.20} parent=0 // pred_check_branch
    %19 = sbr.rel (0) target = $region21
  $region20: #{gpt4mts_forward.20} parent=0 // pred_region
    _
  $region21: #{gpt4mts_forward.20} parent=0 // pred_fallthru
    _
  %v21 = vld [vmem:[%s0] sm:$0xff]
  %v22 = vld [vmem:[%s0 + $0x8] sm:$0xff]
  %v23 = vld [vmem:[%s0 + $0x10] sm:$0xff]
  %vm24 = vcmask 261120
  %v25 = vsel %vm24, %v21, 0.0
  %26 = vadd.xlane.f32.xlu0 %v25
  %v27 = vpop.xlane.xlu0 %26
  %v28 = vsel %vm24, %v22, 0.0
  %29 = vadd.xlane.f32.xlu0 %v28
  %v30 = vpop.xlane.xlu0 %29
  %v31 = vsel %vm24, %v23, 0.0
  %32 = vadd.xlane.f32.xlu0 %v31
  %v33 = vpop.xlane.xlu0 %32
  %v34 = vrcp.pop 32.0
  %v35 = vmul.f32 %v27, %v34
  %v36 = vmul.f32 %v30, %v34
  %v37 = vmul.f32 %v33, %v34
  %v38 = vsub.f32 %v21, %v35
  %v39 = vsub.f32 %v22, %v36
  %v40 = vsub.f32 %v23, %v37
  %v41 = vmul.f32 %v38, %v38
  %v42 = vmul.f32 %v39, %v39
  %v43 = vmul.f32 %v40, %v40
  %v44 = vsel %vm24, %v41, 0.0
  %45 = vadd.xlane.f32.xlu0 %v44
  %v46 = vpop.xlane.xlu0 %45
  %v47 = vsel %vm24, %v42, 0.0
  %48 = vadd.xlane.f32.xlu0 %v47
  %v49 = vpop.xlane.xlu0 %48
  %v50 = vsel %vm24, %v43, 0.0
  %51 = vadd.xlane.f32.xlu0 %v50
  %v52 = vpop.xlane.xlu0 %51
  %v53 = vmul.f32 %v46, %v34
  %v54 = vmul.f32 %v49, %v34
  %v55 = vmul.f32 %v52, %v34
  %v56 = vadd.f32 %v53, 1e-05
  %v57 = vadd.f32 %v54, 1e-05
  %v58 = vadd.f32 %v55, 1e-05
  %v59 = vrsqrt.pop %v56
  %v60 = vrsqrt.pop %v57
  %v61 = vrsqrt.pop %v58
  %v62 = vmul.f32 %v38, %v59
  %v63 = vmul.f32 %v39, %v60
  %v64 = vmul.f32 %v40, %v61
  %v65 = vld [vmem:[%s1] sm:$0x1]
  %v67 = vlaneseq
  %v68 = vshrl.u32 %v67, 7
  %v69 = vsub.s32 0, %v68
  %v70 = vrot.slane %v65, %v69
  %v72 = vmul.f32 %v62, %v70
  %v73 = vmul.f32 %v63, %v70
  %v74 = vmul.f32 %v64, %v70
  %v75 = vld [vmem:[%s2] sm:$0x1]
  %v77 = vlaneseq
  %v78 = vshrl.u32 %v77, 7
  %v79 = vsub.s32 0, %v78
  %v80 = vrot.slane %v75, %v79
  %v82 = vadd.f32 %v72, %v80
  %v83 = vadd.f32 %v73, %v80
  %v84 = vadd.f32 %v74, %v80
  %v85 = vpack.c.bf16 %v83, %v82
  %v86 = vpack.c.bf16 %v84, %v84
  %v87 = vld [vmem:[%s3] sm:$0xf]
  %v88 = vld [vmem:[%s3 + $0x4] sm:$0xf]
  %v89 = vld [vmem:[%s3 + $0x8] sm:$0xf]
  %v90 = vld [vmem:[%s3 + $0xc] sm:$0xf]
  %v91 = vld [vmem:[%s4] sm:$0x1]
  %v93 = vlaneseq
  %v94 = vshrl.u32 %v93, 7
  %v95 = vsub.s32 0, %v94
  %v96 = vrot.slane %v91, %v95
  %v102 = vunpack.c.l.b16 %v87
  %v103 = vunpack.c.l.b16 %v88
  %v104 = vunpack.c.l.b16 %v89
  %v105 = vunpack.c.l.b16 %v90
  %v106 = vpack.c.b16 %v103, %v102
  %v107 = vpack.c.b16 %v105, %v104
  %v111 = vsel %vm24, %v85, 0
  %v114 = vsel %vm24, %v86, 0
  %116 = vmatprep.subr.bf16.mxu0 0
  %117 = vmatpush1.bf16.msra.mxu0 %v106
  %118 = vmatprep.subr.bf16.mxu0 0
  %119 = vmatpush1.bf16.msra.mxu0 %v107
  %120 = vmatprep.subr.bf16.mxu0 0
  %121 = vmatpush1.bf16.msra.mxu0 0
  %122 = vmatprep.subr.bf16.mxu0 0
  %123 = vmatpush1.bf16.msra.mxu0 0
  %124 = vmatprep.subr.bf16.mxu0 0
  %125 = vmatpush1.bf16.msra.mxu0 0
  %126 = vmatprep.subr.bf16.mxu0 0
  %127 = vmatpush1.bf16.msra.mxu0 0
  %128 = vmatprep.subr.bf16.mxu0 0
  %129 = vmatpush1.bf16.msra.mxu0 0
  %130 = vmatprep.subr.bf16.mxu0 0
  %131 = vmatpush1.bf16.msra.mxu0 0
  %132 = vmatprep.subr.bf16.mxu0 0
  %133 = vmatpush1.bf16.msra.mxu0 0
  %134 = vmatprep.subr.bf16.mxu0 0
  %135 = vmatpush1.bf16.msra.mxu0 0
  %136 = vmatprep.subr.bf16.mxu0 0
  %137 = vmatpush1.bf16.msra.mxu0 0
  %138 = vmatprep.subr.bf16.mxu0 0
  %139 = vmatpush1.bf16.msra.mxu0 0
  %140 = vmatprep.subr.bf16.mxu0 0
  %141 = vmatpush1.bf16.msra.mxu0 0
  %142 = vmatprep.subr.bf16.mxu0 0
  %143 = vmatpush1.bf16.msra.mxu0 0
  %144 = vmatprep.subr.bf16.mxu0 0
  %145 = vmatpush1.bf16.msra.mxu0 0
  %146 = vmatprep.subr.bf16.mxu0 0
  %147 = vmatpush1.bf16.msra.mxu0 0
  %148 = vmatprep.mubr.bf16.mxu0 0
  %149 = vmatmul.mubr.bf16.gmra.mrb[0].mxu0 %v111
  %v150 = vpop.f32.mrb[0].mxu0
  %v151 = vadd.f32 %v96, %v150
  %v152 = vpop.f32.mrb[0].mxu0
  %v153 = vpop.f32.mrb[0].mxu0
  %v154 = vadd.f32 %v96, %v153
  %v155 = vpop.f32.mrb[0].mxu0
  %156 = vmatprep.mubr.bf16.mxu0 0
  %157 = vmatmul.mubr.bf16.gmra.mrb[0].mxu0 %v114
  %v158 = vpop.f32.mrb[0].mxu0
  %v159 = vadd.f32 %v96, %v158
  %v160 = vpop.f32.mrb[0].mxu0
  %v161 = vpop.f32.mrb[0].mxu0
  %v162 = vpop.f32.mrb[0].mxu0
  %163 = vdwg.mxu0
  %v164 = vmul.f32 %v151, 0.5
  %v165 = vmul.f32 %v154, 0.5
  %v166 = vmul.f32 %v159, 0.5
  %v167 = vmul.f32 %v151, 0.044715
  %v168 = vmul.f32 %v154, 0.044715
  %v169 = vmul.f32 %v159, 0.044715
  %v170 = vmul.f32 %v167, %v151
  %v171 = vmul.f32 %v168, %v154
  %v172 = vmul.f32 %v169, %v159
  %v173 = vmul.f32 %v170, %v151
  %v174 = vmul.f32 %v171, %v154
  %v175 = vmul.f32 %v172, %v159
  %v176 = vadd.f32 %v151, %v173
  %v177 = vadd.f32 %v154, %v174
  %v178 = vadd.f32 %v159, %v175
  %v179 = vmul.f32 %v176, 0.7978846
  %v180 = vmul.f32 %v177, 0.7978846
  %v181 = vmul.f32 %v178, 0.7978846
  %v182 = vtanh.pop %v179
  %v183 = vtanh.pop %v180
  %v184 = vtanh.pop %v181
  %v185 = vadd.f32 %v182, 1.0
  %v186 = vadd.f32 %v183, 1.0
  %v187 = vadd.f32 %v184, 1.0
  %v188 = vmul.f32 %v164, %v185
  %v189 = vmul.f32 %v165, %v186
  %v190 = vmul.f32 %v166, %v187
  %v191 = vpack.c.bf16 %v189, %v188
  %v192 = vpack.c.bf16 %v190, %v190
  %v195 = vunpack.c.l.b16 %v191
  %v196 = vunpack.c.h.b16 %v191
  %v197 = vunpack.c.l.b16 %v192
  %v198 = vpack.c.b16 %v195, %v195
  %v199 = vpack.c.b16 %v196, %v196
  %v200 = vpack.c.b16 %v197, %v197
  %204 = vst [vmem:[%s5] sm:$0xf] %v198
  %205 = vst [vmem:[%s5 + $0x4] sm:$0xf] %v199
  %206 = vst [vmem:[%s5 + $0x8] sm:$0xf] %v200
  // Predicated region
  $region22: #{gpt4mts_forward.20} parent=0 // pred_check
    _
  $region23: #{gpt4mts_forward.20} parent=0 // pred_check_branch
    %208 = sbr.rel (0) target = $region25
  $region24: #{gpt4mts_forward.20} parent=0 // pred_region
    _
  $region25: #{gpt4mts_forward.20} parent=0 // pred_fallthru
    _
  // Predicated region
  $region26: #{gpt4mts_forward.20} parent=0 // pred_check
    _
  $region27: #{gpt4mts_forward.20} parent=0 // pred_check_branch
    %210 = sbr.rel (0) target = $region29
  $region28: #{gpt4mts_forward.20} parent=0 // pred_region
    _
  $region29: #{gpt4mts_forward.20} parent=0 // pred_fallthru
    _

// kernel: gpt4mts_forward.18
$region0: #{gpt4mts_forward.18}
  #allocation0 [shape = 'u32[]', space=smem, size = 0x4, offset = 0x4, fixed_abs, tag = 'smem constant byte address 0x4 - core index']
  #allocation1 [shape = 'u32[144,128]{1,0:T(1,128)}', space=vmem, size = 0x12000, scoped, tag = 'internal scratch']
  %s0 = inlined_call_operand.vmem [shape: bf16[6,4,96], index: 0, kind: input, shape index: {}]
  %s1 = inlined_call_operand.vmem [shape: bf16[6,4,32], index: 1, kind: output, shape index: {}]
  %s2 = sld [smem:[#allocation0]]
  $region37: #{gpt4mts_forward.18} parent=0
    _
  %s4 = ssub.s32 1, %s2
  %s5 = scalar_select 0, %s4, %s2
  loop: start=0, step=1, limit=5
  $region2: #{gpt4mts_forward.18} parent=0 // loop_pre_header
    _
  $region3: #{gpt4mts_forward.18} parent=0 // loop_header
    %s7 = sphi 0, %s11
    %p8 = scmp.ge.s32.totalorder %s7, 5
    %s17 = sphi 0, %s19
    %s20 = sphi 0, %s17
    %s21 = sphi 0, %s20
    %s37 = sphi 0, %s21
    %s43 = sphi 0, %s45
    %s46 = sphi 0, %s43
    %s47 = sphi 0, %s46
    %s63 = sphi 0, %s47
  $region4: #{gpt4mts_forward.18} parent=0 // loop_header_branch
    %10 = sbr.rel (%p8) target = $region8
  $region5: #{gpt4mts_forward.18} parent=0 // loop_body
    %s12 = ssub.s32 %s7, 1
    %s13 = ssub.s32 %s7, 2
    %s14 = sadd.s32 %s7, 1
    %s15 = ssub.s32 %s7, %s14
    %p16 = scmp.eq.s32.totalorder %s15, 0
    %s18 = sadd.s32 %s17, 1
    %s19 = scalar_select %p16, %s17, %s18
    %p22 = pneg %p16
    %p23 = scmp.eq.s32.totalorder %s7, 2
    %p24 = por %p22, %p23
    %p25 = scmp.ne.s32.totalorder %s17, %s20
    %p26 = scmp.eq.s32.totalorder %s7, 0
    %p27 = por %p25, %p26
    %p28 = scmp.ne.s32.totalorder %s17, %s20
    %p29 = scmp.eq.s32.totalorder %s12, 2
    %p30 = por %p28, %p29
    %p31 = scmp.ne.s32.totalorder %s20, %s21
    %p32 = scmp.eq.s32.totalorder %s12, 0
    %p33 = por %p31, %p32
    %p34 = scmp.ne.s32.totalorder %s20, %s21
    %p35 = scmp.eq.s32.totalorder %s13, 2
    %p36 = por %p34, %p35
    %p38 = scmp.ne.s32.totalorder %s21, %s37
    %p39 = scmp.eq.s32.totalorder %s13, 0
    %p40 = por %p38, %p39
    %s41 = ssub.s32 %s7, %s14
    %p42 = scmp.eq.s32.totalorder %s41, 0
    %s44 = sadd.s32 %s43, 1
    %s45 = scalar_select %p42, %s43, %s44
    %p48 = pneg %p42
    %p49 = scmp.eq.s32.totalorder %s7, 2
    %p50 = por %p48, %p49
    %p51 = scmp.ne.s32.totalorder %s43, %s46
    %p52 = scmp.eq.s32.totalorder %s7, 0
    %p53 = por %p51, %p52
    %p54 = scmp.ne.s32.totalorder %s43, %s46
    %p55 = scmp.eq.s32.totalorder %s12, 2
    %p56 = por %p54, %p55
    %p57 = scmp.ne.s32.totalorder %s46, %s47
    %p58 = scmp.eq.s32.totalorder %s12, 0
    %p59 = por %p57, %p58
    %p60 = scmp.ne.s32.totalorder %s46, %s47
    %p61 = scmp.eq.s32.totalorder %s13, 2
    %p62 = por %p60, %p61
    %p64 = scmp.ne.s32.totalorder %s47, %s63
    %p65 = scmp.eq.s32.totalorder %s13, 0
    %p66 = por %p64, %p65
    %p67 = scmp.le.s32.totalorder 1, %s7
    %p68 = scmp.lt.s32.totalorder %s7, 4
    %p69 = pnand %p67, %p68
    %p70 = pneg %p69
    // Predicated region
    $region9: #{gpt4mts_forward.18} parent=5 // pred_check
      _
    $region10: #{gpt4mts_forward.18} parent=5 // pred_check_branch
      %72 = sbr.rel (%p69) target = $region12
    $region11: #{gpt4mts_forward.18} parent=5 // pred_region
      %s73 = ssub.s32 %s7, 1
    $region12: #{gpt4mts_forward.18} parent=5 // pred_fallthru
      _
    %p74 = scmp.lt.s32.totalorder %s7, 3
    // Predicated region
    $region13: #{gpt4mts_forward.18} parent=5 // pred_check
      %p75 = pneg %p74
    $region14: #{gpt4mts_forward.18} parent=5 // pred_check_branch
      %77 = sbr.rel (%p75) target = $region16
    $region15: #{gpt4mts_forward.18} parent=5 // pred_region
      // Predicated region
      $region17: #{gpt4mts_forward.18} parent=15 // pred_check
        %p78 = pneg %p27
      $region18: #{gpt4mts_forward.18} parent=15 // pred_check_branch
        %80 = sbr.rel (%p78) target = $region20
      $region19: #{gpt4mts_forward.18} parent=15 // pred_region
        %s81 = smul.u32 2, %s7
        %p82 = scmp.lt.s32.totalorder %s81, 5
        %s83 = scalar_select %p82, %s81, 5
        %s84 = smul.addr %s83, 2
        %s85 = scalar_lea.vmem %s0, %s84
        %s86 = smul.u32 2, %s7
      $region20: #{gpt4mts_forward.18} parent=15 // pred_fallthru
        _
    $region16: #{gpt4mts_forward.18} parent=5 // pred_fallthru
      _
    %p87 = scmp.le.s32.totalorder 1, %s7
    %p88 = scmp.lt.s32.totalorder %s7, 4
    %p89 = pnand %p87, %p88
    %p90 = pneg %p89
    // Predicated region
    $region21: #{gpt4mts_forward.18} parent=5 // pred_check
      _
    $region22: #{gpt4mts_forward.18} parent=5 // pred_check_branch
      %92 = sbr.rel (%p89) target = $region24
    $region23: #{gpt4mts_forward.18} parent=5 // pred_region
      %s93 = ssub.s32 %s7, 1
      %s94 = smul.u32 2, %s12
      %p95 = scmp.lt.s32.totalorder %s94, 5
      %s96 = scalar_select %p95, %s94, 5
      %s97 = smul.addr %s96, 2
      %s98 = scalar_lea.vmem %s0, %s97
      %p99 = pneg %p33
      %p100 = pneg %p30
      %p101 = pneg %p59
      %p102 = pneg %p56
      %s103 = smul.u32 2, %s12
      %p104 = scmp.lt.s32.totalorder %s103, 5
      %s105 = scalar_select %p104, %s103, 5
      %s106 = smul.addr %s105, 2
      %s107 = scalar_lea.vmem %s1, %s106
      %s108 = smul.u32 2, %s12
      %p109 = scmp.lt.s32.totalorder %s108, 5
      %s110 = scalar_select %p109, %s108, 5
      %s111 = smul.addr %s110, 2
      %s112 = scalar_lea.vmem %s0, %s111
      %s113 = smul.u32 2, %s12
      %s114 = smul.u32 2, %s12
      %p115 = scmp.lt.s32.totalorder %s114, 5
      %s116 = scalar_select %p115, %s114, 5
      %s117 = smul.addr %s116, 2
      %s118 = scalar_lea.vmem %s1, %s117
      %s119 = smul.u32 2, %s12
      %v121 = vlaneseq
      %v122 = vshrl.u32 %v121, 7
      %v123 = vlaneseq
      %v124 = vand.u32 %v123, 127
      %vm125 = vcmp.le.s32.totalorder %v124, %v122
      %v126 = vld [vmem:[%s112] sm:$0x3]
      %v127 = vld [vmem:[%s112 + $0x2] sm:$0x3]
      %v130 = vunpack.c.l.s4 1983009808
      %v131 = vunpack.c.0.s8 %v130
      %v132 = vlaneseq
      %v133 = vshrl.u32 %v132, 7
      %v134 = vsub.s32 %v131, %v133
      %v135 = vrot.slane %v126, %v134
      %136 = vrot.lane.b32.xlu0 %v135, 96
      %v137 = vpop.permute.xlu0 %136
      %vm138 = vcmask 64512
      %v140 = vsel %vm138, %v126, 0
      %v143 = vsel %vm138, %v137, 0
      %145 = vmatprep.subr.bf16.mxu0 0
      %146 = vmatpush1.bf16.xpose.msra.mxu0 %v143
      %147 = vmatprep.subr.bf16.mxu0 0
      %148 = vmatpush1.bf16.xpose.msra.mxu0 0
      %149 = vmatprep.subr.bf16.mxu0 0
      %150 = vmatpush1.bf16.xpose.msra.mxu0 0
      %151 = vmatprep.subr.bf16.mxu0 0
      %152 = vmatpush1.bf16.xpose.msra.mxu0 0
      %153 = vmatprep.subr.bf16.mxu0 0
      %154 = vmatpush1.bf16.xpose.msra.mxu0 0
      %155 = vmatprep.subr.bf16.mxu0 0
      %156 = vmatpush1.bf16.xpose.msra.mxu0 0
      %157 = vmatprep.subr.bf16.mxu0 0
      %158 = vmatpush1.bf16.xpose.msra.mxu0 0
      %159 = vmatprep.subr.bf16.mxu0 0
      %160 = vmatpush1.bf16.xpose.msra.mxu0 0
      %161 = vmatprep.subr.bf16.mxu0 0
      %162 = vmatpush1.bf16.xpose.msra.mxu0 0
      %163 = vmatprep.subr.bf16.mxu0 0
      %164 = vmatpush1.bf16.xpose.msra.mxu0 0
      %165 = vmatprep.subr.bf16.mxu0 0
      %166 = vmatpush1.bf16.xpose.msra.mxu0 0
      %167 = vmatprep.subr.bf16.mxu0 0
      %168 = vmatpush1.bf16.xpose.msra.mxu0 0
      %169 = vmatprep.subr.bf16.mxu0 0
      %170 = vmatpush1.bf16.xpose.msra.mxu0 0
      %171 = vmatprep.subr.bf16.mxu0 0
      %172 = vmatpush1.bf16.xpose.msra.mxu0 0
      %173 = vmatprep.subr.bf16.mxu0 0
      %174 = vmatpush1.bf16.xpose.msra.mxu0 0
      %175 = vmatprep.subr.bf16.mxu0 0
      %176 = vmatpush1.bf16.xpose.msra.mxu0 0
      %177 = vmatprep.mubr.bf16.mxu0 0
      %178 = vmatmul.mubr.bf16.gmra.mrb[0].mxu0 %v140
      %v179 = vpop.f32.mrb[0].mxu0
      %v180 = vadd.f32 0.0, %v179
      %v181 = vpop.f32.mrb[0].mxu0
      %v182 = vpop.f32.mrb[0].mxu0
      %v183 = vpop.f32.mrb[0].mxu0
      %184 = vdwg.mxu0
      %v187 = vunpack.c.l.s4 1983009808
      %v188 = vunpack.c.0.s8 %v187
      %v189 = vlaneseq
      %v190 = vshrl.u32 %v189, 7
      %v191 = vsub.s32 %v188, %v190
      %v192 = vrot.slane %v127, %v191
      %193 = vrot.lane.b32.xlu0 %v192, 96
      %v194 = vpop.permute.xlu0 %193
      %v196 = vsel %vm138, %v127, 0
      %v199 = vsel %vm138, %v194, 0
      %201 = vmatprep.subr.bf16.mxu0 0
      %202 = vmatpush1.bf16.xpose.msra.mxu0 %v199
      %203 = vmatprep.subr.bf16.mxu0 0
      %204 = vmatpush1.bf16.xpose.msra.mxu0 0
      %205 = vmatprep.subr.bf16.mxu0 0
      %206 = vmatpush1.bf16.xpose.msra.mxu0 0
      %207 = vmatprep.subr.bf16.mxu0 0
      %208 = vmatpush1.bf16.xpose.msra.mxu0 0
      %209 = vmatprep.subr.bf16.mxu0 0
      %210 = vmatpush1.bf16.xpose.msra.mxu0 0
      %211 = vmatprep.subr.bf16.mxu0 0
      %212 = vmatpush1.bf16.xpose.msra.mxu0 0
      %213 = vmatprep.subr.bf16.mxu0 0
      %214 = vmatpush1.bf16.xpose.msra.mxu0 0
      %215 = vmatprep.subr.bf16.mxu0 0
      %216 = vmatpush1.bf16.xpose.msra.mxu0 0
      %217 = vmatprep.subr.bf16.mxu0 0
      %218 = vmatpush1.bf16.xpose.msra.mxu0 0
      %219 = vmatprep.subr.bf16.mxu0 0
      %220 = vmatpush1.bf16.xpose.msra.mxu0 0
      %221 = vmatprep.subr.bf16.mxu0 0
      %222 = vmatpush1.bf16.xpose.msra.mxu0 0
      %223 = vmatprep.subr.bf16.mxu0 0
      %224 = vmatpush1.bf16.xpose.msra.mxu0 0
      %225 = vmatprep.subr.bf16.mxu0 0
      %226 = vmatpush1.bf16.xpose.msra.mxu0 0
      %227 = vmatprep.subr.bf16.mxu0 0
      %228 = vmatpush1.bf16.xpose.msra.mxu0 0
      %229 = vmatprep.subr.bf16.mxu0 0
      %230 = vmatpush1.bf16.xpose.msra.mxu0 0
      %231 = vmatprep.subr.bf16.mxu0 0
      %232 = vmatpush1.bf16.xpose.msra.mxu0 0
      %233 = vmatprep.mubr.bf16.mxu0 0
      %234 = vmatmul.mubr.bf16.gmra.mrb[0].mxu0 %v196
      %v235 = vpop.f32.mrb[0].mxu0
      %v236 = vadd.f32 0.0, %v235
      %v237 = vpop.f32.mrb[0].mxu0
      %v238 = vpop.f32.mrb[0].mxu0
      %v239 = vpop.f32.mrb[0].mxu0
      %240 = vdwg.mxu0
      %v241 = vmul.f32 %v180, 0.35355338
      %v242 = vmul.f32 %v236, 0.35355338
      %v243 = vsel %vm125, 1, 0
      %vm244 = vcmp.eq.s32.totalorder %v243, 1
      %v245 = vsel %vm244, %v241, -1e+30
      %v246 = vsel %vm244, %v242, -1e+30
      %vm247 = vcmask 27648
      %v248 = vsel %vm247, %v245, -inf
      %249 = vmax.xlane.f32.xlu0 %v248
      %v250 = vpop.xlane.xlu0 %249
      %v251 = vsel %vm247, %v246, -inf
      %252 = vmax.xlane.f32.xlu0 %v251
      %v253 = vpop.xlane.xlu0 %252
      %v254 = vsub.f32 %v245, %v250
      %v255 = vsub.f32 %v246, %v253
      %v256 = vmul.f32 %v254, 1.442695
      %v257 = vpow.pop %v256
      %v258 = vmul.f32 %v255, 1.442695
      %v259 = vpow.pop %v258
      %v260 = vsel %vm247, %v257, 0.0
      %261 = vadd.xlane.f32.xlu0 %v260
      %v262 = vpop.xlane.xlu0 %261
      %v263 = vsel %vm247, %v259, 0.0
      %264 = vadd.xlane.f32.xlu0 %v263
      %v265 = vpop.xlane.xlu0 %264
      %v266 = vrcp.pop %v262
      %v267 = vrcp.pop %v265
      %v268 = vmul.f32 %v257, %v266
      %v269 = vmul.f32 %v259, %v267
      %v270 = vpack.c.bf16 %v268, %v268
      %v271 = vpack.c.bf16 %v269, %v269
      %272 = vrot.lane.b32.xlu0 %v135, 64
      %v273 = vpop.permute.xlu0 %272
      %vm274 = vcmask 31744
      %v276 = vsel %vm274, %v270, 0
      %vm278 = vcmask 1041408
      %v280 = vsel %vm278, %v273, 0
      %282 = vmatprep.subr.bf16.mxu0 0
      %283 = vmatpush1.bf16.msra.mxu0 %v280
      %284 = vmatprep.subr.bf16.mxu0 0
      %285 = vmatpush1.bf16.msra.mxu0 0
      %286 = vmatprep.subr.bf16.mxu0 0
      %287 = vmatpush1.bf16.msra.mxu0 0
      %288 = vmatprep.subr.bf16.mxu0 0
      %289 = vmatpush1.bf16.msra.mxu0 0
      %290 = vmatprep.subr.bf16.mxu0 0
      %291 = vmatpush1.bf16.msra.mxu0 0
      %292 = vmatprep.subr.bf16.mxu0 0
      %293 = vmatpush1.bf16.msra.mxu0 0
      %294 = vmatprep.subr.bf16.mxu0 0
      %295 = vmatpush1.bf16.msra.mxu0 0
      %296 = vmatprep.subr.bf16.mxu0 0
      %297 = vmatpush1.bf16.msra.mxu0 0
      %298 = vmatprep.subr.bf16.mxu0 0
      %299 = vmatpush1.bf16.msra.mxu0 0
      %300 = vmatprep.subr.bf16.mxu0 0
      %301 = vmatpush1.bf16.msra.mxu0 0
      %302 = vmatprep.subr.bf16.mxu0 0
      %303 = vmatpush1.bf16.msra.mxu0 0
      %304 = vmatprep.subr.bf16.mxu0 0
      %305 = vmatpush1.bf16.msra.mxu0 0
      %306 = vmatprep.subr.bf16.mxu0 0
      %307 = vmatpush1.bf16.msra.mxu0 0
      %308 = vmatprep.subr.bf16.mxu0 0
      %309 = vmatpush1.bf16.msra.mxu0 0
      %310 = vmatprep.subr.bf16.mxu0 0
      %311 = vmatpush1.bf16.msra.mxu0 0
      %312 = vmatprep.subr.bf16.mxu0 0
      %313 = vmatpush1.bf16.msra.mxu0 0
      %314 = vmatprep.mubr.bf16.mxu0 0
      %315 = vmatmul.mubr.bf16.gmra.mrb[0].mxu0 %v276
      %v316 = vpop.f32.mrb[0].mxu0
      %v317 = vadd.f32 0.0, %v316
      %v318 = vpop.f32.mrb[0].mxu0
      %v319 = vpop.f32.mrb[0].mxu0
      %v320 = vpop.f32.mrb[0].mxu0
      %321 = vdwg.mxu0
      %322 = vrot.lane.b32.xlu0 %v192, 64
      %v323 = vpop.permute.xlu0 %322
      %v325 = vsel %vm274, %v271, 0
      %v328 = vsel %vm278, %v323, 0
      %330 = vmatprep.subr.bf16.mxu0 0
      %331 = vmatpush1.bf16.msra.mxu0 %v328
      %332 = vmatprep.subr.bf16.mxu0 0
      %333 = vmatpush1.bf16.msra.mxu0 0
      %334 = vmatprep.subr.bf16.mxu0 0
      %335 = vmatpush1.bf16.msra.mxu0 0
      %336 = vmatprep.subr.bf16.mxu0 0
      %337 = vmatpush1.bf16.msra.mxu0 0
      %338 = vmatprep.subr.bf16.mxu0 0
      %339 = vmatpush1.bf16.msra.mxu0 0
      %340 = vmatprep.subr.bf16.mxu0 0
      %341 = vmatpush1.bf16.msra.mxu0 0
      %342 = vmatprep.subr.bf16.mxu0 0
      %343 = vmatpush1.bf16.msra.mxu0 0
      %344 = vmatprep.subr.bf16.mxu0 0
      %345 = vmatpush1.bf16.msra.mxu0 0
      %346 = vmatprep.subr.bf16.mxu0 0
      %347 = vmatpush1.bf16.msra.mxu0 0
      %348 = vmatprep.subr.bf16.mxu0 0
      %349 = vmatpush1.bf16.msra.mxu0 0
      %350 = vmatprep.subr.bf16.mxu0 0
      %351 = vmatpush1.bf16.msra.mxu0 0
      %352 = vmatprep.subr.bf16.mxu0 0
      %353 = vmatpush1.bf16.msra.mxu0 0
      %354 = vmatprep.subr.bf16.mxu0 0
      %355 = vmatpush1.bf16.msra.mxu0 0
      %356 = vmatprep.subr.bf16.mxu0 0
      %357 = vmatpush1.bf16.msra.mxu0 0
      %358 = vmatprep.subr.bf16.mxu0 0
      %359 = vmatpush1.bf16.msra.mxu0 0
      %360 = vmatprep.subr.bf16.mxu0 0
      %361 = vmatpush1.bf16.msra.mxu0 0
      %362 = vmatprep.mubr.bf16.mxu0 0
      %363 = vmatmul.mubr.bf16.gmra.mrb[0].mxu0 %v325
      %v364 = vpop.f32.mrb[0].mxu0
      %v365 = vadd.f32 0.0, %v364
      %v366 = vpop.f32.mrb[0].mxu0
      %v367 = vpop.f32.mrb[0].mxu0
      %v368 = vpop.f32.mrb[0].mxu0
      %369 = vdwg.mxu0
      %v370 = vpack.c.bf16 %v317, %v317
      %v371 = vpack.c.bf16 %v365, %v365
      %vm372 = vcmask 58368
      %373 = vst.msk [vmem:[%s118] sm:$0x3] %vm372, %v370
      %374 = vst.msk [vmem:[%s118 + $0x2] sm:$0x3] %vm372, %v371
      %v375 = vld [vmem:[%s112] sm:$0x3]
      %v376 = vld [vmem:[%s112 + $0x2] sm:$0x3]
      %v379 = vunpack.c.l.s4 1983009808
      %v380 = vunpack.c.0.s8 %v379
      %v381 = vlaneseq
      %v382 = vshrl.u32 %v381, 7
      %v383 = vsub.s32 %v380, %v382
      %v384 = vrot.slane %v375, %v383
      %385 = vrot.lane.b32.xlu0 %v384, 120
      %v386 = vpop.permute.xlu0 %385
      %387 = vrot.lane.b32.xlu0 %v384, 88
      %v388 = vpop.permute.xlu0 %387
      %v390 = vsel %vm138, %v386, 0
      %v393 = vsel %vm138, %v388, 0
      %395 = vmatprep.subr.bf16.mxu0 0
      %396 = vmatpush1.bf16.xpose.msra.mxu0 %v393
      %397 = vmatprep.subr.bf16.mxu0 0
      %398 = vmatpush1.bf16.xpose.msra.mxu0 0
      %399 = vmatprep.subr.bf16.mxu0 0
      %400 = vmatpush1.bf16.xpose.msra.mxu0 0
      %401 = vmatprep.subr.bf16.mxu0 0
      %402 = vmatpush1.bf16.xpose.msra.mxu0 0
      %403 = vmatprep.subr.bf16.mxu0 0
      %404 = vmatpush1.bf16.xpose.msra.mxu0 0
      %405 = vmatprep.subr.bf16.mxu0 0
      %406 = vmatpush1.bf16.xpose.msra.mxu0 0
      %407 = vmatprep.subr.bf16.mxu0 0
      %408 = vmatpush1.bf16.xpose.msra.mxu0 0
      %409 = vmatprep.subr.bf16.mxu0 0
      %410 = vmatpush1.bf16.xpose.msra.mxu0 0
      %411 = vmatprep.subr.bf16.mxu0 0
      %412 = vmatpush1.bf16.xpose.msra.mxu0 0
      %413 = vmatprep.subr.bf16.mxu0 0
      %414 = vmatpush1.bf16.xpose.msra.mxu0 0
      %415 = vmatprep.subr.bf16.mxu0 0
      %416 = vmatpush1.bf16.xpose.msra.mxu0 0
      %417 = vmatprep.subr.bf16.mxu0 0
      %418 = vmatpush1.bf16.xpose.msra.mxu0 0
      %419 = vmatprep.subr.bf16.mxu0 0
      %420 = vmatpush1.bf16.xpose.msra.mxu0 0
      %421 = vmatprep.subr.bf16.mxu0 0
      %422 = vmatpush1.bf16.xpose.msra.mxu0 0
      %423 = vmatprep.subr.bf16.mxu0 0
      %424 = vmatpush1.bf16.xpose.msra.mxu0 0
      %425 = vmatprep.subr.bf16.mxu0 0
      %426 = vmatpush1.bf16.xpose.msra.mxu0 0
      %427 = vmatprep.mubr.bf16.mxu0 0
      %428 = vmatmul.mubr.bf16.gmra.mrb[0].mxu0 %v390
      %v429 = vpop.f32.mrb[0].mxu0
      %v430 = vadd.f32 0.0, %v429
      %v431 = vpop.f32.mrb[0].mxu0
      %v432 = vpop.f32.mrb[0].mxu0
      %v433 = vpop.f32.mrb[0].mxu0
      %434 = vdwg.mxu0
      %v437 = vunpack.c.l.s4 1983009808
      %v438 = vunpack.c.0.s8 %v437
      %v439 = vlaneseq
      %v440 = vshrl.u32 %v439, 7
      %v441 = vsub.s32 %v438, %v440
      %v442 = vrot.slane %v376, %v441
      %443 = vrot.lane.b32.xlu0 %v442, 120
      %v444 = vpop.permute.xlu0 %443
      %445 = vrot.lane.b32.xlu0 %v442, 88
      %v446 = vpop.permute.xlu0 %445
      %v448 = vsel %vm138, %v444, 0
      %v451 = vsel %vm138, %v446, 0
      %453 = vmatprep.subr.bf16.mxu0 0
      %454 = vmatpush1.bf16.xpose.msra.mxu0 %v451
      %455 = vmatprep.subr.bf16.mxu0 0
      %456 = vmatpush1.bf16.xpose.msra.mxu0 0
      %457 = vmatprep.subr.bf16.mxu0 0
      %458 = vmatpush1.bf16.xpose.msra.mxu0 0
      %459 = vmatprep.subr.bf16.mxu0 0
      %460 = vmatpush1.bf16.xpose.msra.mxu0 0
      %461 = vmatprep.subr.bf16.mxu0 0
      %462 = vmatpush1.bf16.xpose.msra.mxu0 0
      %463 = vmatprep.subr.bf16.mxu0 0
      %464 = vmatpush1.bf16.xpose.msra.mxu0 0
      %465 = vmatprep.subr.bf16.mxu0 0
      %466 = vmatpush1.bf16.xpose.msra.mxu0 0
      %467 = vmatprep.subr.bf16.mxu0 0
      %468 = vmatpush1.bf16.xpose.msra.mxu0 0
      %469 = vmatprep.subr.bf16.mxu0 0
      %470 = vmatpush1.bf16.xpose.msra.mxu0 0
      %471 = vmatprep.subr.bf16.mxu0 0
      %472 = vmatpush1.bf16.xpose.msra.mxu0 0
      %473 = vmatprep.subr.bf16.mxu0 0
      %474 = vmatpush1.bf16.xpose.msra.mxu0 0
      %475 = vmatprep.subr.bf16.mxu0 0
      %476 = vmatpush1.bf16.xpose.msra.mxu0 0
      %477 = vmatprep.subr.bf16.mxu0 0
      %478 = vmatpush1.bf16.xpose.msra.mxu0 0
      %479 = vmatprep.subr.bf16.mxu0 0
      %480 = vmatpush1.bf16.xpose.msra.mxu0 0
      %481 = vmatprep.subr.bf16.mxu0 0
      %482 = vmatpush1.bf16.xpose.msra.mxu0 0
      %483 = vmatprep.subr.bf16.mxu0 0
      %484 = vmatpush1.bf16.xpose.msra.mxu0 0
      %485 = vmatprep.mubr.bf16.mxu0 0
      %486 = vmatmul.mubr.bf16.gmra.mrb[0].mxu0 %v448
      %v487 = vpop.f32.mrb[0].mxu0
      %v488 = vadd.f32 0.0, %v487
      %v489 = vpop.f32.mrb[0].mxu0
      %v490 = vpop.f32.mrb[0].mxu0
      %v491 = vpop.f32.mrb[0].mxu0
      %492 = vdwg.mxu0
      %v493 = vmul.f32 %v430, 0.35355338
      %v494 = vmul.f32 %v488, 0.35355338
      %v495 = vsel %vm244, %v493, -1e+30
      %v496 = vsel %vm244, %v494, -1e+30
      %v497 = vsel %vm247, %v495, -inf
      %498 = vmax.xlane.f32.xlu0 %v497
      %v499 = vpop.xlane.xlu0 %498
      %v500 = vsel %vm247, %v496, -inf
      %501 = vmax.xlane.f32.xlu0 %v500
      %v502 = vpop.xlane.xlu0 %501
      %v503 = vsub.f32 %v495, %v499
      %v504 = vsub.f32 %v496, %v502
      %v505 = vmul.f32 %v503, 1.442695
      %v506 = vpow.pop %v505
      %v507 = vmul.f32 %v504, 1.442695
      %v508 = vpow.pop %v507
      %v509 = vsel %vm247, %v506, 0.0
      %510 = vadd.xlane.f32.xlu0 %v509
      %v511 = vpop.xlane.xlu0 %510
      %v512 = vsel %vm247, %v508, 0.0
      %513 = vadd.xlane.f32.xlu0 %v512
      %v514 = vpop.xlane.xlu0 %513
      %v515 = vrcp.pop %v511
      %v516 = vrcp.pop %v514
      %v517 = vmul.f32 %v506, %v515
      %v518 = vmul.f32 %v508, %v516
      %v519 = vpack.c.bf16 %v517, %v517
      %v520 = vpack.c.bf16 %v518, %v518
      %521 = vrot.lane.b32.xlu0 %v384, 56
      %v522 = vpop.permute.xlu0 %521
      %v524 = vsel %vm274, %v519, 0
      %v527 = vsel %vm278, %v522, 0
      %529 = vmatprep.subr.bf16.mxu0 0
      %530 = vmatpush1.bf16.msra.mxu0 %v527
      %531 = vmatprep.subr.bf16.mxu0 0
      %532 = vmatpush1.bf16.msra.mxu0 0
      %533 = vmatprep.subr.bf16.mxu0 0
      %534 = vmatpush1.bf16.msra.mxu0 0
      %535 = vmatprep.subr.bf16.mxu0 0
      %536 = vmatpush1.bf16.msra.mxu0 0
      %537 = vmatprep.subr.bf16.mxu0 0
      %538 = vmatpush1.bf16.msra.mxu0 0
      %539 = vmatprep.subr.bf16.mxu0 0
      %540 = vmatpush1.bf16.msra.mxu0 0
      %541 = vmatprep.subr.bf16.mxu0 0
      %542 = vmatpush1.bf16.msra.mxu0 0
      %543 = vmatprep.subr.bf16.mxu0 0
      %544 = vmatpush1.bf16.msra.mxu0 0
      %545 = vmatprep.subr.bf16.mxu0 0
      %546 = vmatpush1.bf16.msra.mxu0 0
      %547 = vmatprep.subr.bf16.mxu0 0
      %548 = vmatpush1.bf16.msra.mxu0 0
      %549 = vmatprep.subr.bf16.mxu0 0
      %550 = vmatpush1.bf16.msra.mxu0 0
      %551 = vmatprep.subr.bf16.mxu0 0
      %552 = vmatpush1.bf16.msra.mxu0 0
      %553 = vmatprep.subr.bf16.mxu0 0
      %554 = vmatpush1.bf16.msra.mxu0 0
      %555 = vmatprep.subr.bf16.mxu0 0
      %556 = vmatpush1.bf16.msra.mxu0 0
      %557 = vmatprep.subr.bf16.mxu0 0
      %558 = vmatpush1.bf16.msra.mxu0 0
      %559 = vmatprep.subr.bf16.mxu0 0
      %560 = vmatpush1.bf16.msra.mxu0 0
      %561 = vmatprep.mubr.bf16.mxu0 0
      %562 = vmatmul.mubr.bf16.gmra.mrb[0].mxu0 %v524
      %v563 = vpop.f32.mrb[0].mxu0
      %v564 = vadd.f32 0.0, %v563
      %v565 = vpop.f32.mrb[0].mxu0
      %v566 = vpop.f32.mrb[0].mxu0
      %v567 = vpop.f32.mrb[0].mxu0
      %568 = vdwg.mxu0
      %569 = vrot.lane.b32.xlu0 %v442, 56
      %v570 = vpop.permute.xlu0 %569
      %v572 = vsel %vm274, %v520, 0
      %v575 = vsel %vm278, %v570, 0
      %577 = vmatprep.subr.bf16.mxu0 0
      %578 = vmatpush1.bf16.msra.mxu0 %v575
      %579 = vmatprep.subr.bf16.mxu0 0
      %580 = vmatpush1.bf16.msra.mxu0 0
      %581 = vmatprep.subr.bf16.mxu0 0
      %582 = vmatpush1.bf16.msra.mxu0 0
      %583 = vmatprep.subr.bf16.mxu0 0
      %584 = vmatpush1.bf16.msra.mxu0 0
      %585 = vmatprep.subr.bf16.mxu0 0
      %586 = vmatpush1.bf16.msra.mxu0 0
      %587 = vmatprep.subr.bf16.mxu0 0
      %588 = vmatpush1.bf16.msra.mxu0 0
      %589 = vmatprep.subr.bf16.mxu0 0
      %590 = vmatpush1.bf16.msra.mxu0 0
      %591 = vmatprep.subr.bf16.mxu0 0
      %592 = vmatpush1.bf16.msra.mxu0 0
      %593 = vmatprep.subr.bf16.mxu0 0
      %594 = vmatpush1.bf16.msra.mxu0 0
      %595 = vmatprep.subr.bf16.mxu0 0
      %596 = vmatpush1.bf16.msra.mxu0 0
      %597 = vmatprep.subr.bf16.mxu0 0
      %598 = vmatpush1.bf16.msra.mxu0 0
      %599 = vmatprep.subr.bf16.mxu0 0
      %600 = vmatpush1.bf16.msra.mxu0 0
      %601 = vmatprep.subr.bf16.mxu0 0
      %602 = vmatpush1.bf16.msra.mxu0 0
      %603 = vmatprep.subr.bf16.mxu0 0
      %604 = vmatpush1.bf16.msra.mxu0 0
      %605 = vmatprep.subr.bf16.mxu0 0
      %606 = vmatpush1.bf16.msra.mxu0 0
      %607 = vmatprep.subr.bf16.mxu0 0
      %608 = vmatpush1.bf16.msra.mxu0 0
      %609 = vmatprep.mubr.bf16.mxu0 0
      %610 = vmatmul.mubr.bf16.gmra.mrb[0].mxu0 %v572
      %v611 = vpop.f32.mrb[0].mxu0
      %v612 = vadd.f32 0.0, %v611
      %v613 = vpop.f32.mrb[0].mxu0
      %v614 = vpop.f32.mrb[0].mxu0
      %v615 = vpop.f32.mrb[0].mxu0
      %616 = vdwg.mxu0
      %v617 = vpack.c.bf16 %v564, %v564
      %v618 = vpack.c.bf16 %v612, %v612
      %v622 = vunpack.c.l.s4 1983009808
      %v623 = vunpack.c.0.s8 %v622
      %v624 = vlaneseq
      %v625 = vshrl.u32 %v624, 7
      %v626 = vsub.s32 %v623, %v625
      %v627 = vrot.slane %v617, %v626
      %v629 = vunpack.c.l.s4 1983009808
      %v630 = vunpack.c.0.s8 %v629
      %v631 = vlaneseq
      %v632 = vshrl.u32 %v631, 7
      %v633 = vsub.s32 %v630, %v632
      %v634 = vrot.slane %v618, %v633
      %635 = vrot.lane.b32.xlu0 %v627, 8
      %v636 = vpop.permute.xlu0 %635
      %637 = vrot.lane.b32.xlu0 %v634, 8
      %v638 = vpop.permute.xlu0 %637
      %vm641 = vcmask 123968
      %642 = vst.msk [vmem:[%s118] sm:$0x3] %vm641, %v636
      %643 = vst.msk [vmem:[%s118 + $0x2] sm:$0x3] %vm641, %v638
      %v644 = vld [vmem:[%s112] sm:$0x3]
      %v645 = vld [vmem:[%s112 + $0x2] sm:$0x3]
      %v648 = vunpack.c.l.s4 1983009808
      %v649 = vunpack.c.0.s8 %v648
      %v650 = vlaneseq
      %v651 = vshrl.u32 %v650, 7
      %v652 = vsub.s32 %v649, %v651
      %v653 = vrot.slane %v644, %v652
      %654 = vrot.lane.b32.xlu0 %v653, 112
      %v655 = vpop.permute.xlu0 %654
      %656 = vrot.lane.b32.xlu0 %v653, 80
      %v657 = vpop.permute.xlu0 %656
      %v659 = vsel %vm138, %v655, 0
      %v662 = vsel %vm138, %v657, 0
      %664 = vmatprep.subr.bf16.mxu0 0
      %665 = vmatpush1.bf16.xpose.msra.mxu0 %v662
      %666 = vmatprep.subr.bf16.mxu0 0
      %667 = vmatpush1.bf16.xpose.msra.mxu0 0
      %668 = vmatprep.subr.bf16.mxu0 0
      %669 = vmatpush1.bf16.xpose.msra.mxu0 0
      %670 = vmatprep.subr.bf16.mxu0 0
      %671 = vmatpush1.bf16.xpose.msra.mxu0 0
      %672 = vmatprep.subr.bf16.mxu0 0
      %673 = vmatpush1.bf16.xpose.msra.mxu0 0
      %674 = vmatprep.subr.bf16.mxu0 0
      %675 = vmatpush1.bf16.xpose.msra.mxu0 0
      %676 = vmatprep.subr.bf16.mxu0 0
      %677 = vmatpush1.bf16.xpose.msra.mxu0 0
      %678 = vmatprep.subr.bf16.mxu0 0
      %679 = vmatpush1.bf16.xpose.msra.mxu0 0
      %680 = vmatprep.subr.bf16.mxu0 0
      %681 = vmatpush1.bf16.xpose.msra.mxu0 0
      %682 = vmatprep.subr.bf16.mxu0 0
      %683 = vmatpush1.bf16.xpose.msra.mxu0 0
      %684 = vmatprep.subr.bf16.mxu0 0
      %685 = vmatpush1.bf16.xpose.msra.mxu0 0
      %686 = vmatprep.subr.bf16.mxu0 0
      %687 = vmatpush1.bf16.xpose.msra.mxu0 0
      %688 = vmatprep.subr.bf16.mxu0 0
      %689 = vmatpush1.bf16.xpose.msra.mxu0 0
      %690 = vmatprep.subr.bf16.mxu0 0
      %691 = vmatpush1.bf16.xpose.msra.mxu0 0
      %692 = vmatprep.subr.bf16.mxu0 0
      %693 = vmatpush1.bf16.xpose.msra.mxu0 0
      %694 = vmatprep.subr.bf16.mxu0 0
      %695 = vmatpush1.bf16.xpose.msra.mxu0 0
      %696 = vmatprep.mubr.bf16.mxu0 0
      %697 = vmatmul.mubr.bf16.gmra.mrb[0].mxu0 %v659
      %v698 = vpop.f32.mrb[0].mxu0
      %v699 = vadd.f32 0.0, %v698
      %v700 = vpop.f32.mrb[0].mxu0
      %v701 = vpop.f32.mrb[0].mxu0
      %v702 = vpop.f32.mrb[0].mxu0
      %703 = vdwg.mxu0
      %v706 = vunpack.c.l.s4 1983009808
      %v707 = vunpack.c.0.s8 %v706
      %v708 = vlaneseq
      %v709 = vshrl.u32 %v708, 7
      %v710 = vsub.s32 %v707, %v709
      %v711 = vrot.slane %v645, %v710
      %712 = vrot.lane.b32.xlu0 %v711, 112
      %v713 = vpop.permute.xlu0 %712
      %714 = vrot.lane.b32.xlu0 %v711, 80
      %v715 = vpop.permute.xlu0 %714
      %v717 = vsel %vm138, %v713, 0
      %v720 = vsel %vm138, %v715, 0
      %722 = vmatprep.subr.bf16.mxu0 0
      %723 = vmatpush1.bf16.xpose.msra.mxu0 %v720
      %724 = vmatprep.subr.bf16.mxu0 0
      %725 = vmatpush1.bf16.xpose.msra.mxu0 0
      %726 = vmatprep.subr.bf16.mxu0 0
      %727 = vmatpush1.bf16.xpose.msra.mxu0 0
      %728 = vmatprep.subr.bf16.mxu0 0
      %729 = vmatpush1.bf16.xpose.msra.mxu0 0
      %730 = vmatprep.subr.bf16.mxu0 0
      %731 = vmatpush1.bf16.xpose.msra.mxu0 0
      %732 = vmatprep.subr.bf16.mxu0 0
      %733 = vmatpush1.bf16.xpose.msra.mxu0 0
      %734 = vmatprep.subr.bf16.mxu0 0
      %735 = vmatpush1.bf16.xpose.msra.mxu0 0
      %736 = vmatprep.subr.bf16.mxu0 0
      %737 = vmatpush1.bf16.xpose.msra.mxu0 0
      %738 = vmatprep.subr.bf16.mxu0 0
      %739 = vmatpush1.bf16.xpose.msra.mxu0 0
      %740 = vmatprep.subr.bf16.mxu0 0
      %741 = vmatpush1.bf16.xpose.msra.mxu0 0
      %742 = vmatprep.subr.bf16.mxu0 0
      %743 = vmatpush1.bf16.xpose.msra.mxu0 0
      %744 = vmatprep.subr.bf16.mxu0 0
      %745 = vmatpush1.bf16.xpose.msra.mxu0 0
      %746 = vmatprep.subr.bf16.mxu0 0
      %747 = vmatpush1.bf16.xpose.msra.mxu0 0
      %748 = vmatprep.subr.bf16.mxu0 0
      %749 = vmatpush1.bf16.xpose.msra.mxu0 0
      %750 = vmatprep.subr.bf16.mxu0 0
      %751 = vmatpush1.bf16.xpose.msra.mxu0 0
      %752 = vmatprep.subr.bf16.mxu0 0
      %753 = vmatpush1.bf16.xpose.msra.mxu0 0
      %754 = vmatprep.mubr.bf16.mxu0 0
      %755 = vmatmul.mubr.bf16.gmra.mrb[0].mxu0 %v717
      %v756 = vpop.f32.mrb[0].mxu0
      %v757 = vadd.f32 0.0, %v756
      %v758 = vpop.f32.mrb[0].mxu0
      %v759 = vpop.f32.mrb[0].mxu0
      %v760 = vpop.f32.mrb[0].mxu0
      %761 = vdwg.mxu0
      %v762 = vmul.f32 %v699, 0.35355338
      %v763 = vmul.f32 %v757, 0.35355338
      %v764 = vsel %vm244, %v762, -1e+30
      %v765 = vsel %vm244, %v763, -1e+30
      %v766 = vsel %vm247, %v764, -inf
      %767 = vmax.xlane.f32.xlu0 %v766
      %v768 = vpop.xlane.xlu0 %767
      %v769 = vsel %vm247, %v765, -inf
      %770 = vmax.xlane.f32.xlu0 %v769
      %v771 = vpop.xlane.xlu0 %770
      %v772 = vsub.f32 %v764, %v768
      %v773 = vsub.f32 %v765, %v771
      %v774 = vmul.f32 %v772, 1.442695
      %v775 = vpow.pop %v774
      %v776 = vmul.f32 %v773, 1.442695
      %v777 = vpow.pop %v776
      %v778 = vsel %vm247, %v775, 0.0
      %779 = vadd.xlane.f32.xlu0 %v778
      %v780 = vpop.xlane.xlu0 %779
      %v781 = vsel %vm247, %v777, 0.0
      %782 = vadd.xlane.f32.xlu0 %v781
      %v783 = vpop.xlane.xlu0 %782
      %v784 = vrcp.pop %v780
      %v785 = vrcp.pop %v783
      %v786 = vmul.f32 %v775, %v784
      %v787 = vmul.f32 %v777, %v785
      %v788 = vpack.c.bf16 %v786, %v786
      %v789 = vpack.c.bf16 %v787, %v787
      %790 = vrot.lane.b32.xlu0 %v653, 48
      %v791 = vpop.permute.xlu0 %790
      %v793 = vsel %vm274, %v788, 0
      %v796 = vsel %vm278, %v791, 0
      %798 = vmatprep.subr.bf16.mxu0 0
      %799 = vmatpush1.bf16.msra.mxu0 %v796
      %800 = vmatprep.subr.bf16.mxu0 0
      %801 = vmatpush1.bf16.msra.mxu0 0
      %802 = vmatprep.subr.bf16.mxu0 0
      %803 = vmatpush1.bf16.msra.mxu0 0
      %804 = vmatprep.subr.bf16.mxu0 0
      %805 = vmatpush1.bf16.msra.mxu0 0
      %806 = vmatprep.subr.bf16.mxu0 0
      %807 = vmatpush1.bf16.msra.mxu0 0
      %808 = vmatprep.subr.bf16.mxu0 0
      %809 = vmatpush1.bf16.msra.mxu0 0
      %810 = vmatprep.subr.bf16.mxu0 0
      %811 = vmatpush1.bf16.msra.mxu0 0
      %812 = vmatprep.subr.bf16.mxu0 0
      %813 = vmatpush1.bf16.msra.mxu0 0
      %814 = vmatprep.subr.bf16.mxu0 0
      %815 = vmatpush1.bf16.msra.mxu0 0
      %816 = vmatprep.subr.bf16.mxu0 0
      %817 = vmatpush1.bf16.msra.mxu0 0
      %818 = vmatprep.subr.bf16.mxu0 0
      %819 = vmatpush1.bf16.msra.mxu0 0
      %820 = vmatprep.subr.bf16.mxu0 0
      %821 = vmatpush1.bf16.msra.mxu0 0
      %822 = vmatprep.subr.bf16.mxu0 0
      %823 = vmatpush1.bf16.msra.mxu0 0
      %824 = vmatprep.subr.bf16.mxu0 0
      %825 = vmatpush1.bf16.msra.mxu0 0
      %826 = vmatprep.subr.bf16.mxu0 0
      %827 = vmatpush1.bf16.msra.mxu0 0
      %828 = vmatprep.subr.bf16.mxu0 0
      %829 = vmatpush1.bf16.msra.mxu0 0
      %830 = vmatprep.mubr.bf16.mxu0 0
      %831 = vmatmul.mubr.bf16.gmra.mrb[0].mxu0 %v793
      %v832 = vpop.f32.mrb[0].mxu0
      %v833 = vadd.f32 0.0, %v832
      %v834 = vpop.f32.mrb[0].mxu0
      %v835 = vpop.f32.mrb[0].mxu0
      %v836 = vpop.f32.mrb[0].mxu0
      %837 = vdwg.mxu0
      %838 = vrot.lane.b32.xlu0 %v711, 48
      %v839 = vpop.permute.xlu0 %838
      %v841 = vsel %vm274, %v789, 0
      %v844 = vsel %vm278, %v839, 0
      %846 = vmatprep.subr.bf16.mxu0 0
      %847 = vmatpush1.bf16.msra.mxu0 %v844
      %848 = vmatprep.subr.bf16.mxu0 0
      %849 = vmatpush1.bf16.msra.mxu0 0
      %850 = vmatprep.subr.bf16.mxu0 0
      %851 = vmatpush1.bf16.msra.mxu0 0
      %852 = vmatprep.subr.bf16.mxu0 0
      %853 = vmatpush1.bf16.msra.mxu0 0
      %854 = vmatprep.subr.bf16.mxu0 0
      %855 = vmatpush1.bf16.msra.mxu0 0
      %856 = vmatprep.subr.bf16.mxu0 0
      %857 = vmatpush1.bf16.msra.mxu0 0
      %858 = vmatprep.subr.bf16.mxu0 0
      %859 = vmatpush1.bf16.msra.mxu0 0
      %860 = vmatprep.subr.bf16.mxu0 0
      %861 = vmatpush1.bf16.msra.mxu0 0
      %862 = vmatprep.subr.bf16.mxu0 0
      %863 = vmatpush1.bf16.msra.mxu0 0
      %864 = vmatprep.subr.bf16.mxu0 0
      %865 = vmatpush1.bf16.msra.mxu0 0
      %866 = vmatprep.subr.bf16.mxu0 0
      %867 = vmatpush1.bf16.msra.mxu0 0
      %868 = vmatprep.subr.bf16.mxu0 0
      %869 = vmatpush1.bf16.msra.mxu0 0
      %870 = vmatprep.subr.bf16.mxu0 0
      %871 = vmatpush1.bf16.msra.mxu0 0
      %872 = vmatprep.subr.bf16.mxu0 0
      %873 = vmatpush1.bf16.msra.mxu0 0
      %874 = vmatprep.subr.bf16.mxu0 0
      %875 = vmatpush1.bf16.msra.mxu0 0
      %876 = vmatprep.subr.bf16.mxu0 0
      %877 = vmatpush1.bf16.msra.mxu0 0
      %878 = vmatprep.mubr.bf16.mxu0 0
      %879 = vmatmul.mubr.bf16.gmra.mrb[0].mxu0 %v841
      %v880 = vpop.f32.mrb[0].mxu0
      %v881 = vadd.f32 0.0, %v880
      %v882 = vpop.f32.mrb[0].mxu0
      %v883 = vpop.f32.mrb[0].mxu0
      %v884 = vpop.f32.mrb[0].mxu0
      %885 = vdwg.mxu0
      %v886 = vpack.c.bf16 %v833, %v833
      %v887 = vpack.c.bf16 %v881, %v881
      %v891 = vunpack.c.l.s4 1983009808
      %v892 = vunpack.c.0.s8 %v891
      %v893 = vlaneseq
      %v894 = vshrl.u32 %v893, 7
      %v895 = vsub.s32 %v892, %v894
      %v896 = vrot.slane %v886, %v895
      %v898 = vunpack.c.l.s4 1983009808
      %v899 = vunpack.c.0.s8 %v898
      %v900 = vlaneseq
      %v901 = vshrl.u32 %v900, 7
      %v902 = vsub.s32 %v899, %v901
      %v903 = vrot.slane %v887, %v902
      %904 = vrot.lane.b32.xlu0 %v896, 16
      %v905 = vpop.permute.xlu0 %904
      %906 = vrot.lane.b32.xlu0 %v903, 16
      %v907 = vpop.permute.xlu0 %906
      %vm910 = vcmask 189568
      %911 = vst.msk [vmem:[%s118] sm:$0x3] %vm910, %v905
      %912 = vst.msk [vmem:[%s118 + $0x2] sm:$0x3] %vm910, %v907
      %v913 = vld [vmem:[%s112] sm:$0x3]
      %v914 = vld [vmem:[%s112 + $0x2] sm:$0x3]
      %v917 = vunpack.c.l.s4 1983009808
      %v918 = vunpack.c.0.s8 %v917
      %v919 = vlaneseq
      %v920 = vshrl.u32 %v919, 7
      %v921 = vsub.s32 %v918, %v920
      %v922 = vrot.slane %v913, %v921
      %923 = vrot.lane.b32.xlu0 %v922, 104
      %v924 = vpop.permute.xlu0 %923
      %925 = vrot.lane.b32.xlu0 %v922, 72
      %v926 = vpop.permute.xlu0 %925
      %v928 = vsel %vm138, %v924, 0
      %v931 = vsel %vm138, %v926, 0
      %933 = vmatprep.subr.bf16.mxu0 0
      %934 = vmatpush1.bf16.xpose.msra.mxu0 %v931
      %935 = vmatprep.subr.bf16.mxu0 0
      %936 = vmatpush1.bf16.xpose.msra.mxu0 0
      %937 = vmatprep.subr.bf16.mxu0 0
      %938 = vmatpush1.bf16.xpose.msra.mxu0 0
      %939 = vmatprep.subr.bf16.mxu0 0
      %940 = vmatpush1.bf16.xpose.msra.mxu0 0
      %941 = vmatprep.subr.bf16.mxu0 0
      %942 = vmatpush1.bf16.xpose.msra.mxu0 0
      %943 = vmatprep.subr.bf16.mxu0 0
      %944 = vmatpush1.bf16.xpose.msra.mxu0 0
      %945 = vmatprep.subr.bf16.mxu0 0
      %946 = vmatpush1.bf16.xpose.msra.mxu0 0
      %947 = vmatprep.subr.bf16.mxu0 0
      %948 = vmatpush1.bf16.xpose.msra.mxu0 0
      %949 = vmatprep.subr.bf16.mxu0 0
      %950 = vmatpush1.bf16.xpose.msra.mxu0 0
      %951 = vmatprep.subr.bf16.mxu0 0
      %952 = vmatpush1.bf16.xpose.msra.mxu0 0
      %953 = vmatprep.subr.bf16.mxu0 0
      %954 = vmatpush1.bf16.xpose.msra.mxu0 0
      %955 = vmatprep.subr.bf16.mxu0 0
      %956 = vmatpush1.bf16.xpose.msra.mxu0 0
      %957 = vmatprep.subr.bf16.mxu0 0
      %958 = vmatpush1.bf16.xpose.msra.mxu0 0
      %959 = vmatprep.subr.bf16.mxu0 0
      %960 = vmatpush1.bf16.xpose.msra.mxu0 0
      %961 = vmatprep.subr.bf16.mxu0 0
      %962 = vmatpush1.bf16.xpose.msra.mxu0 0
      %963 = vmatprep.subr.bf16.mxu0 0
      %964 = vmatpush1.bf16.xpose.msra.mxu0 0
      %965 = vmatprep.mubr.bf16.mxu0 0
      %966 = vmatmul.mubr.bf16.gmra.mrb[0].mxu0 %v928
      %v967 = vpop.f32.mrb[0].mxu0
      %v968 = vadd.f32 0.0, %v967
      %v969 = vpop.f32.mrb[0].mxu0
      %v970 = vpop.f32.mrb[0].mxu0
      %v971 = vpop.f32.mrb[0].mxu0
      %972 = vdwg.mxu0
      %v975 = vunpack.c.l.s4 1983009808
      %v976 = vunpack.c.0.s8 %v975
      %v977 = vlaneseq
      %v978 = vshrl.u32 %v977, 7
      %v979 = vsub.s32 %v976, %v978
      %v980 = vrot.slane %v914, %v979
      %981 = vrot.lane.b32.xlu0 %v980, 104
      %v982 = vpop.permute.xlu0 %981
      %983 = vrot.lane.b32.xlu0 %v980, 72
      %v984 = vpop.permute.xlu0 %983
      %v986 = vsel %vm138, %v982, 0
      %v989 = vsel %vm138, %v984, 0
      %991 = vmatprep.subr.bf16.mxu0 0
      %992 = vmatpush1.bf16.xpose.msra.mxu0 %v989
      %993 = vmatprep.subr.bf16.mxu0 0
      %994 = vmatpush1.bf16.xpose.msra.mxu0 0
      %995 = vmatprep.subr.bf16.mxu0 0
      %996 = vmatpush1.bf16.xpose.msra.mxu0 0
      %997 = vmatprep.subr.bf16.mxu0 0
      %998 = vmatpush1.bf16.xpose.msra.mxu0 0
      %999 = vmatprep.subr.bf16.mxu0 0
      %1000 = vmatpush1.bf16.xpose.msra.mxu0 0
      %1001 = vmatprep.subr.bf16.mxu0 0
      %1002 = vmatpush1.bf16.xpose.msra.mxu0 0
      %1003 = vmatprep.subr.bf16.mxu0 0
      %1004 = vmatpush1.bf16.xpose.msra.mxu0 0
      %1005 = vmatprep.subr.bf16.mxu0 0
      %1006 = vmatpush1.bf16.xpose.msra.mxu0 0
      %1007 = vmatprep.subr.bf16.mxu0 0
      %1008 = vmatpush1.bf16.xpose.msra.mxu0 0
      %1009 = vmatprep.subr.bf16.mxu0 0
      %1010 = vmatpush1.bf16.xpose.msra.mxu0 0
      %1011 = vmatprep.subr.bf16.mxu0 0
      %1012 = vmatpush1.bf16.xpose.msra.mxu0 0
      %1013 = vmatprep.subr.bf16.mxu0 0
      %1014 = vmatpush1.bf16.xpose.msra.mxu0 0
      %1015 = vmatprep.subr.bf16.mxu0 0
      %1016 = vmatpush1.bf16.xpose.msra.mxu0 0
      %1017 = vmatprep.subr.bf16.mxu0 0
      %1018 = vmatpush1.bf16.xpose.msra.mxu0 0
      %1019 = vmatprep.subr.bf16.mxu0 0
      %1020 = vmatpush1.bf16.xpose.msra.mxu0 0
      %1021 = vmatprep.subr.bf16.mxu0 0
      %1022 = vmatpush1.bf16.xpose.msra.mxu0 0
      %1023 = vmatprep.mubr.bf16.mxu0 0
      %1024 = vmatmul.mubr.bf16.gmra.mrb[0].mxu0 %v986
      %v1025 = vpop.f32.mrb[0].mxu0
      %v1026 = vadd.f32 0.0, %v1025
      %v1027 = vpop.f32.mrb[0].mxu0
      %v1028 = vpop.f32.mrb[0].mxu0
      %v1029 = vpop.f32.mrb[0].mxu0
      %1030 = vdwg.mxu0
      %v1031 = vmul.f32 %v968, 0.35355338
      %v1032 = vmul.f32 %v1026, 0.35355338
      %v1033 = vsel %vm244, %v1031, -1e+30
      %v1034 = vsel %vm244, %v1032, -1e+30
      %v1035 = vsel %vm247, %v1033, -inf
      %1036 = vmax.xlane.f32.xlu0 %v1035
      %v1037 = vpop.xlane.xlu0 %1036
      %v1038 = vsel %vm247, %v1034, -inf
      %1039 = vmax.xlane.f32.xlu0 %v1038
      %v1040 = vpop.xlane.xlu0 %1039
      %v1041 = vsub.f32 %v1033, %v1037
      %v1042 = vsub.f32 %v1034, %v1040
      %v1043 = vmul.f32 %v1041, 1.442695
      %v1044 = vpow.pop %v1043
      %v1045 = vmul.f32 %v1042, 1.442695
      %v1046 = vpow.pop %v1045
      %v1047 = vsel %vm247, %v1044, 0.0
      %1048 = vadd.xlane.f32.xlu0 %v1047
      %v1049 = vpop.xlane.xlu0 %1048
      %v1050 = vsel %vm247, %v1046, 0.0
      %1051 = vadd.xlane.f32.xlu0 %v1050
      %v1052 = vpop.xlane.xlu0 %1051
      %v1053 = vrcp.pop %v1049
      %v1054 = vrcp.pop %v1052
      %v1055 = vmul.f32 %v1044, %v1053
      %v1056 = vmul.f32 %v1046, %v1054
      %v1057 = vpack.c.bf16 %v1055, %v1055
      %v1058 = vpack.c.bf16 %v1056, %v1056
      %1059 = vrot.lane.b32.xlu0 %v922, 40
      %v1060 = vpop.permute.xlu0 %1059
      %v1062 = vsel %vm274, %v1057, 0
      %v1065 = vsel %vm278, %v1060, 0
      %1067 = vmatprep.subr.bf16.mxu0 0
      %1068 = vmatpush1.bf16.msra.mxu0 %v1065
      %1069 = vmatprep.subr.bf16.mxu0 0
      %1070 = vmatpush1.bf16.msra.mxu0 0
      %1071 = vmatprep.subr.bf16.mxu0 0
      %1072 = vmatpush1.bf16.msra.mxu0 0
      %1073 = vmatprep.subr.bf16.mxu0 0
      %1074 = vmatpush1.bf16.msra.mxu0 0
      %1075 = vmatprep.subr.bf16.mxu0 0
      %1076 = vmatpush1.bf16.msra.mxu0 0
      %1077 = vmatprep.subr.bf16.mxu0 0
      %1078 = vmatpush1.bf16.msra.mxu0 0
      %1079 = vmatprep.subr.bf16.mxu0 0
      %1080 = vmatpush1.bf16.msra.mxu0 0
      %1081 = vmatprep.subr.bf16.mxu0 0
      %1082 = vmatpush1.bf16.msra.mxu0 0
      %1083 = vmatprep.subr.bf16.mxu0 0
      %1084 = vmatpush1.bf16.msra.mxu0 0
      %1085 = vmatprep.subr.bf16.mxu0 0
      %1086 = vmatpush1.bf16.msra.mxu0 0
      %1087 = vmatprep.subr.bf16.mxu0 0
      %1088 = vmatpush1.bf16.msra.mxu0 0
      %1089 = vmatprep.subr.bf16.mxu0 0
      %1090 = vmatpush1.bf16.msra.mxu0 0
      %1091 = vmatprep.subr.bf16.mxu0 0
      %1092 = vmatpush1.bf16.msra.mxu0 0
      %1093 = vmatprep.subr.bf16.mxu0 0
      %1094 = vmatpush1.bf16.msra.mxu0 0
      %1095 = vmatprep.subr.bf16.mxu0 0
      %1096 = vmatpush1.bf16.msra.mxu0 0
      %1097 = vmatprep.subr.bf16.mxu0 0
      %1098 = vmatpush1.bf16.msra.mxu0 0
      %1099 = vmatprep.mubr.bf16.mxu0 0
      %1100 = vmatmul.mubr.bf16.gmra.mrb[0].mxu0 %v1062
      %v1101 = vpop.f32.mrb[0].mxu0
      %v1102 = vadd.f32 0.0, %v1101
      %v1103 = vpop.f32.mrb[0].mxu0
      %v1104 = vpop.f32.mrb[0].mxu0
      %v1105 = vpop.f32.mrb[0].mxu0
      %1106 = vdwg.mxu0
      %1107 = vrot.lane.b32.xlu0 %v980, 40
      %v1108 = vpop.permute.xlu0 %1107
      %v1110 = vsel %vm274, %v1058, 0
      %v1113 = vsel %vm278, %v1108, 0
      %1115 = vmatprep.subr.bf16.mxu0 0
      %1116 = vmatpush1.bf16.msra.mxu0 %v1113
      %1117 = vmatprep.subr.bf16.mxu0 0
      %1118 = vmatpush1.bf16.msra.mxu0 0
      %1119 = vmatprep.subr.bf16.mxu0 0
      %1120 = vmatpush1.bf16.msra.mxu0 0
      %1121 = vmatprep.subr.bf16.mxu0 0
      %1122 = vmatpush1.bf16.msra.mxu0 0
      %1123 = vmatprep.subr.bf16.mxu0 0
      %1124 = vmatpush1.bf16.msra.mxu0 0
      %1125 = vmatprep.subr.bf16.mxu0 0
      %1126 = vmatpush1.bf16.msra.mxu0 0
      %1127 = vmatprep.subr.bf16.mxu0 0
      %1128 = vmatpush1.bf16.msra.mxu0 0
      %1129 = vmatprep.subr.bf16.mxu0 0
      %1130 = vmatpush1.bf16.msra.mxu0 0
      %1131 = vmatprep.subr.bf16.mxu0 0
      %1132 = vmatpush1.bf16.msra.mxu0 0
      %1133 = vmatprep.subr.bf16.mxu0 0
      %1134 = vmatpush1.bf16.msra.mxu0 0
      %1135 = vmatprep.subr.bf16.mxu0 0
      %1136 = vmatpush1.bf16.msra.mxu0 0
      %1137 = vmatprep.subr.bf16.mxu0 0
      %1138 = vmatpush1.bf16.msra.mxu0 0
      %1139 = vmatprep.subr.bf16.mxu0 0
      %1140 = vmatpush1.bf16.msra.mxu0 0
      %1141 = vmatprep.subr.bf16.mxu0 0
      %1142 = vmatpush1.bf16.msra.mxu0 0
      %1143 = vmatprep.subr.bf16.mxu0 0
      %1144 = vmatpush1.bf16.msra.mxu0 0
      %1145 = vmatprep.subr.bf16.mxu0 0
      %1146 = vmatpush1.bf16.msra.mxu0 0
      %1147 = vmatprep.mubr.bf16.mxu0 0
      %1148 = vmatmul.mubr.bf16.gmra.mrb[0].mxu0 %v1110
      %v1149 = vpop.f32.mrb[0].mxu0
      %v1150 = vadd.f32 0.0, %v1149
      %v1151 = vpop.f32.mrb[0].mxu0
      %v1152 = vpop.f32.mrb[0].mxu0
      %v1153 = vpop.f32.mrb[0].mxu0
      %1154 = vdwg.mxu0
      %v1155 = vpack.c.bf16 %v1102, %v1102
      %v1156 = vpack.c.bf16 %v1150, %v1150
      %v1160 = vunpack.c.l.s4 1983009808
      %v1161 = vunpack.c.0.s8 %v1160
      %v1162 = vlaneseq
      %v1163 = vshrl.u32 %v1162, 7
      %v1164 = vsub.s32 %v1161, %v1163
      %v1165 = vrot.slane %v1155, %v1164
      %v1167 = vunpack.c.l.s4 1983009808
      %v1168 = vunpack.c.0.s8 %v1167
      %v1169 = vlaneseq
      %v1170 = vshrl.u32 %v1169, 7
      %v1171 = vsub.s32 %v1168, %v1170
      %v1172 = vrot.slane %v1156, %v1171
      %1173 = vrot.lane.b32.xlu0 %v1165, 24
      %v1174 = vpop.permute.xlu0 %1173
      %1175 = vrot.lane.b32.xlu0 %v1172, 24
      %v1176 = vpop.permute.xlu0 %1175
      %vm1179 = vcmask 255168
      %1180 = vst.msk [vmem:[%s118] sm:$0x3] %vm1179, %v1174
      %1181 = vst.msk [vmem:[%s118 + $0x2] sm:$0x3] %vm1179, %v1176
      %s1182 = smul.u32 2, %s12
      %p1183 = scmp.lt.s32.totalorder %s1182, 5
      %s1184 = scalar_select %p1183, %s1182, 5
      %s1185 = smul.addr %s1184, 2
      %s1186 = scalar_lea.vmem %s1, %s1185
      // Predicated region
      $region25: #{gpt4mts_forward.18} parent=23 // pred_check
        %p1187 = pneg %p56
      $region26: #{gpt4mts_forward.18} parent=23 // pred_check_branch
        %1189 = sbr.rel (%p1187) target = $region28
      $region27: #{gpt4mts_forward.18} parent=23 // pred_region
        %s1190 = smul.u32 2, %s12
      $region28: #{gpt4mts_forward.18} parent=23 // pred_fallthru
        _
    $region24: #{gpt4mts_forward.18} parent=5 // pred_fallthru
      _
    %p1191 = scmp.le.s32.totalorder 2, %s7
    // Predicated region
    $region29: #{gpt4mts_forward.18} parent=5 // pred_check
      %p1192 = pneg %p1191
    $region30: #{gpt4mts_forward.18} parent=5 // pred_check_branch
      %1194 = sbr.rel (%p1192) target = $region32
    $region31: #{gpt4mts_forward.18} parent=5 // pred_region
      %s1195 = ssub.s32 %s7, 2
      // Predicated region
      $region33: #{gpt4mts_forward.18} parent=31 // pred_check
        %p1196 = pneg %p62
      $region34: #{gpt4mts_forward.18} parent=31 // pred_check_branch
        %1198 = sbr.rel (%p1196) target = $region36
      $region35: #{gpt4mts_forward.18} parent=31 // pred_region
        %s1199 = smul.u32 2, %s13
        %p1200 = scmp.lt.s32.totalorder %s1199, 5
        %s1201 = scalar_select %p1200, %s1199, 5
        %s1202 = smul.addr %s1201, 2
        %s1203 = scalar_lea.vmem %s1, %s1202
      $region36: #{gpt4mts_forward.18} parent=31 // pred_fallthru
        _
    $region32: #{gpt4mts_forward.18} parent=5 // pred_fallthru
      _
  $region6: #{gpt4mts_forward.18} parent=0 // loop_footer
    %s11 = sadd.s32 1, %s7
  $region7: #{gpt4mts_forward.18} parent=0 // loop_footer_branch
    %6 = sbr.rel target = $region3
  $region8: #{gpt4mts_forward.18} parent=0 // loop_exit
    _

// kernel: gpt4mts_forward.21
$region0: #{gpt4mts_forward.21}
  #allocation0 [shape = 'u32[]', space=smem, size = 0x4, offset = 0x4, fixed_abs, tag = 'smem constant byte address 0x4 - core index']
  #allocation1 [shape = 'u32[144,128]{1,0:T(1,128)}', space=vmem, size = 0x12000, scoped, tag = 'internal scratch']
  %s0 = inlined_call_operand.vmem [shape: bf16[24,128], index: 0, kind: input, shape index: {}]
  %s1 = inlined_call_operand.vmem [shape: bf16[128,32], index: 1, kind: input, shape index: {}]
  %s2 = inlined_call_operand.vmem [shape: f32[1,32], index: 2, kind: input, shape index: {}]
  %s3 = inlined_call_operand.vmem [shape: f32[24,32], index: 3, kind: input, shape index: {}]
  %s4 = inlined_call_operand.vmem [shape: f32[24,32], index: 4, kind: output, shape index: {}]
  %s5 = sld [smem:[#allocation0]]
  $region26: #{gpt4mts_forward.21} parent=0
    _
  %s7 = ssub.s32 1, %s5
  %s8 = scalar_select 0, %s7, %s5
  // Predicated region
  $region2: #{gpt4mts_forward.21} parent=0 // pred_check
    _
  $region3: #{gpt4mts_forward.21} parent=0 // pred_check_branch
    %10 = sbr.rel (0) target = $region5
  $region4: #{gpt4mts_forward.21} parent=0 // pred_region
    _
  $region5: #{gpt4mts_forward.21} parent=0 // pred_fallthru
    _
  // Predicated region
  $region6: #{gpt4mts_forward.21} parent=0 // pred_check
    _
  $region7: #{gpt4mts_forward.21} parent=0 // pred_check_branch
    %12 = sbr.rel (0) target = $region9
  $region8: #{gpt4mts_forward.21} parent=0 // pred_region
    _
  $region9: #{gpt4mts_forward.21} parent=0 // pred_fallthru
    _
  // Predicated region
  $region10: #{gpt4mts_forward.21} parent=0 // pred_check
    _
  $region11: #{gpt4mts_forward.21} parent=0 // pred_check_branch
    %14 = sbr.rel (0) target = $region13
  $region12: #{gpt4mts_forward.21} parent=0 // pred_region
    _
  $region13: #{gpt4mts_forward.21} parent=0 // pred_fallthru
    _
  // Predicated region
  $region14: #{gpt4mts_forward.21} parent=0 // pred_check
    _
  $region15: #{gpt4mts_forward.21} parent=0 // pred_check_branch
    %16 = sbr.rel (0) target = $region17
  $region16: #{gpt4mts_forward.21} parent=0 // pred_region
    _
  $region17: #{gpt4mts_forward.21} parent=0 // pred_fallthru
    _
  %v18 = vld [vmem:[%s0] sm:$0xf]
  %v19 = vld [vmem:[%s0 + $0x4] sm:$0xf]
  %v20 = vld [vmem:[%s0 + $0x8] sm:$0xf]
  %v21 = vld [vmem:[%s1] sm:$0xf]
  %v22 = vld [vmem:[%s1 + $0x4] sm:$0xf]
  %v23 = vld [vmem:[%s1 + $0x8] sm:$0xf]
  %v24 = vld [vmem:[%s1 + $0xc] sm:$0xf]
  %v25 = vld [vmem:[%s1 + $0x10] sm:$0xf]
  %v26 = vld [vmem:[%s1 + $0x14] sm:$0xf]
  %v27 = vld [vmem:[%s1 + $0x18] sm:$0xf]
  %v28 = vld [vmem:[%s1 + $0x1c] sm:$0xf]
  %v29 = vld [vmem:[%s1 + $0x20] sm:$0xf]
  %v30 = vld [vmem:[%s1 + $0x24] sm:$0xf]
  %v31 = vld [vmem:[%s1 + $0x28] sm:$0xf]
  %v32 = vld [vmem:[%s1 + $0x2c] sm:$0xf]
  %v33 = vld [vmem:[%s1 + $0x30] sm:$0xf]
  %v34 = vld [vmem:[%s1 + $0x34] sm:$0xf]
  %v35 = vld [vmem:[%s1 + $0x38] sm:$0xf]
  %v36 = vld [vmem:[%s1 + $0x3c] sm:$0xf]
  %v37 = vld [vmem:[%s2] sm:$0x1]
  %v39 = vlaneseq
  %v40 = vshrl.u32 %v39, 7
  %v41 = vsub.s32 0, %v40
  %v42 = vrot.slane %v37, %v41
  %v47 = vunpack.c.l.b16 %v18
  %v48 = vunpack.c.l.b16 %v19
  %v49 = vunpack.c.l.b16 %v20
  %v50 = vpack.c.b16 %v48, %v47
  %v51 = vpack.c.b16 %v49, %v49
  %v70 = vunpack.c.l.b16 %v21
  %v71 = vunpack.c.l.b16 %v22
  %v72 = vunpack.c.l.b16 %v23
  %v73 = vunpack.c.l.b16 %v24
  %v74 = vunpack.c.l.b16 %v25
  %v75 = vunpack.c.l.b16 %v26
  %v76 = vunpack.c.l.b16 %v27
  %v77 = vunpack.c.l.b16 %v28
  %v78 = vunpack.c.l.b16 %v29
  %v79 = vunpack.c.l.b16 %v30
  %v80 = vunpack.c.l.b16 %v31
  %v81 = vunpack.c.l.b16 %v32
  %v82 = vunpack.c.l.b16 %v33
  %v83 = vunpack.c.l.b16 %v34
  %v84 = vunpack.c.l.b16 %v35
  %v85 = vunpack.c.l.b16 %v36
  %v86 = vpack.c.b16 %v71, %v70
  %v87 = vpack.c.b16 %v73, %v72
  %v88 = vpack.c.b16 %v75, %v74
  %v89 = vpack.c.b16 %v77, %v76
  %v90 = vpack.c.b16 %v79, %v78
  %v91 = vpack.c.b16 %v81, %v80
  %v92 = vpack.c.b16 %v83, %v82
  %v93 = vpack.c.b16 %v85, %v84
  %102 = vmatprep.subr.bf16.mxu0 0
  %103 = vmatpush1.bf16.msra.mxu0 %v86
  %104 = vmatprep.subr.bf16.mxu0 0
  %105 = vmatpush1.bf16.msra.mxu0 %v87
  %106 = vmatprep.subr.bf16.mxu0 0
  %107 = vmatpush1.bf16.msra.mxu0 %v88
  %108 = vmatprep.subr.bf16.mxu0 0
  %109 = vmatpush1.bf16.msra.mxu0 %v89
  %110 = vmatprep.subr.bf16.mxu0 0
  %111 = vmatpush1.bf16.msra.mxu0 %v90
  %112 = vmatprep.subr.bf16.mxu0 0
  %113 = vmatpush1.bf16.msra.mxu0 %v91
  %114 = vmatprep.subr.bf16.mxu0 0
  %115 = vmatpush1.bf16.msra.mxu0 %v92
  %116 = vmatprep.subr.bf16.mxu0 0
  %117 = vmatpush1.bf16.msra.mxu0 %v93
  %118 = vmatprep.subr.bf16.mxu0 0
  %119 = vmatpush1.bf16.msra.mxu0 0
  %120 = vmatprep.subr.bf16.mxu0 0
  %121 = vmatpush1.bf16.msra.mxu0 0
  %122 = vmatprep.subr.bf16.mxu0 0
  %123 = vmatpush1.bf16.msra.mxu0 0
  %124 = vmatprep.subr.bf16.mxu0 0
  %125 = vmatpush1.bf16.msra.mxu0 0
  %126 = vmatprep.subr.bf16.mxu0 0
  %127 = vmatpush1.bf16.msra.mxu0 0
  %128 = vmatprep.subr.bf16.mxu0 0
  %129 = vmatpush1.bf16.msra.mxu0 0
  %130 = vmatprep.subr.bf16.mxu0 0
  %131 = vmatpush1.bf16.msra.mxu0 0
  %132 = vmatprep.subr.bf16.mxu0 0
  %133 = vmatpush1.bf16.msra.mxu0 0
  %134 = vmatprep.mubr.bf16.mxu0 0
  %135 = vmatmul.mubr.bf16.gmra.mrb[0].mxu0 %v50
  %v136 = vpop.f32.mrb[0].mxu0
  %v137 = vadd.f32 %v42, %v136
  %v138 = vpop.f32.mrb[0].mxu0
  %v139 = vpop.f32.mrb[0].mxu0
  %v140 = vadd.f32 %v42, %v139
  %v141 = vpop.f32.mrb[0].mxu0
  %142 = vmatprep.mubr.bf16.mxu0 0
  %143 = vmatmul.mubr.bf16.gmra.mrb[0].mxu0 %v51
  %v144 = vpop.f32.mrb[0].mxu0
  %v145 = vadd.f32 %v42, %v144
  %v146 = vpop.f32.mrb[0].mxu0
  %v147 = vpop.f32.mrb[0].mxu0
  %v148 = vpop.f32.mrb[0].mxu0
  %149 = vdwg.mxu0
  %v150 = vld [vmem:[%s3] sm:$0xff]
  %v151 = vld [vmem:[%s3 + $0x8] sm:$0xff]
  %v152 = vld [vmem:[%s3 + $0x10] sm:$0xff]
  %v153 = vadd.f32 %v137, %v150
  %v154 = vadd.f32 %v140, %v151
  %v155 = vadd.f32 %v145, %v152
  %vm156 = vcmask 261120
  %157 = vst.msk [vmem:[%s4] sm:$0xff] %vm156, %v153
  %158 = vst.msk [vmem:[%s4 + $0x8] sm:$0xff] %vm156, %v154
  %159 = vst.msk [vmem:[%s4 + $0x10] sm:$0xff] %vm156, %v155
  // Predicated region
  $region18: #{gpt4mts_forward.21} parent=0 // pred_check
    _
  $region19: #{gpt4mts_forward.21} parent=0 // pred_check_branch
    %161 = sbr.rel (0) target = $region21
  $region20: #{gpt4mts_forward.21} parent=0 // pred_region
    _
  $region21: #{gpt4mts_forward.21} parent=0 // pred_fallthru
    _
  // Predicated region
  $region22: #{gpt4mts_forward.21} parent=0 // pred_check
    _
  $region23: #{gpt4mts_forward.21} parent=0 // pred_check_branch
    %163 = sbr.rel (0) target = $region25
  $region24: #{gpt4mts_forward.21} parent=0 // pred_region
    _
  $region25: #{gpt4mts_forward.21} parent=0 // pred_fallthru
    _

// kernel: gpt4mts_forward.27
$region0: #{gpt4mts_forward.27}
  #allocation0 [shape = 'u32[]', space=smem, size = 0x4, offset = 0x4, fixed_abs, tag = 'smem constant byte address 0x4 - core index']
  #allocation1 [shape = 'u32[144,128]{1,0:T(1,128)}', space=vmem, size = 0x12000, scoped, tag = 'internal scratch']
  %s0 = inlined_call_operand.vmem [shape: f32[24,32], index: 0, kind: input, shape index: {}]
  %s1 = inlined_call_operand.vmem [shape: f32[1,32], index: 1, kind: input, shape index: {}]
  %s2 = inlined_call_operand.vmem [shape: f32[1,32], index: 2, kind: input, shape index: {}]
  %s3 = inlined_call_operand.vmem [shape: f32[24,32], index: 3, kind: output, shape index: {}]
  %s4 = sld [smem:[#allocation0]]
  $region22: #{gpt4mts_forward.27} parent=0
    _
  %s6 = ssub.s32 1, %s4
  %s7 = scalar_select 0, %s6, %s4
  // Predicated region
  $region2: #{gpt4mts_forward.27} parent=0 // pred_check
    _
  $region3: #{gpt4mts_forward.27} parent=0 // pred_check_branch
    %9 = sbr.rel (0) target = $region5
  $region4: #{gpt4mts_forward.27} parent=0 // pred_region
    _
  $region5: #{gpt4mts_forward.27} parent=0 // pred_fallthru
    _
  // Predicated region
  $region6: #{gpt4mts_forward.27} parent=0 // pred_check
    _
  $region7: #{gpt4mts_forward.27} parent=0 // pred_check_branch
    %11 = sbr.rel (0) target = $region9
  $region8: #{gpt4mts_forward.27} parent=0 // pred_region
    _
  $region9: #{gpt4mts_forward.27} parent=0 // pred_fallthru
    _
  // Predicated region
  $region10: #{gpt4mts_forward.27} parent=0 // pred_check
    _
  $region11: #{gpt4mts_forward.27} parent=0 // pred_check_branch
    %13 = sbr.rel (0) target = $region13
  $region12: #{gpt4mts_forward.27} parent=0 // pred_region
    _
  $region13: #{gpt4mts_forward.27} parent=0 // pred_fallthru
    _
  %v14 = vld [vmem:[%s0] sm:$0xff]
  %v15 = vld [vmem:[%s0 + $0x8] sm:$0xff]
  %v16 = vld [vmem:[%s0 + $0x10] sm:$0xff]
  %vm17 = vcmask 261120
  %v18 = vsel %vm17, %v14, 0.0
  %19 = vadd.xlane.f32.xlu0 %v18
  %v20 = vpop.xlane.xlu0 %19
  %v21 = vsel %vm17, %v15, 0.0
  %22 = vadd.xlane.f32.xlu0 %v21
  %v23 = vpop.xlane.xlu0 %22
  %v24 = vsel %vm17, %v16, 0.0
  %25 = vadd.xlane.f32.xlu0 %v24
  %v26 = vpop.xlane.xlu0 %25
  %v27 = vrcp.pop 32.0
  %v28 = vmul.f32 %v20, %v27
  %v29 = vmul.f32 %v23, %v27
  %v30 = vmul.f32 %v26, %v27
  %v31 = vsub.f32 %v14, %v28
  %v32 = vsub.f32 %v15, %v29
  %v33 = vsub.f32 %v16, %v30
  %v34 = vmul.f32 %v31, %v31
  %v35 = vmul.f32 %v32, %v32
  %v36 = vmul.f32 %v33, %v33
  %v37 = vsel %vm17, %v34, 0.0
  %38 = vadd.xlane.f32.xlu0 %v37
  %v39 = vpop.xlane.xlu0 %38
  %v40 = vsel %vm17, %v35, 0.0
  %41 = vadd.xlane.f32.xlu0 %v40
  %v42 = vpop.xlane.xlu0 %41
  %v43 = vsel %vm17, %v36, 0.0
  %44 = vadd.xlane.f32.xlu0 %v43
  %v45 = vpop.xlane.xlu0 %44
  %v46 = vmul.f32 %v39, %v27
  %v47 = vmul.f32 %v42, %v27
  %v48 = vmul.f32 %v45, %v27
  %v49 = vadd.f32 %v46, 1e-05
  %v50 = vadd.f32 %v47, 1e-05
  %v51 = vadd.f32 %v48, 1e-05
  %v52 = vrsqrt.pop %v49
  %v53 = vrsqrt.pop %v50
  %v54 = vrsqrt.pop %v51
  %v55 = vmul.f32 %v31, %v52
  %v56 = vmul.f32 %v32, %v53
  %v57 = vmul.f32 %v33, %v54
  %v58 = vld [vmem:[%s1] sm:$0x1]
  %v60 = vlaneseq
  %v61 = vshrl.u32 %v60, 7
  %v62 = vsub.s32 0, %v61
  %v63 = vrot.slane %v58, %v62
  %v65 = vmul.f32 %v55, %v63
  %v66 = vmul.f32 %v56, %v63
  %v67 = vmul.f32 %v57, %v63
  %v68 = vld [vmem:[%s2] sm:$0x1]
  %v70 = vlaneseq
  %v71 = vshrl.u32 %v70, 7
  %v72 = vsub.s32 0, %v71
  %v73 = vrot.slane %v68, %v72
  %v75 = vadd.f32 %v65, %v73
  %v76 = vadd.f32 %v66, %v73
  %v77 = vadd.f32 %v67, %v73
  %78 = vst.msk [vmem:[%s3] sm:$0xff] %vm17, %v75
  %79 = vst.msk [vmem:[%s3 + $0x8] sm:$0xff] %vm17, %v76
  %80 = vst.msk [vmem:[%s3 + $0x10] sm:$0xff] %vm17, %v77
  // Predicated region
  $region14: #{gpt4mts_forward.27} parent=0 // pred_check
    _
  $region15: #{gpt4mts_forward.27} parent=0 // pred_check_branch
    %82 = sbr.rel (0) target = $region17
  $region16: #{gpt4mts_forward.27} parent=0 // pred_region
    _
  $region17: #{gpt4mts_forward.27} parent=0 // pred_fallthru
    _
  // Predicated region
  $region18: #{gpt4mts_forward.27} parent=0 // pred_check
    _
  $region19: #{gpt4mts_forward.27} parent=0 // pred_check_branch
    %84 = sbr.rel (0) target = $region21
  $region20: #{gpt4mts_forward.27} parent=0 // pred_region
    _
  $region21: #{gpt4mts_forward.27} parent=0 // pred_fallthru
    _

// kernel: gpt4mts_forward.29
$region0: #{gpt4mts_forward.29}
  #allocation0 [shape = 'u32[]', space=smem, size = 0x4, offset = 0x4, fixed_abs, tag = 'smem constant byte address 0x4 - core index']
  #allocation1 [shape = 'u32[144,128]{1,0:T(1,128)}', space=vmem, size = 0x12000, scoped, tag = 'internal scratch']
  %s0 = inlined_call_operand.vmem [shape: f32[8,512], index: 0, kind: input, shape index: {}]
  %s1 = inlined_call_operand.vmem [shape: bf16[512,5], index: 1, kind: input, shape index: {}]
  %s2 = inlined_call_operand.vmem [shape: f32[1,5], index: 2, kind: input, shape index: {}]
  %s3 = inlined_call_operand.vmem [shape: f32[8,5], index: 3, kind: output, shape index: {}]
  %s4 = sld [smem:[#allocation0]]
  $region22: #{gpt4mts_forward.29} parent=0
    _
  %s6 = ssub.s32 1, %s4
  %s7 = scalar_select 0, %s6, %s4
  // Predicated region
  $region2: #{gpt4mts_forward.29} parent=0 // pred_check
    _
  $region3: #{gpt4mts_forward.29} parent=0 // pred_check_branch
    %9 = sbr.rel (0) target = $region5
  $region4: #{gpt4mts_forward.29} parent=0 // pred_region
    _
  $region5: #{gpt4mts_forward.29} parent=0 // pred_fallthru
    _
  // Predicated region
  $region6: #{gpt4mts_forward.29} parent=0 // pred_check
    _
  $region7: #{gpt4mts_forward.29} parent=0 // pred_check_branch
    %11 = sbr.rel (0) target = $region9
  $region8: #{gpt4mts_forward.29} parent=0 // pred_region
    _
  $region9: #{gpt4mts_forward.29} parent=0 // pred_fallthru
    _
  // Predicated region
  $region10: #{gpt4mts_forward.29} parent=0 // pred_check
    _
  $region11: #{gpt4mts_forward.29} parent=0 // pred_check_branch
    %13 = sbr.rel (0) target = $region13
  $region12: #{gpt4mts_forward.29} parent=0 // pred_region
    _
  $region13: #{gpt4mts_forward.29} parent=0 // pred_fallthru
    _
  %v15 = vld [vmem:[%s0] sm:$0xff]
  %v16 = vld [vmem:[%s0 + $0x8] sm:$0xff]
  %v17 = vld [vmem:[%s0 + $0x10] sm:$0xff]
  %v18 = vld [vmem:[%s0 + $0x18] sm:$0xff]
  %v19 = vpack.c.bf16 %v15, %v15
  %v20 = vpack.c.bf16 %v16, %v16
  %v21 = vpack.c.bf16 %v17, %v17
  %v22 = vpack.c.bf16 %v18, %v18
  %v23 = vld [vmem:[%s1] sm:$0xf]
  %v24 = vld [vmem:[%s1 + $0x4] sm:$0xf]
  %v25 = vld [vmem:[%s1 + $0x8] sm:$0xf]
  %v26 = vld [vmem:[%s1 + $0xc] sm:$0xf]
  %v27 = vld [vmem:[%s1 + $0x10] sm:$0xf]
  %v28 = vld [vmem:[%s1 + $0x14] sm:$0xf]
  %v29 = vld [vmem:[%s1 + $0x18] sm:$0xf]
  %v30 = vld [vmem:[%s1 + $0x1c] sm:$0xf]
  %v31 = vld [vmem:[%s1 + $0x20] sm:$0xf]
  %v32 = vld [vmem:[%s1 + $0x24] sm:$0xf]
  %v33 = vld [vmem:[%s1 + $0x28] sm:$0xf]
  %v34 = vld [vmem:[%s1 + $0x2c] sm:$0xf]
  %v35 = vld [vmem:[%s1 + $0x30] sm:$0xf]
  %v36 = vld [vmem:[%s1 + $0x34] sm:$0xf]
  %v37 = vld [vmem:[%s1 + $0x38] sm:$0xf]
  %v38 = vld [vmem:[%s1 + $0x3c] sm:$0xf]
  %v39 = vld [vmem:[%s1 + $0x40] sm:$0xf]
  %v40 = vld [vmem:[%s1 + $0x44] sm:$0xf]
  %v41 = vld [vmem:[%s1 + $0x48] sm:$0xf]
  %v42 = vld [vmem:[%s1 + $0x4c] sm:$0xf]
  %v43 = vld [vmem:[%s1 + $0x50] sm:$0xf]
  %v44 = vld [vmem:[%s1 + $0x54] sm:$0xf]
  %v45 = vld [vmem:[%s1 + $0x58] sm:$0xf]
  %v46 = vld [vmem:[%s1 + $0x5c] sm:$0xf]
  %v47 = vld [vmem:[%s1 + $0x60] sm:$0xf]
  %v48 = vld [vmem:[%s1 + $0x64] sm:$0xf]
  %v49 = vld [vmem:[%s1 + $0x68] sm:$0xf]
  %v50 = vld [vmem:[%s1 + $0x6c] sm:$0xf]
  %v51 = vld [vmem:[%s1 + $0x70] sm:$0xf]
  %v52 = vld [vmem:[%s1 + $0x74] sm:$0xf]
  %v53 = vld [vmem:[%s1 + $0x78] sm:$0xf]
  %v54 = vld [vmem:[%s1 + $0x7c] sm:$0xf]
  %v55 = vld [vmem:[%s1 + $0x80] sm:$0xf]
  %v56 = vld [vmem:[%s1 + $0x84] sm:$0xf]
  %v57 = vld [vmem:[%s1 + $0x88] sm:$0xf]
  %v58 = vld [vmem:[%s1 + $0x8c] sm:$0xf]
  %v59 = vld [vmem:[%s1 + $0x90] sm:$0xf]
  %v60 = vld [vmem:[%s1 + $0x94] sm:$0xf]
  %v61 = vld [vmem:[%s1 + $0x98] sm:$0xf]
  %v62 = vld [vmem:[%s1 + $0x9c] sm:$0xf]
  %v63 = vld [vmem:[%s1 + $0xa0] sm:$0xf]
  %v64 = vld [vmem:[%s1 + $0xa4] sm:$0xf]
  %v65 = vld [vmem:[%s1 + $0xa8] sm:$0xf]
  %v66 = vld [vmem:[%s1 + $0xac] sm:$0xf]
  %v67 = vld [vmem:[%s1 + $0xb0] sm:$0xf]
  %v68 = vld [vmem:[%s1 + $0xb4] sm:$0xf]
  %v69 = vld [vmem:[%s1 + $0xb8] sm:$0xf]
  %v70 = vld [vmem:[%s1 + $0xbc] sm:$0xf]
  %v71 = vld [vmem:[%s1 + $0xc0] sm:$0xf]
  %v72 = vld [vmem:[%s1 + $0xc4] sm:$0xf]
  %v73 = vld [vmem:[%s1 + $0xc8] sm:$0xf]
  %v74 = vld [vmem:[%s1 + $0xcc] sm:$0xf]
  %v75 = vld [vmem:[%s1 + $0xd0] sm:$0xf]
  %v76 = vld [vmem:[%s1 + $0xd4] sm:$0xf]
  %v77 = vld [vmem:[%s1 + $0xd8] sm:$0xf]
  %v78 = vld [vmem:[%s1 + $0xdc] sm:$0xf]
  %v79 = vld [vmem:[%s1 + $0xe0] sm:$0xf]
  %v80 = vld [vmem:[%s1 + $0xe4] sm:$0xf]
  %v81 = vld [vmem:[%s1 + $0xe8] sm:$0xf]
  %v82 = vld [vmem:[%s1 + $0xec] sm:$0xf]
  %v83 = vld [vmem:[%s1 + $0xf0] sm:$0xf]
  %v84 = vld [vmem:[%s1 + $0xf4] sm:$0xf]
  %v85 = vld [vmem:[%s1 + $0xf8] sm:$0xf]
  %v86 = vld [vmem:[%s1 + $0xfc] sm:$0xf]
  %v87 = vld [vmem:[%s2] sm:$0x1]
  %v89 = vlaneseq
  %v90 = vshrl.u32 %v89, 7
  %v91 = vsub.s32 0, %v90
  %v92 = vrot.slane %v87, %v91
  %v158 = vunpack.c.l.b16 %v23
  %v159 = vunpack.c.l.b16 %v24
  %v160 = vunpack.c.l.b16 %v25
  %v161 = vunpack.c.l.b16 %v26
  %v162 = vunpack.c.l.b16 %v27
  %v163 = vunpack.c.l.b16 %v28
  %v164 = vunpack.c.l.b16 %v29
  %v165 = vunpack.c.l.b16 %v30
  %v166 = vunpack.c.l.b16 %v31
  %v167 = vunpack.c.l.b16 %v32
  %v168 = vunpack.c.l.b16 %v33
  %v169 = vunpack.c.l.b16 %v34
  %v170 = vunpack.c.l.b16 %v35
  %v171 = vunpack.c.l.b16 %v36
  %v172 = vunpack.c.l.b16 %v37
  %v173 = vunpack.c.l.b16 %v38
  %v174 = vunpack.c.l.b16 %v39
  %v175 = vunpack.c.l.b16 %v40
  %v176 = vunpack.c.l.b16 %v41
  %v177 = vunpack.c.l.b16 %v42
  %v178 = vunpack.c.l.b16 %v43
  %v179 = vunpack.c.l.b16 %v44
  %v180 = vunpack.c.l.b16 %v45
  %v181 = vunpack.c.l.b16 %v46
  %v182 = vunpack.c.l.b16 %v47
  %v183 = vunpack.c.l.b16 %v48
  %v184 = vunpack.c.l.b16 %v49
  %v185 = vunpack.c.l.b16 %v50
  %v186 = vunpack.c.l.b16 %v51
  %v187 = vunpack.c.l.b16 %v52
  %v188 = vunpack.c.l.b16 %v53
  %v189 = vunpack.c.l.b16 %v54
  %v190 = vunpack.c.l.b16 %v55
  %v191 = vunpack.c.l.b16 %v56
  %v192 = vunpack.c.l.b16 %v57
  %v193 = vunpack.c.l.b16 %v58
  %v194 = vunpack.c.l.b16 %v59
  %v195 = vunpack.c.l.b16 %v60
  %v196 = vunpack.c.l.b16 %v61
  %v197 = vunpack.c.l.b16 %v62
  %v198 = vunpack.c.l.b16 %v63
  %v199 = vunpack.c.l.b16 %v64
  %v200 = vunpack.c.l.b16 %v65
  %v201 = vunpack.c.l.b16 %v66
  %v202 = vunpack.c.l.b16 %v67
  %v203 = vunpack.c.l.b16 %v68
  %v204 = vunpack.c.l.b16 %v69
  %v205 = vunpack.c.l.b16 %v70
  %v206 = vunpack.c.l.b16 %v71
  %v207 = vunpack.c.l.b16 %v72
  %v208 = vunpack.c.l.b16 %v73
  %v209 = vunpack.c.l.b16 %v74
  %v210 = vunpack.c.l.b16 %v75
  %v211 = vunpack.c.l.b16 %v76
  %v212 = vunpack.c.l.b16 %v77
  %v213 = vunpack.c.l.b16 %v78
  %v214 = vunpack.c.l.b16 %v79
  %v215 = vunpack.c.l.b16 %v80
  %v216 = vunpack.c.l.b16 %v81
  %v217 = vunpack.c.l.b16 %v82
  %v218 = vunpack.c.l.b16 %v83
  %v219 = vunpack.c.l.b16 %v84
  %v220 = vunpack.c.l.b16 %v85
  %v221 = vunpack.c.l.b16 %v86
  %v222 = vpack.c.b16 %v159, %v158
  %v223 = vpack.c.b16 %v161, %v160
  %v224 = vpack.c.b16 %v163, %v162
  %v225 = vpack.c.b16 %v165, %v164
  %v226 = vpack.c.b16 %v167, %v166
  %v227 = vpack.c.b16 %v169, %v168
  %v228 = vpack.c.b16 %v171, %v170
  %v229 = vpack.c.b16 %v173, %v172
  %v230 = vpack.c.b16 %v175, %v174
  %v231 = vpack.c.b16 %v177, %v176
  %v232 = vpack.c.b16 %v179, %v178
  %v233 = vpack.c.b16 %v181, %v180
  %v234 = vpack.c.b16 %v183, %v182
  %v235 = vpack.c.b16 %v185, %v184
  %v236 = vpack.c.b16 %v187, %v186
  %v237 = vpack.c.b16 %v189, %v188
  %v238 = vpack.c.b16 %v191, %v190
  %v239 = vpack.c.b16 %v193, %v192
  %v240 = vpack.c.b16 %v195, %v194
  %v241 = vpack.c.b16 %v197, %v196
  %v242 = vpack.c.b16 %v199, %v198
  %v243 = vpack.c.b16 %v201, %v200
  %v244 = vpack.c.b16 %v203, %v202
  %v245 = vpack.c.b16 %v205, %v204
  %v246 = vpack.c.b16 %v207, %v206
  %v247 = vpack.c.b16 %v209, %v208
  %v248 = vpack.c.b16 %v211, %v210
  %v249 = vpack.c.b16 %v213, %v212
  %v250 = vpack.c.b16 %v215, %v214
  %v251 = vpack.c.b16 %v217, %v216
  %v252 = vpack.c.b16 %v219, %v218
  %v253 = vpack.c.b16 %v221, %v220
  %286 = vmatprep.subr.bf16.mxu0 0
  %287 = vmatpush1.bf16.msra.mxu0 %v222
  %288 = vmatprep.subr.bf16.mxu0 0
  %289 = vmatpush1.bf16.msra.mxu0 %v223
  %290 = vmatprep.subr.bf16.mxu0 0
  %291 = vmatpush1.bf16.msra.mxu0 %v224
  %292 = vmatprep.subr.bf16.mxu0 0
  %293 = vmatpush1.bf16.msra.mxu0 %v225
  %294 = vmatprep.subr.bf16.mxu0 0
  %295 = vmatpush1.bf16.msra.mxu0 %v226
  %296 = vmatprep.subr.bf16.mxu0 0
  %297 = vmatpush1.bf16.msra.mxu0 %v227
  %298 = vmatprep.subr.bf16.mxu0 0
  %299 = vmatpush1.bf16.msra.mxu0 %v228
  %300 = vmatprep.subr.bf16.mxu0 0
  %301 = vmatpush1.bf16.msra.mxu0 %v229
  %302 = vmatprep.subr.bf16.mxu0 0
  %303 = vmatpush1.bf16.msra.mxu0 %v230
  %304 = vmatprep.subr.bf16.mxu0 0
  %305 = vmatpush1.bf16.msra.mxu0 %v231
  %306 = vmatprep.subr.bf16.mxu0 0
  %307 = vmatpush1.bf16.msra.mxu0 %v232
  %308 = vmatprep.subr.bf16.mxu0 0
  %309 = vmatpush1.bf16.msra.mxu0 %v233
  %310 = vmatprep.subr.bf16.mxu0 0
  %311 = vmatpush1.bf16.msra.mxu0 %v234
  %312 = vmatprep.subr.bf16.mxu0 0
  %313 = vmatpush1.bf16.msra.mxu0 %v235
  %314 = vmatprep.subr.bf16.mxu0 0
  %315 = vmatpush1.bf16.msra.mxu0 %v236
  %316 = vmatprep.subr.bf16.mxu0 0
  %317 = vmatpush1.bf16.msra.mxu0 %v237
  %318 = vmatprep.mubr.bf16.mxu0 %v20
  %319 = vmatmul.mubr.bf16.gmra.mrb[0].mxu0 %v19
  %v320 = vpop.f32.mrb[0].mxu0
  %v321 = vadd.f32 %v92, %v320
  %v322 = vpop.f32.mrb[0].mxu0
  %v323 = vpop.f32.mrb[0].mxu0
  %v324 = vpop.f32.mrb[0].mxu0
  %325 = vdwg.mxu0
  %326 = vmatprep.subr.bf16.mxu0 0
  %327 = vmatpush1.bf16.msra.mxu0 %v238
  %328 = vmatprep.subr.bf16.mxu0 0
  %329 = vmatpush1.bf16.msra.mxu0 %v239
  %330 = vmatprep.subr.bf16.mxu0 0
  %331 = vmatpush1.bf16.msra.mxu0 %v240
  %332 = vmatprep.subr.bf16.mxu0 0
  %333 = vmatpush1.bf16.msra.mxu0 %v241
  %334 = vmatprep.subr.bf16.mxu0 0
  %335 = vmatpush1.bf16.msra.mxu0 %v242
  %336 = vmatprep.subr.bf16.mxu0 0
  %337 = vmatpush1.bf16.msra.mxu0 %v243
  %338 = vmatprep.subr.bf16.mxu0 0
  %339 = vmatpush1.bf16.msra.mxu0 %v244
  %340 = vmatprep.subr.bf16.mxu0 0
  %341 = vmatpush1.bf16.msra.mxu0 %v245
  %342 = vmatprep.subr.bf16.mxu0 0
  %343 = vmatpush1.bf16.msra.mxu0 %v246
  %344 = vmatprep.subr.bf16.mxu0 0
  %345 = vmatpush1.bf16.msra.mxu0 %v247
  %346 = vmatprep.subr.bf16.mxu0 0
  %347 = vmatpush1.bf16.msra.mxu0 %v248
  %348 = vmatprep.subr.bf16.mxu0 0
  %349 = vmatpush1.bf16.msra.mxu0 %v249
  %350 = vmatprep.subr.bf16.mxu0 0
  %351 = vmatpush1.bf16.msra.mxu0 %v250
  %352 = vmatprep.subr.bf16.mxu0 0
  %353 = vmatpush1.bf16.msra.mxu0 %v251
  %354 = vmatprep.subr.bf16.mxu0 0
  %355 = vmatpush1.bf16.msra.mxu0 %v252
  %356 = vmatprep.subr.bf16.mxu0 0
  %357 = vmatpush1.bf16.msra.mxu0 %v253
  %358 = vmatprep.mubr.bf16.mxu0 %v22
  %359 = vmatmul.mubr.bf16.gmra.mrb[0].mxu0 %v21
  %v360 = vpop.f32.mrb[0].mxu0
  %v361 = vadd.f32 %v321, %v360
  %v362 = vpop.f32.mrb[0].mxu0
  %v363 = vpop.f32.mrb[0].mxu0
  %v364 = vpop.f32.mrb[0].mxu0
  %365 = vdwg.mxu0
  %vm366 = vcmask 39936
  %367 = vst.msk [vmem:[%s3] sm:$0xff] %vm366, %v361
  // Predicated region
  $region14: #{gpt4mts_forward.29} parent=0 // pred_check
    _
  $region15: #{gpt4mts_forward.29} parent=0 // pred_check_branch
    %369 = sbr.rel (0) target = $region17
  $region16: #{gpt4mts_forward.29} parent=0 // pred_region
    _
  $region17: #{gpt4mts_forward.29} parent=0 // pred_fallthru
    _
  // Predicated region
  $region18: #{gpt4mts_forward.29} parent=0 // pred_check
    _
  $region19: #{gpt4mts_forward.29} parent=0 // pred_check_branch
    %371 = sbr.rel (0) target = $region21
  $region20: #{gpt4mts_forward.29} parent=0 // pred_region
    _
  $region21: #{gpt4mts_forward.29} parent=0 // pred_fallthru
    _

// kernel: gpt4mts_forward.28
$region0: #{gpt4mts_forward.28}
  #allocation0 [shape = 'u32[]', space=smem, size = 0x4, offset = 0x4, fixed_abs, tag = 'smem constant byte address 0x4 - core index']
  #allocation1 [shape = 'u32[144,128]{1,0:T(1,128)}', space=vmem, size = 0x12000, scoped, tag = 'internal scratch']
  %s0 = inlined_call_operand.vmem [shape: f32[8,384], index: 0, kind: input, shape index: {}]
  %s1 = inlined_call_operand.vmem [shape: bf16[384,512], index: 1, kind: input, shape index: {}]
  %s2 = inlined_call_operand.vmem [shape: f32[1,512], index: 2, kind: input, shape index: {}]
  %s3 = inlined_call_operand.vmem [shape: f32[8,512], index: 3, kind: output, shape index: {}]
  %s4 = sld [smem:[#allocation0]]
  $region30: #{gpt4mts_forward.28} parent=0
    _
  %s6 = ssub.s32 1, %s4
  %s7 = scalar_select 0, %s6, %s4
  // Predicated region
  $region2: #{gpt4mts_forward.28} parent=0 // pred_check
    _
  $region3: #{gpt4mts_forward.28} parent=0 // pred_check_branch
    %9 = sbr.rel (0) target = $region5
  $region4: #{gpt4mts_forward.28} parent=0 // pred_region
    _
  $region5: #{gpt4mts_forward.28} parent=0 // pred_fallthru
    _
  // Predicated region
  $region6: #{gpt4mts_forward.28} parent=0 // pred_check
    _
  $region7: #{gpt4mts_forward.28} parent=0 // pred_check_branch
    %11 = sbr.rel (0) target = $region9
  $region8: #{gpt4mts_forward.28} parent=0 // pred_region
    _
  $region9: #{gpt4mts_forward.28} parent=0 // pred_fallthru
    _
  // Predicated region
  $region10: #{gpt4mts_forward.28} parent=0 // pred_check
    _
  $region11: #{gpt4mts_forward.28} parent=0 // pred_check_branch
    %13 = sbr.rel (0) target = $region13
  $region12: #{gpt4mts_forward.28} parent=0 // pred_region
    _
  $region13: #{gpt4mts_forward.28} parent=0 // pred_fallthru
    _
  %p15 = scmp.eq.s32.totalorder 0, 0
  // Predicated region
  $region14: #{gpt4mts_forward.28} parent=0 // pred_check
    %p16 = pneg %p15
  $region15: #{gpt4mts_forward.28} parent=0 // pred_check_branch
    %18 = sbr.rel (%p16) target = $region17
  $region16: #{gpt4mts_forward.28} parent=0 // pred_region
    %19 = vst [vmem:[%s3] sm:$0xff] 0.0
    %20 = vst [vmem:[%s3 + $0x8] sm:$0xff] 0.0
    %21 = vst [vmem:[%s3 + $0x10] sm:$0xff] 0.0
    %22 = vst [vmem:[%s3 + $0x18] sm:$0xff] 0.0
  $region17: #{gpt4mts_forward.28} parent=0 // pred_fallthru
    _
  %v23 = vld [vmem:[%s3] sm:$0xff]
  %v24 = vld [vmem:[%s3 + $0x8] sm:$0xff]
  %v25 = vld [vmem:[%s3 + $0x10] sm:$0xff]
  %v26 = vld [vmem:[%s3 + $0x18] sm:$0xff]
  %v27 = vld [vmem:[%s0] sm:$0xff]
  %v28 = vld [vmem:[%s0 + $0x8] sm:$0xff]
  %v29 = vld [vmem:[%s0 + $0x10] sm:$0xff]
  %v30 = vpack.c.bf16 %v27, %v27
  %v31 = vpack.c.bf16 %v28, %v28
  %v32 = vpack.c.bf16 %v29, %v29
  %v33 = vld [vmem:[%s1] sm:$0xff]
  %v34 = vld [vmem:[%s1 + $0x8] sm:$0xff]
  %v35 = vld [vmem:[%s1 + $0x10] sm:$0xff]
  %v36 = vld [vmem:[%s1 + $0x18] sm:$0xff]
  %v37 = vld [vmem:[%s1 + $0x20] sm:$0xff]
  %v38 = vld [vmem:[%s1 + $0x28] sm:$0xff]
  %v39 = vld [vmem:[%s1 + $0x30] sm:$0xff]
  %v40 = vld [vmem:[%s1 + $0x38] sm:$0xff]
  %v41 = vld [vmem:[%s1 + $0x40] sm:$0xff]
  %v42 = vld [vmem:[%s1 + $0x48] sm:$0xff]
  %v43 = vld [vmem:[%s1 + $0x50] sm:$0xff]
  %v44 = vld [vmem:[%s1 + $0x58] sm:$0xff]
  %v45 = vld [vmem:[%s1 + $0x60] sm:$0xff]
  %v46 = vld [vmem:[%s1 + $0x68] sm:$0xff]
  %v47 = vld [vmem:[%s1 + $0x70] sm:$0xff]
  %v48 = vld [vmem:[%s1 + $0x78] sm:$0xff]
  %v49 = vld [vmem:[%s1 + $0x80] sm:$0xff]
  %v50 = vld [vmem:[%s1 + $0x88] sm:$0xff]
  %v51 = vld [vmem:[%s1 + $0x90] sm:$0xff]
  %v52 = vld [vmem:[%s1 + $0x98] sm:$0xff]
  %v53 = vld [vmem:[%s1 + $0xa0] sm:$0xff]
  %v54 = vld [vmem:[%s1 + $0xa8] sm:$0xff]
  %v55 = vld [vmem:[%s1 + $0xb0] sm:$0xff]
  %v56 = vld [vmem:[%s1 + $0xb8] sm:$0xff]
  %v57 = vld [vmem:[%s1 + $0xc0] sm:$0xff]
  %v58 = vld [vmem:[%s1 + $0xc8] sm:$0xff]
  %v59 = vld [vmem:[%s1 + $0xd0] sm:$0xff]
  %v60 = vld [vmem:[%s1 + $0xd8] sm:$0xff]
  %v61 = vld [vmem:[%s1 + $0xe0] sm:$0xff]
  %v62 = vld [vmem:[%s1 + $0xe8] sm:$0xff]
  %v63 = vld [vmem:[%s1 + $0xf0] sm:$0xff]
  %v64 = vld [vmem:[%s1 + $0xf8] sm:$0xff]
  %v65 = vld [vmem:[%s1 + $0x100] sm:$0xff]
  %v66 = vld [vmem:[%s1 + $0x108] sm:$0xff]
  %v67 = vld [vmem:[%s1 + $0x110] sm:$0xff]
  %v68 = vld [vmem:[%s1 + $0x118] sm:$0xff]
  %v69 = vld [vmem:[%s1 + $0x120] sm:$0xff]
  %v70 = vld [vmem:[%s1 + $0x128] sm:$0xff]
  %v71 = vld [vmem:[%s1 + $0x130] sm:$0xff]
  %v72 = vld [vmem:[%s1 + $0x138] sm:$0xff]
  %v73 = vld [vmem:[%s1 + $0x140] sm:$0xff]
  %v74 = vld [vmem:[%s1 + $0x148] sm:$0xff]
  %v75 = vld [vmem:[%s1 + $0x150] sm:$0xff]
  %v76 = vld [vmem:[%s1 + $0x158] sm:$0xff]
  %v77 = vld [vmem:[%s1 + $0x160] sm:$0xff]
  %v78 = vld [vmem:[%s1 + $0x168] sm:$0xff]
  %v79 = vld [vmem:[%s1 + $0x170] sm:$0xff]
  %v80 = vld [vmem:[%s1 + $0x178] sm:$0xff]
  %v81 = vld [vmem:[%s1 + $0x180] sm:$0xff]
  %v82 = vld [vmem:[%s1 + $0x188] sm:$0xff]
  %v83 = vld [vmem:[%s1 + $0x190] sm:$0xff]
  %v84 = vld [vmem:[%s1 + $0x198] sm:$0xff]
  %v85 = vld [vmem:[%s1 + $0x1a0] sm:$0xff]
  %v86 = vld [vmem:[%s1 + $0x1a8] sm:$0xff]
  %v87 = vld [vmem:[%s1 + $0x1b0] sm:$0xff]
  %v88 = vld [vmem:[%s1 + $0x1b8] sm:$0xff]
  %v89 = vld [vmem:[%s1 + $0x1c0] sm:$0xff]
  %v90 = vld [vmem:[%s1 + $0x1c8] sm:$0xff]
  %v91 = vld [vmem:[%s1 + $0x1d0] sm:$0xff]
  %v92 = vld [vmem:[%s1 + $0x1d8] sm:$0xff]
  %v93 = vld [vmem:[%s1 + $0x1e0] sm:$0xff]
  %v94 = vld [vmem:[%s1 + $0x1e8] sm:$0xff]
  %v95 = vld [vmem:[%s1 + $0x1f0] sm:$0xff]
  %v96 = vld [vmem:[%s1 + $0x1f8] sm:$0xff]
  %v97 = vld [vmem:[%s1 + $0x200] sm:$0xff]
  %v98 = vld [vmem:[%s1 + $0x208] sm:$0xff]
  %v99 = vld [vmem:[%s1 + $0x210] sm:$0xff]
  %v100 = vld [vmem:[%s1 + $0x218] sm:$0xff]
  %v101 = vld [vmem:[%s1 + $0x220] sm:$0xff]
  %v102 = vld [vmem:[%s1 + $0x228] sm:$0xff]
  %v103 = vld [vmem:[%s1 + $0x230] sm:$0xff]
  %v104 = vld [vmem:[%s1 + $0x238] sm:$0xff]
  %v105 = vld [vmem:[%s1 + $0x240] sm:$0xff]
  %v106 = vld [vmem:[%s1 + $0x248] sm:$0xff]
  %v107 = vld [vmem:[%s1 + $0x250] sm:$0xff]
  %v108 = vld [vmem:[%s1 + $0x258] sm:$0xff]
  %v109 = vld [vmem:[%s1 + $0x260] sm:$0xff]
  %v110 = vld [vmem:[%s1 + $0x268] sm:$0xff]
  %v111 = vld [vmem:[%s1 + $0x270] sm:$0xff]
  %v112 = vld [vmem:[%s1 + $0x278] sm:$0xff]
  %v113 = vld [vmem:[%s1 + $0x280] sm:$0xff]
  %v114 = vld [vmem:[%s1 + $0x288] sm:$0xff]
  %v115 = vld [vmem:[%s1 + $0x290] sm:$0xff]
  %v116 = vld [vmem:[%s1 + $0x298] sm:$0xff]
  %v117 = vld [vmem:[%s1 + $0x2a0] sm:$0xff]
  %v118 = vld [vmem:[%s1 + $0x2a8] sm:$0xff]
  %v119 = vld [vmem:[%s1 + $0x2b0] sm:$0xff]
  %v120 = vld [vmem:[%s1 + $0x2b8] sm:$0xff]
  %v121 = vld [vmem:[%s1 + $0x2c0] sm:$0xff]
  %v122 = vld [vmem:[%s1 + $0x2c8] sm:$0xff]
  %v123 = vld [vmem:[%s1 + $0x2d0] sm:$0xff]
  %v124 = vld [vmem:[%s1 + $0x2d8] sm:$0xff]
  %v125 = vld [vmem:[%s1 + $0x2e0] sm:$0xff]
  %v126 = vld [vmem:[%s1 + $0x2e8] sm:$0xff]
  %v127 = vld [vmem:[%s1 + $0x2f0] sm:$0xff]
  %v128 = vld [vmem:[%s1 + $0x2f8] sm:$0xff]
  %v225 = vunpack.c.l.b16 %v33
  %v226 = vunpack.c.h.b16 %v33
  %v227 = vunpack.c.l.b16 %v34
  %v228 = vunpack.c.h.b16 %v34
  %v229 = vunpack.c.l.b16 %v35
  %v230 = vunpack.c.h.b16 %v35
  %v231 = vunpack.c.l.b16 %v36
  %v232 = vunpack.c.h.b16 %v36
  %v233 = vunpack.c.l.b16 %v37
  %v234 = vunpack.c.h.b16 %v37
  %v235 = vunpack.c.l.b16 %v38
  %v236 = vunpack.c.h.b16 %v38
  %v237 = vunpack.c.l.b16 %v39
  %v238 = vunpack.c.h.b16 %v39
  %v239 = vunpack.c.l.b16 %v40
  %v240 = vunpack.c.h.b16 %v40
  %v241 = vunpack.c.l.b16 %v41
  %v242 = vunpack.c.h.b16 %v41
  %v243 = vunpack.c.l.b16 %v42
  %v244 = vunpack.c.h.b16 %v42
  %v245 = vunpack.c.l.b16 %v43
  %v246 = vunpack.c.h.b16 %v43
  %v247 = vunpack.c.l.b16 %v44
  %v248 = vunpack.c.h.b16 %v44
  %v249 = vunpack.c.l.b16 %v45
  %v250 = vunpack.c.h.b16 %v45
  %v251 = vunpack.c.l.b16 %v46
  %v252 = vunpack.c.h.b16 %v46
  %v253 = vunpack.c.l.b16 %v47
  %v254 = vunpack.c.h.b16 %v47
  %v255 = vunpack.c.l.b16 %v48
  %v256 = vunpack.c.h.b16 %v48
  %v257 = vunpack.c.l.b16 %v49
  %v258 = vunpack.c.h.b16 %v49
  %v259 = vunpack.c.l.b16 %v50
  %v260 = vunpack.c.h.b16 %v50
  %v261 = vunpack.c.l.b16 %v51
  %v262 = vunpack.c.h.b16 %v51
  %v263 = vunpack.c.l.b16 %v52
  %v264 = vunpack.c.h.b16 %v52
  %v265 = vunpack.c.l.b16 %v53
  %v266 = vunpack.c.h.b16 %v53
  %v267 = vunpack.c.l.b16 %v54
  %v268 = vunpack.c.h.b16 %v54
  %v269 = vunpack.c.l.b16 %v55
  %v270 = vunpack.c.h.b16 %v55
  %v271 = vunpack.c.l.b16 %v56
  %v272 = vunpack.c.h.b16 %v56
  %v273 = vunpack.c.l.b16 %v57
  %v274 = vunpack.c.h.b16 %v57
  %v275 = vunpack.c.l.b16 %v58
  %v276 = vunpack.c.h.b16 %v58
  %v277 = vunpack.c.l.b16 %v59
  %v278 = vunpack.c.h.b16 %v59
  %v279 = vunpack.c.l.b16 %v60
  %v280 = vunpack.c.h.b16 %v60
  %v281 = vunpack.c.l.b16 %v61
  %v282 = vunpack.c.h.b16 %v61
  %v283 = vunpack.c.l.b16 %v62
  %v284 = vunpack.c.h.b16 %v62
  %v285 = vunpack.c.l.b16 %v63
  %v286 = vunpack.c.h.b16 %v63
  %v287 = vunpack.c.l.b16 %v64
  %v288 = vunpack.c.h.b16 %v64
  %v289 = vunpack.c.l.b16 %v65
  %v290 = vunpack.c.h.b16 %v65
  %v291 = vunpack.c.l.b16 %v66
  %v292 = vunpack.c.h.b16 %v66
  %v293 = vunpack.c.l.b16 %v67
  %v294 = vunpack.c.h.b16 %v67
  %v295 = vunpack.c.l.b16 %v68
  %v296 = vunpack.c.h.b16 %v68
  %v297 = vunpack.c.l.b16 %v69
  %v298 = vunpack.c.h.b16 %v69
  %v299 = vunpack.c.l.b16 %v70
  %v300 = vunpack.c.h.b16 %v70
  %v301 = vunpack.c.l.b16 %v71
  %v302 = vunpack.c.h.b16 %v71
  %v303 = vunpack.c.l.b16 %v72
  %v304 = vunpack.c.h.b16 %v72
  %v305 = vunpack.c.l.b16 %v73
  %v306 = vunpack.c.h.b16 %v73
  %v307 = vunpack.c.l.b16 %v74
  %v308 = vunpack.c.h.b16 %v74
  %v309 = vunpack.c.l.b16 %v75
  %v310 = vunpack.c.h.b16 %v75
  %v311 = vunpack.c.l.b16 %v76
  %v312 = vunpack.c.h.b16 %v76
  %v313 = vunpack.c.l.b16 %v77
  %v314 = vunpack.c.h.b16 %v77
  %v315 = vunpack.c.l.b16 %v78
  %v316 = vunpack.c.h.b16 %v78
  %v317 = vunpack.c.l.b16 %v79
  %v318 = vunpack.c.h.b16 %v79
  %v319 = vunpack.c.l.b16 %v80
  %v320 = vunpack.c.h.b16 %v80
  %v321 = vunpack.c.l.b16 %v81
  %v322 = vunpack.c.h.b16 %v81
  %v323 = vunpack.c.l.b16 %v82
  %v324 = vunpack.c.h.b16 %v82
  %v325 = vunpack.c.l.b16 %v83
  %v326 = vunpack.c.h.b16 %v83
  %v327 = vunpack.c.l.b16 %v84
  %v328 = vunpack.c.h.b16 %v84
  %v329 = vunpack.c.l.b16 %v85
  %v330 = vunpack.c.h.b16 %v85
  %v331 = vunpack.c.l.b16 %v86
  %v332 = vunpack.c.h.b16 %v86
  %v333 = vunpack.c.l.b16 %v87
  %v334 = vunpack.c.h.b16 %v87
  %v335 = vunpack.c.l.b16 %v88
  %v336 = vunpack.c.h.b16 %v88
  %v337 = vunpack.c.l.b16 %v89
  %v338 = vunpack.c.h.b16 %v89
  %v339 = vunpack.c.l.b16 %v90
  %v340 = vunpack.c.h.b16 %v90
  %v341 = vunpack.c.l.b16 %v91
  %v342 = vunpack.c.h.b16 %v91
  %v343 = vunpack.c.l.b16 %v92
  %v344 = vunpack.c.h.b16 %v92
  %v345 = vunpack.c.l.b16 %v93
  %v346 = vunpack.c.h.b16 %v93
  %v347 = vunpack.c.l.b16 %v94
  %v348 = vunpack.c.h.b16 %v94
  %v349 = vunpack.c.l.b16 %v95
  %v350 = vunpack.c.h.b16 %v95
  %v351 = vunpack.c.l.b16 %v96
  %v352 = vunpack.c.h.b16 %v96
  %v353 = vunpack.c.l.b16 %v97
  %v354 = vunpack.c.h.b16 %v97
  %v355 = vunpack.c.l.b16 %v98
  %v356 = vunpack.c.h.b16 %v98
  %v357 = vunpack.c.l.b16 %v99
  %v358 = vunpack.c.h.b16 %v99
  %v359 = vunpack.c.l.b16 %v100
  %v360 = vunpack.c.h.b16 %v100
  %v361 = vunpack.c.l.b16 %v101
  %v362 = vunpack.c.h.b16 %v101
  %v363 = vunpack.c.l.b16 %v102
  %v364 = vunpack.c.h.b16 %v102
  %v365 = vunpack.c.l.b16 %v103
  %v366 = vunpack.c.h.b16 %v103
  %v367 = vunpack.c.l.b16 %v104
  %v368 = vunpack.c.h.b16 %v104
  %v369 = vunpack.c.l.b16 %v105
  %v370 = vunpack.c.h.b16 %v105
  %v371 = vunpack.c.l.b16 %v106
  %v372 = vunpack.c.h.b16 %v106
  %v373 = vunpack.c.l.b16 %v107
  %v374 = vunpack.c.h.b16 %v107
  %v375 = vunpack.c.l.b16 %v108
  %v376 = vunpack.c.h.b16 %v108
  %v377 = vunpack.c.l.b16 %v109
  %v378 = vunpack.c.h.b16 %v109
  %v379 = vunpack.c.l.b16 %v110
  %v380 = vunpack.c.h.b16 %v110
  %v381 = vunpack.c.l.b16 %v111
  %v382 = vunpack.c.h.b16 %v111
  %v383 = vunpack.c.l.b16 %v112
  %v384 = vunpack.c.h.b16 %v112
  %v385 = vunpack.c.l.b16 %v113
  %v386 = vunpack.c.h.b16 %v113
  %v387 = vunpack.c.l.b16 %v114
  %v388 = vunpack.c.h.b16 %v114
  %v389 = vunpack.c.l.b16 %v115
  %v390 = vunpack.c.h.b16 %v115
  %v391 = vunpack.c.l.b16 %v116
  %v392 = vunpack.c.h.b16 %v116
  %v393 = vunpack.c.l.b16 %v117
  %v394 = vunpack.c.h.b16 %v117
  %v395 = vunpack.c.l.b16 %v118
  %v396 = vunpack.c.h.b16 %v118
  %v397 = vunpack.c.l.b16 %v119
  %v398 = vunpack.c.h.b16 %v119
  %v399 = vunpack.c.l.b16 %v120
  %v400 = vunpack.c.h.b16 %v120
  %v401 = vunpack.c.l.b16 %v121
  %v402 = vunpack.c.h.b16 %v121
  %v403 = vunpack.c.l.b16 %v122
  %v404 = vunpack.c.h.b16 %v122
  %v405 = vunpack.c.l.b16 %v123
  %v406 = vunpack.c.h.b16 %v123
  %v407 = vunpack.c.l.b16 %v124
  %v408 = vunpack.c.h.b16 %v124
  %v409 = vunpack.c.l.b16 %v125
  %v410 = vunpack.c.h.b16 %v125
  %v411 = vunpack.c.l.b16 %v126
  %v412 = vunpack.c.h.b16 %v126
  %v413 = vunpack.c.l.b16 %v127
  %v414 = vunpack.c.h.b16 %v127
  %v415 = vunpack.c.l.b16 %v128
  %v416 = vunpack.c.h.b16 %v128
  %v417 = vpack.c.b16 %v229, %v225
  %v418 = vpack.c.b16 %v230, %v226
  %v419 = vpack.c.b16 %v231, %v227
  %v420 = vpack.c.b16 %v232, %v228
  %v421 = vpack.c.b16 %v237, %v233
  %v422 = vpack.c.b16 %v238, %v234
  %v423 = vpack.c.b16 %v239, %v235
  %v424 = vpack.c.b16 %v240, %v236
  %v425 = vpack.c.b16 %v245, %v241
  %v426 = vpack.c.b16 %v246, %v242
  %v427 = vpack.c.b16 %v247, %v243
  %v428 = vpack.c.b16 %v248, %v244
  %v429 = vpack.c.b16 %v253, %v249
  %v430 = vpack.c.b16 %v254, %v250
  %v431 = vpack.c.b16 %v255, %v251
  %v432 = vpack.c.b16 %v256, %v252
  %v433 = vpack.c.b16 %v261, %v257
  %v434 = vpack.c.b16 %v262, %v258
  %v435 = vpack.c.b16 %v263, %v259
  %v436 = vpack.c.b16 %v264, %v260
  %v437 = vpack.c.b16 %v269, %v265
  %v438 = vpack.c.b16 %v270, %v266
  %v439 = vpack.c.b16 %v271, %v267
  %v440 = vpack.c.b16 %v272, %v268
  %v441 = vpack.c.b16 %v277, %v273
  %v442 = vpack.c.b16 %v278, %v274
  %v443 = vpack.c.b16 %v279, %v275
  %v444 = vpack.c.b16 %v280, %v276
  %v445 = vpack.c.b16 %v285, %v281
  %v446 = vpack.c.b16 %v286, %v282
  %v447 = vpack.c.b16 %v287, %v283
  %v448 = vpack.c.b16 %v288, %v284
  %v449 = vpack.c.b16 %v293, %v289
  %v450 = vpack.c.b16 %v294, %v290
  %v451 = vpack.c.b16 %v295, %v291
  %v452 = vpack.c.b16 %v296, %v292
  %v453 = vpack.c.b16 %v301, %v297
  %v454 = vpack.c.b16 %v302, %v298
  %v455 = vpack.c.b16 %v303, %v299
  %v456 = vpack.c.b16 %v304, %v300
  %v457 = vpack.c.b16 %v309, %v305
  %v458 = vpack.c.b16 %v310, %v306
  %v459 = vpack.c.b16 %v311, %v307
  %v460 = vpack.c.b16 %v312, %v308
  %v461 = vpack.c.b16 %v317, %v313
  %v462 = vpack.c.b16 %v318, %v314
  %v463 = vpack.c.b16 %v319, %v315
  %v464 = vpack.c.b16 %v320, %v316
  %v465 = vpack.c.b16 %v325, %v321
  %v466 = vpack.c.b16 %v326, %v322
  %v467 = vpack.c.b16 %v327, %v323
  %v468 = vpack.c.b16 %v328, %v324
  %v469 = vpack.c.b16 %v333, %v329
  %v470 = vpack.c.b16 %v334, %v330
  %v471 = vpack.c.b16 %v335, %v331
  %v472 = vpack.c.b16 %v336, %v332
  %v473 = vpack.c.b16 %v341, %v337
  %v474 = vpack.c.b16 %v342, %v338
  %v475 = vpack.c.b16 %v343, %v339
  %v476 = vpack.c.b16 %v344, %v340
  %v477 = vpack.c.b16 %v349, %v345
  %v478 = vpack.c.b16 %v350, %v346
  %v479 = vpack.c.b16 %v351, %v347
  %v480 = vpack.c.b16 %v352, %v348
  %v481 = vpack.c.b16 %v357, %v353
  %v482 = vpack.c.b16 %v358, %v354
  %v483 = vpack.c.b16 %v359, %v355
  %v484 = vpack.c.b16 %v360, %v356
  %v485 = vpack.c.b16 %v365, %v361
  %v486 = vpack.c.b16 %v366, %v362
  %v487 = vpack.c.b16 %v367, %v363
  %v488 = vpack.c.b16 %v368, %v364
  %v489 = vpack.c.b16 %v373, %v369
  %v490 = vpack.c.b16 %v374, %v370
  %v491 = vpack.c.b16 %v375, %v371
  %v492 = vpack.c.b16 %v376, %v372
  %v493 = vpack.c.b16 %v381, %v377
  %v494 = vpack.c.b16 %v382, %v378
  %v495 = vpack.c.b16 %v383, %v379
  %v496 = vpack.c.b16 %v384, %v380
  %v497 = vpack.c.b16 %v389, %v385
  %v498 = vpack.c.b16 %v390, %v386
  %v499 = vpack.c.b16 %v391, %v387
  %v500 = vpack.c.b16 %v392, %v388
  %v501 = vpack.c.b16 %v397, %v393
  %v502 = vpack.c.b16 %v398, %v394
  %v503 = vpack.c.b16 %v399, %v395
  %v504 = vpack.c.b16 %v400, %v396
  %v505 = vpack.c.b16 %v405, %v401
  %v506 = vpack.c.b16 %v406, %v402
  %v507 = vpack.c.b16 %v407, %v403
  %v508 = vpack.c.b16 %v408, %v404
  %v509 = vpack.c.b16 %v413, %v409
  %v510 = vpack.c.b16 %v414, %v410
  %v511 = vpack.c.b16 %v415, %v411
  %v512 = vpack.c.b16 %v416, %v412
  %609 = vmatprep.subr.bf16.mxu0 %v418
  %610 = vmatpush1.bf16.msra.mxu0 %v417
  %611 = vmatprep.subr.bf16.mxu0 %v422
  %612 = vmatpush1.bf16.msra.mxu0 %v421
  %613 = vmatprep.subr.bf16.mxu0 %v426
  %614 = vmatpush1.bf16.msra.mxu0 %v425
  %615 = vmatprep.subr.bf16.mxu0 %v430
  %616 = vmatpush1.bf16.msra.mxu0 %v429
  %617 = vmatprep.subr.bf16.mxu0 %v434
  %618 = vmatpush1.bf16.msra.mxu0 %v433
  %619 = vmatprep.subr.bf16.mxu0 %v438
  %620 = vmatpush1.bf16.msra.mxu0 %v437
  %621 = vmatprep.subr.bf16.mxu0 %v442
  %622 = vmatpush1.bf16.msra.mxu0 %v441
  %623 = vmatprep.subr.bf16.mxu0 %v446
  %624 = vmatpush1.bf16.msra.mxu0 %v445
  %625 = vmatprep.subr.bf16.mxu0 %v450
  %626 = vmatpush1.bf16.msra.mxu0 %v449
  %627 = vmatprep.subr.bf16.mxu0 %v454
  %628 = vmatpush1.bf16.msra.mxu0 %v453
  %629 = vmatprep.subr.bf16.mxu0 %v458
  %630 = vmatpush1.bf16.msra.mxu0 %v457
  %631 = vmatprep.subr.bf16.mxu0 %v462
  %632 = vmatpush1.bf16.msra.mxu0 %v461
  %633 = vmatprep.subr.bf16.mxu0 %v466
  %634 = vmatpush1.bf16.msra.mxu0 %v465
  %635 = vmatprep.subr.bf16.mxu0 %v470
  %636 = vmatpush1.bf16.msra.mxu0 %v469
  %637 = vmatprep.subr.bf16.mxu0 %v474
  %638 = vmatpush1.bf16.msra.mxu0 %v473
  %639 = vmatprep.subr.bf16.mxu0 %v478
  %640 = vmatpush1.bf16.msra.mxu0 %v477
  %641 = vmatprep.mubr.bf16.mxu0 %v31
  %642 = vmatmul.mubr.bf16.gmra.mrb[0].mxu0 %v30
  %v643 = vpop.f32.mrb[0].mxu0
  %v644 = vadd.f32 0.0, %v643
  %v645 = vpop.f32.mrb[0].mxu0
  %v646 = vadd.f32 0.0, %v645
  %v647 = vpop.f32.mrb[0].mxu0
  %v648 = vpop.f32.mrb[0].mxu0
  %649 = vdwg.mxu0
  %650 = vmatprep.subr.bf16.mxu0 %v482
  %651 = vmatpush1.bf16.msra.mxu0 %v481
  %652 = vmatprep.subr.bf16.mxu0 %v486
  %653 = vmatpush1.bf16.msra.mxu0 %v485
  %654 = vmatprep.subr.bf16.mxu0 %v490
  %655 = vmatpush1.bf16.msra.mxu0 %v489
  %656 = vmatprep.subr.bf16.mxu0 %v494
  %657 = vmatpush1.bf16.msra.mxu0 %v493
  %658 = vmatprep.subr.bf16.mxu0 %v498
  %659 = vmatpush1.bf16.msra.mxu0 %v497
  %660 = vmatprep.subr.bf16.mxu0 %v502
  %661 = vmatpush1.bf16.msra.mxu0 %v501
  %662 = vmatprep.subr.bf16.mxu0 %v506
  %663 = vmatpush1.bf16.msra.mxu0 %v505
  %664 = vmatprep.subr.bf16.mxu0 %v510
  %665 = vmatpush1.bf16.msra.mxu0 %v509
  %666 = vmatprep.subr.bf16.mxu0 0
  %667 = vmatpush1.bf16.msra.mxu0 0
  %668 = vmatprep.subr.bf16.mxu0 0
  %669 = vmatpush1.bf16.msra.mxu0 0
  %670 = vmatprep.subr.bf16.mxu0 0
  %671 = vmatpush1.bf16.msra.mxu0 0
  %672 = vmatprep.subr.bf16.mxu0 0
  %673 = vmatpush1.bf16.msra.mxu0 0
  %674 = vmatprep.subr.bf16.mxu0 0
  %675 = vmatpush1.bf16.msra.mxu0 0
  %676 = vmatprep.subr.bf16.mxu0 0
  %677 = vmatpush1.bf16.msra.mxu0 0
  %678 = vmatprep.subr.bf16.mxu0 0
  %679 = vmatpush1.bf16.msra.mxu0 0
  %680 = vmatprep.subr.bf16.mxu0 0
  %681 = vmatpush1.bf16.msra.mxu0 0
  %682 = vmatprep.mubr.bf16.mxu0 0
  %683 = vmatmul.mubr.bf16.gmra.mrb[0].mxu0 %v32
  %v684 = vpop.f32.mrb[0].mxu0
  %v685 = vadd.f32 %v644, %v684
  %v686 = vpop.f32.mrb[0].mxu0
  %v687 = vadd.f32 %v646, %v686
  %v688 = vpop.f32.mrb[0].mxu0
  %v689 = vpop.f32.mrb[0].mxu0
  %690 = vdwg.mxu0
  %691 = vmatprep.subr.bf16.mxu0 %v420
  %692 = vmatpush1.bf16.msra.mxu0 %v419
  %693 = vmatprep.subr.bf16.mxu0 %v424
  %694 = vmatpush1.bf16.msra.mxu0 %v423
  %695 = vmatprep.subr.bf16.mxu0 %v428
  %696 = vmatpush1.bf16.msra.mxu0 %v427
  %697 = vmatprep.subr.bf16.mxu0 %v432
  %698 = vmatpush1.bf16.msra.mxu0 %v431
  %699 = vmatprep.subr.bf16.mxu0 %v436
  %700 = vmatpush1.bf16.msra.mxu0 %v435
  %701 = vmatprep.subr.bf16.mxu0 %v440
  %702 = vmatpush1.bf16.msra.mxu0 %v439
  %703 = vmatprep.subr.bf16.mxu0 %v444
  %704 = vmatpush1.bf16.msra.mxu0 %v443
  %705 = vmatprep.subr.bf16.mxu0 %v448
  %706 = vmatpush1.bf16.msra.mxu0 %v447
  %707 = vmatprep.subr.bf16.mxu0 %v452
  %708 = vmatpush1.bf16.msra.mxu0 %v451
  %709 = vmatprep.subr.bf16.mxu0 %v456
  %710 = vmatpush1.bf16.msra.mxu0 %v455
  %711 = vmatprep.subr.bf16.mxu0 %v460
  %712 = vmatpush1.bf16.msra.mxu0 %v459
  %713 = vmatprep.subr.bf16.mxu0 %v464
  %714 = vmatpush1.bf16.msra.mxu0 %v463
  %715 = vmatprep.subr.bf16.mxu0 %v468
  %716 = vmatpush1.bf16.msra.mxu0 %v467
  %717 = vmatprep.subr.bf16.mxu0 %v472
  %718 = vmatpush1.bf16.msra.mxu0 %v471
  %719 = vmatprep.subr.bf16.mxu0 %v476
  %720 = vmatpush1.bf16.msra.mxu0 %v475
  %721 = vmatprep.subr.bf16.mxu0 %v480
  %722 = vmatpush1.bf16.msra.mxu0 %v479
  %723 = vmatprep.mubr.bf16.mxu0 %v31
  %724 = vmatmul.mubr.bf16.gmra.mrb[0].mxu0 %v30
  %v725 = vpop.f32.mrb[0].mxu0
  %v726 = vadd.f32 0.0, %v725
  %v727 = vpop.f32.mrb[0].mxu0
  %v728 = vadd.f32 0.0, %v727
  %v729 = vpop.f32.mrb[0].mxu0
  %v730 = vpop.f32.mrb[0].mxu0
  %731 = vdwg.mxu0
  %732 = vmatprep.subr.bf16.mxu0 %v484
  %733 = vmatpush1.bf16.msra.mxu0 %v483
  %734 = vmatprep.subr.bf16.mxu0 %v488
  %735 = vmatpush1.bf16.msra.mxu0 %v487
  %736 = vmatprep.subr.bf16.mxu0 %v492
  %737 = vmatpush1.bf16.msra.mxu0 %v491
  %738 = vmatprep.subr.bf16.mxu0 %v496
  %739 = vmatpush1.bf16.msra.mxu0 %v495
  %740 = vmatprep.subr.bf16.mxu0 %v500
  %741 = vmatpush1.bf16.msra.mxu0 %v499
  %742 = vmatprep.subr.bf16.mxu0 %v504
  %743 = vmatpush1.bf16.msra.mxu0 %v503
  %744 = vmatprep.subr.bf16.mxu0 %v508
  %745 = vmatpush1.bf16.msra.mxu0 %v507
  %746 = vmatprep.subr.bf16.mxu0 %v512
  %747 = vmatpush1.bf16.msra.mxu0 %v511
  %748 = vmatprep.subr.bf16.mxu0 0
  %749 = vmatpush1.bf16.msra.mxu0 0
  %750 = vmatprep.subr.bf16.mxu0 0
  %751 = vmatpush1.bf16.msra.mxu0 0
  %752 = vmatprep.subr.bf16.mxu0 0
  %753 = vmatpush1.bf16.msra.mxu0 0
  %754 = vmatprep.subr.bf16.mxu0 0
  %755 = vmatpush1.bf16.msra.mxu0 0
  %756 = vmatprep.subr.bf16.mxu0 0
  %757 = vmatpush1.bf16.msra.mxu0 0
  %758 = vmatprep.subr.bf16.mxu0 0
  %759 = vmatpush1.bf16.msra.mxu0 0
  %760 = vmatprep.subr.bf16.mxu0 0
  %761 = vmatpush1.bf16.msra.mxu0 0
  %762 = vmatprep.subr.bf16.mxu0 0
  %763 = vmatpush1.bf16.msra.mxu0 0
  %764 = vmatprep.mubr.bf16.mxu0 0
  %765 = vmatmul.mubr.bf16.gmra.mrb[0].mxu0 %v32
  %v766 = vpop.f32.mrb[0].mxu0
  %v767 = vadd.f32 %v726, %v766
  %v768 = vpop.f32.mrb[0].mxu0
  %v769 = vadd.f32 %v728, %v768
  %v770 = vpop.f32.mrb[0].mxu0
  %v771 = vpop.f32.mrb[0].mxu0
  %772 = vdwg.mxu0
  %v773 = vadd.f32 %v23, %v685
  %v774 = vadd.f32 %v24, %v687
  %v775 = vadd.f32 %v25, %v767
  %v776 = vadd.f32 %v26, %v769
  %777 = vst [vmem:[%s3] sm:$0xff] %v773
  %778 = vst [vmem:[%s3 + $0x8] sm:$0xff] %v774
  %779 = vst [vmem:[%s3 + $0x10] sm:$0xff] %v775
  %780 = vst [vmem:[%s3 + $0x18] sm:$0xff] %v776
  // Predicated region
  $region18: #{gpt4mts_forward.28} parent=0 // pred_check
    %p781 = pneg %p15
  $region19: #{gpt4mts_forward.28} parent=0 // pred_check_branch
    %783 = sbr.rel (%p781) target = $region21
  $region20: #{gpt4mts_forward.28} parent=0 // pred_region
    %v784 = vld [vmem:[%s3] sm:$0xff]
    %v785 = vld [vmem:[%s3 + $0x8] sm:$0xff]
    %v786 = vld [vmem:[%s3 + $0x10] sm:$0xff]
    %v787 = vld [vmem:[%s3 + $0x18] sm:$0xff]
    %v788 = vld [vmem:[%s2] sm:$0xf]
    %v790 = vlaneseq
    %v791 = vshrl.u32 %v790, 7
    %v792 = vsub.s32 0, %v791
    %v793 = vrot.slane %v788, %v792
    %v794 = vlaneseq
    %v795 = vshrl.u32 %v794, 7
    %v796 = vsub.s32 1, %v795
    %v797 = vrot.slane %v788, %v796
    %v798 = vlaneseq
    %v799 = vshrl.u32 %v798, 7
    %v800 = vsub.s32 2, %v799
    %v801 = vrot.slane %v788, %v800
    %v802 = vlaneseq
    %v803 = vshrl.u32 %v802, 7
    %v804 = vsub.s32 3, %v803
    %v805 = vrot.slane %v788, %v804
    %v810 = vadd.f32 %v784, %v793
    %v811 = vadd.f32 %v785, %v797
    %v812 = vadd.f32 %v786, %v801
    %v813 = vadd.f32 %v787, %v805
    %v814 = vmax.f32 %v810, 0.0
    %v815 = vmax.f32 %v811, 0.0
    %v816 = vmax.f32 %v812, 0.0
    %v817 = vmax.f32 %v813, 0.0
    %818 = vst [vmem:[%s3] sm:$0xff] %v814
    %819 = vst [vmem:[%s3 + $0x8] sm:$0xff] %v815
    %820 = vst [vmem:[%s3 + $0x10] sm:$0xff] %v816
    %821 = vst [vmem:[%s3 + $0x18] sm:$0xff] %v817
  $region21: #{gpt4mts_forward.28} parent=0 // pred_fallthru
    _
  // Predicated region
  $region22: #{gpt4mts_forward.28} parent=0 // pred_check
    _
  $region23: #{gpt4mts_forward.28} parent=0 // pred_check_branch
    %823 = sbr.rel (0) target = $region25
  $region24: #{gpt4mts_forward.28} parent=0 // pred_region
    _
  $region25: #{gpt4mts_forward.28} parent=0 // pred_fallthru
    _
  // Predicated region
  $region26: #{gpt4mts_forward.28} parent=0 // pred_check
    _
  $region27: #{gpt4mts_forward.28} parent=0 // pred_check_branch
    %825 = sbr.rel (0) target = $region29
  $region28: #{gpt4mts_forward.28} parent=0 // pred_region
    _
  $region29: #{gpt4mts_forward.28} parent=0 // pred_fallthru
    _

</llo_original>
